<compile_context>
chip_gen: v7x
topology: tpu7x:2x2x1
jax: 0.10.0
libtpu: 0.0.40
codegen_flags: <defaults>
</compile_context>

<pallas_src>
import functools

import jax
import jax.numpy as jnp
from jax.experimental import pallas as pl
from jax.experimental.pallas import tpu as pltpu


# ----------------------------- kernel ----------------------------------------


def _layer_norm(x, gamma, beta, eps=1e-5):
    mean = jnp.mean(x, axis=-1, keepdims=True)
    var = jnp.mean((x - mean) ** 2, axis=-1, keepdims=True)
    return (x - mean) * jax.lax.rsqrt(var + eps) * gamma + beta


def transformer_kernel(
    # inputs (blocks selected by the (batch_chunk, layer) grid position)
    x_ref,                      # (Bc, L, D)   f32   embedded tokens (+pos), chunk b
    wqkv_ref, bqkv_ref,         # (1, D, 3D) cdt, (1, 1, 3D) f32   layer li
    wo_ref, bo_ref,             # (1, D, D)  cdt, (1, 1, D)  f32
    g1_ref, be1_ref,            # (1, 1, D)  f32
    w1_ref, b1_ref,             # (1, D, F)  cdt, (1, 1, F)  f32
    w2_ref, b2_ref,             # (1, F, D)  cdt, (1, 1, D)  f32
    g2_ref, be2_ref,            # (1, 1, D)  f32
    fcw_ref, fcb_ref,           # (D, V) cdt, (1, V) f32   (layer-invariant)
    # output
    o_ref,                      # (Bc, L, V)  f32  logits, written on last layer step
    # scratch
    act_ref,                    # (Bc, L, D)  f32  activation carried across layers
    attn_ref,                   # (Bc*L, D)   f32  per-head reassembly buffer
    *, num_heads, compute_dtype,
):
    li = pl.program_id(1)
    cdt = compute_dtype

    # Load the embedded input into the carried activation on the first layer step.
    @pl.when(li == 0)
    def _():
        act_ref[...] = x_ref[...]

    Bc, L, D = act_ref.shape
    H = num_heads
    dh = D // H
    R = Bc * L

    x = act_ref[...].reshape(R, D)          # (R, D) f32, rows = (chunk_row, position)

    # Causal mask built in-kernel (no (L, L) HBM DMA).  Finite -1e30 instead of
    # -inf so a masked entry can never produce NaN via an inf-inf path.
    rows = jax.lax.broadcasted_iota(jnp.int32, (L, L), 0)
    cols = jax.lax.broadcasted_iota(jnp.int32, (L, L), 1)
    mask = jnp.where(rows >= cols, jnp.float32(0.0), jnp.float32(-1e30))

    scale = jnp.float32(1.0 / float(dh) ** 0.5)

    # ---- self-attention ------------------------------------------------------
    # Fused QKV projection; weights are pre-transposed to (D, 3D) and pre-cast
    # to `compute_dtype` on the host, so only the activation is cast in-kernel.
    qkv = jnp.dot(x.astype(cdt), wqkv_ref[0],
                  preferred_element_type=jnp.float32) + bqkv_ref[0]      # (R, 3D) f32

    # Head split: one stack over 3*H(*Bc) static lane slices -> batched einsums.
    # At D=32 / dh=8 the head split is a sub-(8,128)-tile lane relayout however
    # it is spelled; this formulation keeps a known-good lowering.
    # TODO(synk): with d_model / dh >= 128, replace with a plain contiguous
    # reshape (heads on the sublane axis, lane axis stays full-width).
    qkv_h = jnp.stack(
        [qkv[b * L:(b + 1) * L, i * dh:(i + 1) * dh]
         for i in range(3 * H) for b in range(Bc)],
        axis=0)                                                          # (3*H*Bc, L, dh)
    Z = H * Bc
    q, k, v = qkv_h[0:Z], qkv_h[Z:2 * Z], qkv_h[2 * Z:3 * Z]

    s = jnp.einsum('zqd,zkd->zqk', q.astype(cdt), k.astype(cdt),
                   preferred_element_type=jnp.float32) * scale + mask[None]
    s = s - jnp.max(s, axis=-1, keepdims=True)
    p = jnp.exp(s)
    p = p * pl.reciprocal(jnp.sum(p, axis=-1, keepdims=True), approx=True)

    a = jnp.einsum('zqk,zkd->zqd', p.astype(cdt), v.astype(cdt),
                   preferred_element_type=jnp.float32)                   # (Z, L, dh)

    # Reassemble heads into a (R, D) row-major VMEM buffer with cheap masked
    # stores, then ONE (R, D) @ (D, D) output projection
    # (replaces the previous H serial K=dh micro-dots + add chain).
    for i in range(H):
        for b in range(Bc):
            attn_ref[b * L:(b + 1) * L, i * dh:(i + 1) * dh] = a[i * Bc + b]
    attn = jnp.dot(attn_ref[...].astype(cdt), wo_ref[0],
                   preferred_element_type=jnp.float32) + bo_ref[0]

    # post-LN residual 1 (f32)
    x = _layer_norm(x + attn, g1_ref[0], be1_ref[0])

    # ---- feed-forward (relu) -------------------------------------------------
    # TODO(synk): chunk the dff axis (accumulate `ff` over ~512-wide slices of
    # w1/w2) once L*dff grows beyond a few MiB; at L=8 the intermediate is tiny.
    h1 = jnp.dot(x.astype(cdt), w1_ref[0],
                 preferred_element_type=jnp.float32) + b1_ref[0]
    h1 = jnp.maximum(h1, 0.0)
    ff = jnp.dot(h1.astype(cdt), w2_ref[0],
                 preferred_element_type=jnp.float32) + b2_ref[0]

    # post-LN residual 2 (f32), carried to the next layer step.
    x = _layer_norm(x + ff, g2_ref[0], be2_ref[0])
    act_ref[...] = x.reshape(Bc, L, D)

    # ---- final vocab projection only on the last layer step -------------------
    @pl.when(li == pl.num_programs(1) - 1)
    def _():
        logits = jnp.dot(x.astype(cdt), fcw_ref[...],
                         preferred_element_type=jnp.float32) + fcb_ref[...]
        o_ref[...] = logits.reshape(o_ref.shape)


# ----------------------------- wrapper ----------------------------------------


def transformer_forward(tokens, params, num_heads, *,
                        compute_dtype=jnp.bfloat16, batch_block=None):
    """Full Transformer.forward as a single pallas_call.

    grid = (num_batch_chunks, num_layers):
      * batch axis  -> "parallel": the default keeps >=2 chunks so both v7x
        TensorCores are fed; on single-TC v5e/v6e pass batch_block=B to fold
        the whole batch into one grid step (fewer, larger matmuls).
      * layer axis  -> "arbitrary": per-layer weights are streamed (and
        double-buffered) through VMEM while the f32 activation is carried in a
        VMEM scratch, so ~one layer of weights is resident at a time.
    Matmul weights are pre-transposed and pre-cast to `compute_dtype`
    (bf16 by default, f32 for exact parity); LN/residual/softmax stay f32.
    """
    B, L = tokens.shape
    emb = params["embedding"]                   # (V, D)
    pos = params["pos_embedding"]               # (max_len, D)
    D = emb.shape[1]
    V = params["fc_w"].shape[0]
    layers = params["layers"]
    NL = len(layers)
    dff = layers[0][6].shape[0]
    assert D % num_heads == 0

    if batch_block is None:
        batch_block = max(1, B // 2) if B % 2 == 0 else B
    assert B % batch_block == 0
    NB = B // batch_block

    # Embedding lookup + learned positional embedding (host-side glue).
    x = jnp.take(emb, tokens, axis=0) + pos[:L][None, :, :]

    # Pre-transpose to (in, out), pre-cast matmul weights to compute_dtype, and
    # stack per-layer tensors on a leading num_layers axis (done once, host side).
    wdt = compute_dtype
    wqkv = jnp.stack([p[0].T for p in layers]).astype(wdt)   # (NL, D, 3D)
    bqkv = jnp.stack([p[1] for p in layers])                 # (NL, 1, 3D) f32
    wo = jnp.stack([p[2].T for p in layers]).astype(wdt)     # (NL, D, D)
    bo = jnp.stack([p[3] for p in layers])                   # (NL, 1, D)
    g1 = jnp.stack([p[4] for p in layers])                   # (NL, 1, D)
    be1 = jnp.stack([p[5] for p in layers])                  # (NL, 1, D)
    w1 = jnp.stack([p[6].T for p in layers]).astype(wdt)     # (NL, D, dff)
    b1 = jnp.stack([p[7] for p in layers])                   # (NL, 1, dff)
    w2 = jnp.stack([p[8].T for p in layers]).astype(wdt)     # (NL, dff, D)
    b2 = jnp.stack([p[9] for p in layers])                   # (NL, 1, D)
    g2 = jnp.stack([p[10] for p in layers])                  # (NL, 1, D)
    be2 = jnp.stack([p[11] for p in layers])                 # (NL, 1, D)
    fcw = params["fc_w"].T.astype(wdt)                       # (D, V)
    fcb = params["fc_b"]                                     # (1, V) f32

    def layer_spec(*dims):
        # One layer's slice, streamed along the (inner, "arbitrary") grid axis.
        zeros = (0,) * len(dims)
        return pl.BlockSpec((1,) + dims, lambda b, l: (l,) + zeros)

    def const_spec(*dims):
        # Layer-invariant block (fetched once; index never changes).
        # NOTE: could be single-buffered via pipeline_mode=pl.Buffered(1) to
        # halve its VMEM footprint; negligible at these sizes.
        zeros = (0,) * len(dims)
        return pl.BlockSpec(dims, lambda b, l: zeros)

    kernel = functools.partial(
        transformer_kernel, num_heads=num_heads, compute_dtype=compute_dtype,
    )

    return pl.pallas_call(
        kernel,
        out_shape=jax.ShapeDtypeStruct((B, L, V), jnp.float32),
        grid=(NB, NL),
        in_specs=[
            pl.BlockSpec((batch_block, L, D), lambda b, l: (b, 0, 0)),   # x chunk
            layer_spec(D, 3 * D), layer_spec(1, 3 * D),                  # in_proj
            layer_spec(D, D), layer_spec(1, D),                          # out_proj
            layer_spec(1, D), layer_spec(1, D),                          # norm1
            layer_spec(D, dff), layer_spec(1, dff),                      # linear1
            layer_spec(dff, D), layer_spec(1, D),                        # linear2
            layer_spec(1, D), layer_spec(1, D),                          # norm2
            const_spec(D, V), const_spec(1, V),                          # final fc
        ],
        out_specs=pl.BlockSpec((batch_block, L, V), lambda b, l: (b, 0, 0)),
        scratch_shapes=[
            pltpu.VMEM((batch_block, L, D), jnp.float32),        # carried activation
            pltpu.VMEM((batch_block * L, D), jnp.float32),       # head reassembly
        ],
        compiler_params=pltpu.CompilerParams(
            dimension_semantics=("parallel", "arbitrary"),
            # Explicit scoped-VMEM budget: > default 16/32 MiB, < v7x 64 MiB/TC,
            # with headroom for the double-buffered per-layer weight blocks.
            vmem_limit_bytes=48 * 1024 * 1024,
        ),
    )(x, wqkv, bqkv, wo, bo, g1, be1, w1, b1, w2, b2, g2, be2, fcw, fcb)


# ----------------------------- param init ------------------------------------


def init_params(key, vocab_size, num_layers, num_heads, d_model,
                dim_feedforward=2048, max_len=64):
    V = vocab_size + 2
    keys = iter(jax.random.split(key, 8 + 8 * num_layers))

    def nrm(shape, scale=0.02):
        return (scale * jax.random.normal(next(keys), shape)).astype(jnp.float32)

    params = {
        "embedding": nrm((V, d_model)),
        "pos_embedding": nrm((max_len, d_model)),
        "fc_w": nrm((V, d_model)),
        "fc_b": jnp.zeros((1, V), jnp.float32),
        "layers": [],
    }
    for _ in range(num_layers):
        layer = (
            nrm((3 * d_model, d_model)),                 # in_proj_weight
            jnp.zeros((1, 3 * d_model), jnp.float32),    # in_proj_bias
            nrm((d_model, d_model)),                     # out_proj.weight
            jnp.zeros((1, d_model), jnp.float32),        # out_proj.bias
            jnp.ones((1, d_model), jnp.float32),         # norm1.weight
            jnp.zeros((1, d_model), jnp.float32),        # norm1.bias
            nrm((dim_feedforward, d_model)),             # linear1.weight
            jnp.zeros((1, dim_feedforward), jnp.float32),
            nrm((d_model, dim_feedforward)),             # linear2.weight
            jnp.zeros((1, d_model), jnp.float32),
            jnp.ones((1, d_model), jnp.float32),         # norm2.weight
            jnp.zeros((1, d_model), jnp.float32),        # norm2.bias
        )
        params["layers"].append(layer)
    return params


# ----------------------------- pure-JAX reference -----------------------------


def reference_forward(tokens, params, num_heads, compute_dtype=jnp.float32):
    """Matches the kernel's mixed-precision choices (bf16 matmul inputs,
    f32 accumulation / LN / softmax).  With compute_dtype=f32 it is the plain
    f32 torch-equivalent forward."""
    cdt = compute_dtype
    B, L = tokens.shape
    x = jnp.take(params["embedding"], tokens, axis=0) + params["pos_embedding"][:L][None]
    D = x.shape[-1]
    H = num_heads
    dh = D // H
    mask = jnp.where(jnp.tril(jnp.ones((L, L), dtype=bool)), 0.0, -jnp.inf)
    mask = mask.astype(jnp.float32)

    def mm(a, w_t):     # a (..., in) @ w_t (in, out), f32 accumulation
        return jnp.einsum('...i,io->...o', a.astype(cdt), w_t.astype(cdt),
                          preferred_element_type=jnp.float32)

    def ln(y, g, b, eps=1e-5):
        m = y.mean(-1, keepdims=True)
        v = ((y - m) ** 2).mean(-1, keepdims=True)
        return (y - m) * jax.lax.rsqrt(v + eps) * g + b

    for (wqkv, bqkv, wo, bo, g1, be1, w1, b1, w2, b2, g2, be2) in params["layers"]:
        qkv = mm(x, wqkv.T) + bqkv
        q, k, v = qkv[..., :D], qkv[..., D:2 * D], qkv[..., 2 * D:]
        q = q.reshape(B, L, H, dh).transpose(0, 2, 1, 3)
        k = k.reshape(B, L, H, dh).transpose(0, 2, 1, 3)
        v = v.reshape(B, L, H, dh).transpose(0, 2, 1, 3)
        s = jnp.einsum('bhqd,bhkd->bhqk', q.astype(cdt), k.astype(cdt),
                       preferred_element_type=jnp.float32)
        s = s / jnp.sqrt(jnp.float32(dh)) + mask
        p = jax.nn.softmax(s, axis=-1)
        a = jnp.einsum('bhqk,bhkd->bhqd', p.astype(cdt), v.astype(cdt),
                       preferred_element_type=jnp.float32)
        a = a.transpose(0, 2, 1, 3).reshape(B, L, D)
        a = mm(a, wo.T) + bo
        x = ln(x + a, g1, be1)
        h = jnp.maximum(mm(x, w1.T) + b1, 0.0)
        x = ln(x + mm(h, w2.T) + b2, g2, be2)
    return mm(x, params["fc_w"].T) + params["fc_b"]


# ----------------------------- main -------------------------------------------


if __name__ == "__main__":
    # Small, module-consistent config (vocab chosen so vocab_size + 2 = 128,
    # keeping the logits store lane-dense).
    vocab_size = 126
    num_layers = 2
    num_heads = 4
    d_model = 32
    dim_feedforward = 2048        # nn.TransformerEncoderLayer default
    B, L = 2, 8

    key = jax.random.PRNGKey(0)
    k_params, k_tok = jax.random.split(key)
    params = init_params(k_params, vocab_size, num_layers, num_heads, d_model,
                         dim_feedforward=dim_feedforward, max_len=64)
    tokens = jax.random.randint(k_tok, (B, L), 0, vocab_size + 2, dtype=jnp.int32)

    # bf16 matmul path (default); use compute_dtype=jnp.float32 for f32 parity.
    compute_dtype = jnp.bfloat16
    logits = transformer_forward(tokens, params, num_heads,
                                 compute_dtype=compute_dtype)
    logits = jax.block_until_ready(logits)

    ref = reference_forward(tokens, params, num_heads, compute_dtype=compute_dtype)
    assert logits.shape == (B, L, vocab_size + 2), logits.shape
    max_err = float(jnp.max(jnp.abs(logits - ref)))
    # Tolerance covers pl.reciprocal(approx=True) and MXU-vs-XLA accumulation order.
    assert jnp.allclose(logits, ref, atol=5e-3, rtol=5e-3), max_err

    print("KERNEL_OK")
</pallas_src>

<mosaic_0001>
module attributes {stable_mosaic.version = 11 : i64} {
  func.func @transformer_kernel(%arg0: i32, %arg1: i32, %arg2: memref<1x8x32xf32, #tpu.memory_space<vmem>>, %arg3: memref<1x32x96xbf16, #tpu.memory_space<vmem>>, %arg4: memref<1x1x96xf32, #tpu.memory_space<vmem>>, %arg5: memref<1x32x32xbf16, #tpu.memory_space<vmem>>, %arg6: memref<1x1x32xf32, #tpu.memory_space<vmem>>, %arg7: memref<1x1x32xf32, #tpu.memory_space<vmem>>, %arg8: memref<1x1x32xf32, #tpu.memory_space<vmem>>, %arg9: memref<1x32x2048xbf16, #tpu.memory_space<vmem>>, %arg10: memref<1x1x2048xf32, #tpu.memory_space<vmem>>, %arg11: memref<1x2048x32xbf16, #tpu.memory_space<vmem>>, %arg12: memref<1x1x32xf32, #tpu.memory_space<vmem>>, %arg13: memref<1x1x32xf32, #tpu.memory_space<vmem>>, %arg14: memref<1x1x32xf32, #tpu.memory_space<vmem>>, %arg15: memref<32x128xbf16, #tpu.memory_space<vmem>>, %arg16: memref<1x128xf32, #tpu.memory_space<vmem>>, %arg17: memref<1x8x128xf32, #tpu.memory_space<vmem>>, %arg18: memref<1x8x32xf32, #tpu.memory_space<vmem>>, %arg19: memref<8x32xf32, #tpu.memory_space<vmem>>) attributes {dimension_semantics = [#tpu.dimension_semantics<parallel>, #tpu.dimension_semantics<arbitrary>], iteration_bounds = array<i64: 2, 2>, scalar_prefetch = 0 : i64, scratch_operands = 2 : i64, tpu.core_type = #tpu.core_type<tc>, window_params = [{transform_indices = @transform_0, window_bounds = array<i64: 1, 8, 32>}, {transform_indices = @transform_1, window_bounds = array<i64: 1, 32, 96>}, {transform_indices = @transform_2, window_bounds = array<i64: 1, 1, 96>}, {transform_indices = @transform_3, window_bounds = array<i64: 1, 32, 32>}, {transform_indices = @transform_4, window_bounds = array<i64: 1, 1, 32>}, {transform_indices = @transform_5, window_bounds = array<i64: 1, 1, 32>}, {transform_indices = @transform_6, window_bounds = array<i64: 1, 1, 32>}, {transform_indices = @transform_7, window_bounds = array<i64: 1, 32, 2048>}, {transform_indices = @transform_8, window_bounds = array<i64: 1, 1, 2048>}, {transform_indices = @transform_9, window_bounds = array<i64: 1, 2048, 32>}, {transform_indices = @transform_10, window_bounds = array<i64: 1, 1, 32>}, {transform_indices = @transform_11, window_bounds = array<i64: 1, 1, 32>}, {transform_indices = @transform_12, window_bounds = array<i64: 1, 1, 32>}, {pipeline_mode = #tpu.pipeline_mode<synchronous>, transform_indices = @transform_13, window_bounds = array<i64: 32, 128>}, {pipeline_mode = #tpu.pipeline_mode<synchronous>, transform_indices = @transform_14, window_bounds = array<i64: 1, 128>}, {transform_indices = @transform_15, window_bounds = array<i64: 1, 8, 128>}]} {
    %c0_i32 = arith.constant 0 : i32
    %0 = arith.cmpi eq, %arg1, %c0_i32 : i32
    %1 = arith.extui %0 : i1 to i32
    %c0_i32_0 = arith.constant 0 : i32
    %2 = arith.cmpi ne, %1, %c0_i32_0 : i32
    scf.if %2 {
      %c0_71 = arith.constant 0 : index
      %c0_72 = arith.constant 0 : index
      %c0_73 = arith.constant 0 : index
      %166 = vector.load %arg2[%c0_71, %c0_72, %c0_73] : memref<1x8x32xf32, #tpu.memory_space<vmem>>, vector<1x8x32xf32>
      %c0_74 = arith.constant 0 : index
      %c0_75 = arith.constant 0 : index
      %c0_76 = arith.constant 0 : index
      %167 = vector.load %arg18[%c0_74, %c0_75, %c0_76] : memref<1x8x32xf32, #tpu.memory_space<vmem>>, vector<1x8x32xf32>
      tpu.vector_store %arg18[%c0_74, %c0_75, %c0_76], %166 {strides = array<i32>} : memref<1x8x32xf32, #tpu.memory_space<vmem>>, vector<1x8x32xf32>,
    } else {
    }
    %c0 = arith.constant 0 : index
    %c0_1 = arith.constant 0 : index
    %c0_2 = arith.constant 0 : index
    %3 = vector.load %arg18[%c0, %c0_1, %c0_2] : memref<1x8x32xf32, #tpu.memory_space<vmem>>, vector<1x8x32xf32>
    %4 = vector.shape_cast %3 : vector<1x8x32xf32> to vector<8x32xf32>
    %5 = tpu.iota {dimensions = array<i32: 0>} : vector<8x8xi32>
    %6 = tpu.iota {dimensions = array<i32: 1>} : vector<8x8xi32>
    %7 = arith.cmpi sge, %5, %6 : vector<8x8xi32>
    %cst = arith.constant 0.000000e+00 : f32
    %cst_3 = arith.constant -1.000000e+30 : f32
    %8 = vector.broadcast %cst : f32 to vector<8x8xf32>
    %9 = vector.broadcast %cst_3 : f32 to vector<8x8xf32>
    %10 = arith.select %7, %8, %9 : vector<8x8xi1>, vector<8x8xf32>
    %11 = arith.truncf %4 : vector<8x32xf32> to vector<8x32xbf16>
    %c0_4 = arith.constant 0 : index
    %c0_5 = arith.constant 0 : index
    %c0_6 = arith.constant 0 : index
    %12 = vector.load %arg3[%c0_4, %c0_5, %c0_6] : memref<1x32x96xbf16, #tpu.memory_space<vmem>>, vector<1x32x96xbf16>
    %13 = vector.shape_cast %12 : vector<1x32x96xbf16> to vector<32x96xbf16>
    %cst_7 = arith.constant dense<0.000000e+00> : vector<8x96xf32>
    %14 = tpu.matmul %11, %13, %cst_7 {dimension_numbers = #tpu.dot_dimension_numbers<[1], [0], [0], [1], [0, 0, 1, 1], [], []>} : vector<8x32xbf16>, vector<32x96xbf16>, vector<8x96xf32> -> vector<8x96xf32>
    %c0_8 = arith.constant 0 : index
    %c0_9 = arith.constant 0 : index
    %c0_10 = arith.constant 0 : index
    %15 = vector.load %arg4[%c0_8, %c0_9, %c0_10] : memref<1x1x96xf32, #tpu.memory_space<vmem>>, vector<1x1x96xf32>
    %16 = vector.shape_cast %15 : vector<1x1x96xf32> to vector<1x96xf32>
    %17 = vector.broadcast %16 : vector<1x96xf32> to vector<8x96xf32>
    %18 = arith.addf %14, %17 : vector<8x96xf32>
    %19 = vector.extract_strided_slice %18 {offsets = [0, 0], sizes = [8, 8], strides = [1, 1]} : vector<8x96xf32> to vector<8x8xf32>
    %20 = vector.extract_strided_slice %18 {offsets = [0, 8], sizes = [8, 8], strides = [1, 1]} : vector<8x96xf32> to vector<8x8xf32>
    %21 = vector.extract_strided_slice %18 {offsets = [0, 16], sizes = [8, 8], strides = [1, 1]} : vector<8x96xf32> to vector<8x8xf32>
    %22 = vector.extract_strided_slice %18 {offsets = [0, 24], sizes = [8, 8], strides = [1, 1]} : vector<8x96xf32> to vector<8x8xf32>
    %23 = vector.extract_strided_slice %18 {offsets = [0, 32], sizes = [8, 8], strides = [1, 1]} : vector<8x96xf32> to vector<8x8xf32>
    %24 = vector.extract_strided_slice %18 {offsets = [0, 40], sizes = [8, 8], strides = [1, 1]} : vector<8x96xf32> to vector<8x8xf32>
    %25 = vector.extract_strided_slice %18 {offsets = [0, 48], sizes = [8, 8], strides = [1, 1]} : vector<8x96xf32> to vector<8x8xf32>
    %26 = vector.extract_strided_slice %18 {offsets = [0, 56], sizes = [8, 8], strides = [1, 1]} : vector<8x96xf32> to vector<8x8xf32>
    %27 = vector.extract_strided_slice %18 {offsets = [0, 64], sizes = [8, 8], strides = [1, 1]} : vector<8x96xf32> to vector<8x8xf32>
    %28 = vector.extract_strided_slice %18 {offsets = [0, 72], sizes = [8, 8], strides = [1, 1]} : vector<8x96xf32> to vector<8x8xf32>
    %29 = vector.extract_strided_slice %18 {offsets = [0, 80], sizes = [8, 8], strides = [1, 1]} : vector<8x96xf32> to vector<8x8xf32>
    %30 = vector.extract_strided_slice %18 {offsets = [0, 88], sizes = [8, 8], strides = [1, 1]} : vector<8x96xf32> to vector<8x8xf32>
    %31 = vector.shape_cast %19 : vector<8x8xf32> to vector<1x8x8xf32>
    %32 = vector.shape_cast %20 : vector<8x8xf32> to vector<1x8x8xf32>
    %33 = vector.shape_cast %21 : vector<8x8xf32> to vector<1x8x8xf32>
    %34 = vector.shape_cast %22 : vector<8x8xf32> to vector<1x8x8xf32>
    %35 = vector.shape_cast %23 : vector<8x8xf32> to vector<1x8x8xf32>
    %36 = vector.shape_cast %24 : vector<8x8xf32> to vector<1x8x8xf32>
    %37 = vector.shape_cast %25 : vector<8x8xf32> to vector<1x8x8xf32>
    %38 = vector.shape_cast %26 : vector<8x8xf32> to vector<1x8x8xf32>
    %39 = vector.shape_cast %27 : vector<8x8xf32> to vector<1x8x8xf32>
    %40 = vector.shape_cast %28 : vector<8x8xf32> to vector<1x8x8xf32>
    %41 = vector.shape_cast %29 : vector<8x8xf32> to vector<1x8x8xf32>
    %42 = vector.shape_cast %30 : vector<8x8xf32> to vector<1x8x8xf32>
    %43 = tpu.concatenate %31, %32, %33, %34, %35, %36, %37, %38, %39, %40, %41, %42 in 0 : vector<1x8x8xf32>, vector<1x8x8xf32>, vector<1x8x8xf32>, vector<1x8x8xf32>, vector<1x8x8xf32>, vector<1x8x8xf32>, vector<1x8x8xf32>, vector<1x8x8xf32>, vector<1x8x8xf32>, vector<1x8x8xf32>, vector<1x8x8xf32>, vector<1x8x8xf32> -> vector<12x8x8xf32>
    %44 = vector.extract_strided_slice %43 {offsets = [0, 0, 0], sizes = [4, 8, 8], strides = [1, 1, 1]} : vector<12x8x8xf32> to vector<4x8x8xf32>
    %45 = vector.extract_strided_slice %43 {offsets = [4, 0, 0], sizes = [4, 8, 8], strides = [1, 1, 1]} : vector<12x8x8xf32> to vector<4x8x8xf32>
    %46 = vector.extract_strided_slice %43 {offsets = [8, 0, 0], sizes = [4, 8, 8], strides = [1, 1, 1]} : vector<12x8x8xf32> to vector<4x8x8xf32>
    %47 = arith.truncf %44 : vector<4x8x8xf32> to vector<4x8x8xbf16>
    %48 = arith.truncf %45 : vector<4x8x8xf32> to vector<4x8x8xbf16>
    "tpu.trace_start"() <{level = 10 : i32, message = "zqd,zkd->zqk"}> : () -> ()
    %cst_11 = arith.constant dense<0.000000e+00> : vector<4x8x8xf32>
    %49 = tpu.matmul %47, %48, %cst_11 {dimension_numbers = #tpu.dot_dimension_numbers<[2], [2], [1], [1], [0, 0, 0, 1, 1, 1], [0], [0]>} : vector<4x8x8xbf16>, vector<4x8x8xbf16>, vector<4x8x8xf32> -> vector<4x8x8xf32>
    "tpu.trace_stop"() : () -> ()
    %cst_12 = arith.constant 0.353553385 : f32
    %50 = vector.broadcast %cst_12 : f32 to vector<4x8x8xf32>
    %51 = arith.mulf %49, %50 : vector<4x8x8xf32>
    %52 = vector.shape_cast %10 : vector<8x8xf32> to vector<1x8x8xf32>
    %53 = vector.broadcast %52 : vector<1x8x8xf32> to vector<4x8x8xf32>
    %54 = arith.addf %51, %53 : vector<4x8x8xf32>
    %cst_13 = arith.constant dense<0xFF800000> : vector<4x8xf32>
    %55 = vector.multi_reduction <maximumf>, %54, %cst_13 [2] : vector<4x8x8xf32> to vector<4x8xf32>
    %56 = vector.shape_cast %55 : vector<4x8xf32> to vector<4x8x1xf32>
    %57 = vector.broadcast %56 : vector<4x8x1xf32> to vector<4x8x8xf32>
    %58 = arith.subf %54, %57 : vector<4x8x8xf32>
    %59 = math.exp %58 : vector<4x8x8xf32>
    %cst_14 = arith.constant dense<0.000000e+00> : vector<4x8xf32>
    %60 = vector.multi_reduction <add>, %59, %cst_14 [2] : vector<4x8x8xf32> to vector<4x8xf32>
    %61 = vector.shape_cast %60 : vector<4x8xf32> to vector<4x8x1xf32>
    %62 = tpu.reciprocal %61 {approx = true} : vector<4x8x1xf32> -> vector<4x8x1xf32>
    %63 = vector.broadcast %62 : vector<4x8x1xf32> to vector<4x8x8xf32>
    %64 = arith.mulf %59, %63 : vector<4x8x8xf32>
    %65 = arith.truncf %64 : vector<4x8x8xf32> to vector<4x8x8xbf16>
    %66 = arith.truncf %46 : vector<4x8x8xf32> to vector<4x8x8xbf16>
    "tpu.trace_start"() <{level = 10 : i32, message = "zqk,zkd->zqd"}> : () -> ()
    %cst_15 = arith.constant dense<0.000000e+00> : vector<4x8x8xf32>
    %67 = tpu.matmul %65, %66, %cst_15 {dimension_numbers = #tpu.dot_dimension_numbers<[2], [1], [1], [2], [0, 0, 0, 1, 1, 2], [0], [0]>} : vector<4x8x8xbf16>, vector<4x8x8xbf16>, vector<4x8x8xf32> -> vector<4x8x8xf32>
    "tpu.trace_stop"() : () -> ()
    %68 = vector.extract_strided_slice %67 {offsets = [0, 0, 0], sizes = [1, 8, 8], strides = [1, 1, 1]} : vector<4x8x8xf32> to vector<1x8x8xf32>
    %69 = vector.shape_cast %68 : vector<1x8x8xf32> to vector<8x8xf32>
    %c0_16 = arith.constant 0 : index
    %c0_17 = arith.constant 0 : index
    %70 = vector.load %arg19[%c0_16, %c0_17] : memref<8x32xf32, #tpu.memory_space<vmem>>, vector<8x8xf32>
    tpu.vector_store %arg19[%c0_16, %c0_17], %69 {strides = array<i32>} : memref<8x32xf32, #tpu.memory_space<vmem>>, vector<8x8xf32>,
    %71 = vector.extract_strided_slice %67 {offsets = [1, 0, 0], sizes = [1, 8, 8], strides = [1, 1, 1]} : vector<4x8x8xf32> to vector<1x8x8xf32>
    %72 = vector.shape_cast %71 : vector<1x8x8xf32> to vector<8x8xf32>
    %c0_18 = arith.constant 0 : index
    %c8 = arith.constant 8 : index
    %73 = vector.load %arg19[%c0_18, %c8] : memref<8x32xf32, #tpu.memory_space<vmem>>, vector<8x8xf32>
    tpu.vector_store %arg19[%c0_18, %c8], %72 {strides = array<i32>} : memref<8x32xf32, #tpu.memory_space<vmem>>, vector<8x8xf32>,
    %74 = vector.extract_strided_slice %67 {offsets = [2, 0, 0], sizes = [1, 8, 8], strides = [1, 1, 1]} : vector<4x8x8xf32> to vector<1x8x8xf32>
    %75 = vector.shape_cast %74 : vector<1x8x8xf32> to vector<8x8xf32>
    %c0_19 = arith.constant 0 : index
    %c16 = arith.constant 16 : index
    %76 = vector.load %arg19[%c0_19, %c16] : memref<8x32xf32, #tpu.memory_space<vmem>>, vector<8x8xf32>
    tpu.vector_store %arg19[%c0_19, %c16], %75 {strides = array<i32>} : memref<8x32xf32, #tpu.memory_space<vmem>>, vector<8x8xf32>,
    %77 = vector.extract_strided_slice %67 {offsets = [3, 0, 0], sizes = [1, 8, 8], strides = [1, 1, 1]} : vector<4x8x8xf32> to vector<1x8x8xf32>
    %78 = vector.shape_cast %77 : vector<1x8x8xf32> to vector<8x8xf32>
    %c0_20 = arith.constant 0 : index
    %c24 = arith.constant 24 : index
    %79 = vector.load %arg19[%c0_20, %c24] : memref<8x32xf32, #tpu.memory_space<vmem>>, vector<8x8xf32>
    tpu.vector_store %arg19[%c0_20, %c24], %78 {strides = array<i32>} : memref<8x32xf32, #tpu.memory_space<vmem>>, vector<8x8xf32>,
    %c0_21 = arith.constant 0 : index
    %c0_22 = arith.constant 0 : index
    %80 = vector.load %arg19[%c0_21, %c0_22] : memref<8x32xf32, #tpu.memory_space<vmem>>, vector<8x32xf32>
    %81 = arith.truncf %80 : vector<8x32xf32> to vector<8x32xbf16>
    %c0_23 = arith.constant 0 : index
    %c0_24 = arith.constant 0 : index
    %c0_25 = arith.constant 0 : index
    %82 = vector.load %arg5[%c0_23, %c0_24, %c0_25] : memref<1x32x32xbf16, #tpu.memory_space<vmem>>, vector<1x32x32xbf16>
    %83 = vector.shape_cast %82 : vector<1x32x32xbf16> to vector<32x32xbf16>
    %cst_26 = arith.constant dense<0.000000e+00> : vector<8x32xf32>
    %84 = tpu.matmul %81, %83, %cst_26 {dimension_numbers = #tpu.dot_dimension_numbers<[1], [0], [0], [1], [0, 0, 1, 1], [], []>} : vector<8x32xbf16>, vector<32x32xbf16>, vector<8x32xf32> -> vector<8x32xf32>
    %c0_27 = arith.constant 0 : index
    %c0_28 = arith.constant 0 : index
    %c0_29 = arith.constant 0 : index
    %85 = vector.load %arg6[%c0_27, %c0_28, %c0_29] : memref<1x1x32xf32, #tpu.memory_space<vmem>>, vector<1x1x32xf32>
    %86 = vector.shape_cast %85 : vector<1x1x32xf32> to vector<1x32xf32>
    %87 = vector.broadcast %86 : vector<1x32xf32> to vector<8x32xf32>
    %88 = arith.addf %84, %87 : vector<8x32xf32>
    %89 = arith.addf %4, %88 : vector<8x32xf32>
    %c0_30 = arith.constant 0 : index
    %c0_31 = arith.constant 0 : index
    %c0_32 = arith.constant 0 : index
    %90 = vector.load %arg7[%c0_30, %c0_31, %c0_32] : memref<1x1x32xf32, #tpu.memory_space<vmem>>, vector<1x1x32xf32>
    %91 = vector.shape_cast %90 : vector<1x1x32xf32> to vector<1x32xf32>
    %c0_33 = arith.constant 0 : index
    %c0_34 = arith.constant 0 : index
    %c0_35 = arith.constant 0 : index
    %92 = vector.load %arg8[%c0_33, %c0_34, %c0_35] : memref<1x1x32xf32, #tpu.memory_space<vmem>>, vector<1x1x32xf32>
    %93 = vector.shape_cast %92 : vector<1x1x32xf32> to vector<1x32xf32>
    %cst_36 = arith.constant dense<0.000000e+00> : vector<8xf32>
    %94 = vector.multi_reduction <add>, %89, %cst_36 [1] : vector<8x32xf32> to vector<8xf32>
    %95 = vector.shape_cast %94 : vector<8xf32> to vector<8x1xf32>
    %cst_37 = arith.constant 3.200000e+01 : f32
    %96 = vector.broadcast %cst_37 : f32 to vector<8x1xf32>
    %97 = arith.divf %95, %96 : vector<8x1xf32>
    %98 = vector.broadcast %97 : vector<8x1xf32> to vector<8x32xf32>
    %99 = arith.subf %89, %98 : vector<8x32xf32>
    %100 = arith.mulf %99, %99 : vector<8x32xf32>
    %cst_38 = arith.constant dense<0.000000e+00> : vector<8xf32>
    %101 = vector.multi_reduction <add>, %100, %cst_38 [1] : vector<8x32xf32> to vector<8xf32>
    %102 = vector.shape_cast %101 : vector<8xf32> to vector<8x1xf32>
    %cst_39 = arith.constant 3.200000e+01 : f32
    %103 = vector.broadcast %cst_39 : f32 to vector<8x1xf32>
    %104 = arith.divf %102, %103 : vector<8x1xf32>
    %105 = vector.broadcast %97 : vector<8x1xf32> to vector<8x32xf32>
    %106 = arith.subf %89, %105 : vector<8x32xf32>
    %cst_40 = arith.constant 9.99999974E-6 : f32
    %107 = vector.broadcast %cst_40 : f32 to vector<8x1xf32>
    %108 = arith.addf %104, %107 : vector<8x1xf32>
    %109 = math.rsqrt %108 : vector<8x1xf32>
    %110 = vector.broadcast %109 : vector<8x1xf32> to vector<8x32xf32>
    %111 = arith.mulf %106, %110 : vector<8x32xf32>
    %112 = vector.broadcast %91 : vector<1x32xf32> to vector<8x32xf32>
    %113 = arith.mulf %111, %112 : vector<8x32xf32>
    %114 = vector.broadcast %93 : vector<1x32xf32> to vector<8x32xf32>
    %115 = arith.addf %113, %114 : vector<8x32xf32>
    %116 = arith.truncf %115 : vector<8x32xf32> to vector<8x32xbf16>
    %c0_41 = arith.constant 0 : index
    %c0_42 = arith.constant 0 : index
    %c0_43 = arith.constant 0 : index
    %117 = vector.load %arg9[%c0_41, %c0_42, %c0_43] : memref<1x32x2048xbf16, #tpu.memory_space<vmem>>, vector<1x32x2048xbf16>
    %118 = vector.shape_cast %117 : vector<1x32x2048xbf16> to vector<32x2048xbf16>
    %cst_44 = arith.constant dense<0.000000e+00> : vector<8x2048xf32>
    %119 = tpu.matmul %116, %118, %cst_44 {dimension_numbers = #tpu.dot_dimension_numbers<[1], [0], [0], [1], [0, 0, 1, 1], [], []>} : vector<8x32xbf16>, vector<32x2048xbf16>, vector<8x2048xf32> -> vector<8x2048xf32>
    %c0_45 = arith.constant 0 : index
    %c0_46 = arith.constant 0 : index
    %c0_47 = arith.constant 0 : index
    %120 = vector.load %arg10[%c0_45, %c0_46, %c0_47] : memref<1x1x2048xf32, #tpu.memory_space<vmem>>, vector<1x1x2048xf32>
    %121 = vector.shape_cast %120 : vector<1x1x2048xf32> to vector<1x2048xf32>
    %122 = vector.broadcast %121 : vector<1x2048xf32> to vector<8x2048xf32>
    %123 = arith.addf %119, %122 : vector<8x2048xf32>
    %cst_48 = arith.constant 0.000000e+00 : f32
    %124 = vector.broadcast %cst_48 : f32 to vector<8x2048xf32>
    %125 = arith.maximumf %123, %124 : vector<8x2048xf32>
    %126 = arith.truncf %125 : vector<8x2048xf32> to vector<8x2048xbf16>
    %c0_49 = arith.constant 0 : index
    %c0_50 = arith.constant 0 : index
    %c0_51 = arith.constant 0 : index
    %127 = vector.load %arg11[%c0_49, %c0_50, %c0_51] : memref<1x2048x32xbf16, #tpu.memory_space<vmem>>, vector<1x2048x32xbf16>
    %128 = vector.shape_cast %127 : vector<1x2048x32xbf16> to vector<2048x32xbf16>
    %cst_52 = arith.constant dense<0.000000e+00> : vector<8x32xf32>
    %129 = tpu.matmul %126, %128, %cst_52 {dimension_numbers = #tpu.dot_dimension_numbers<[1], [0], [0], [1], [0, 0, 1, 1], [], []>} : vector<8x2048xbf16>, vector<2048x32xbf16>, vector<8x32xf32> -> vector<8x32xf32>
    %c0_53 = arith.constant 0 : index
    %c0_54 = arith.constant 0 : index
    %c0_55 = arith.constant 0 : index
    %130 = vector.load %arg12[%c0_53, %c0_54, %c0_55] : memref<1x1x32xf32, #tpu.memory_space<vmem>>, vector<1x1x32xf32>
    %131 = vector.shape_cast %130 : vector<1x1x32xf32> to vector<1x32xf32>
    %132 = vector.broadcast %131 : vector<1x32xf32> to vector<8x32xf32>
    %133 = arith.addf %129, %132 : vector<8x32xf32>
    %134 = arith.addf %115, %133 : vector<8x32xf32>
    %c0_56 = arith.constant 0 : index
    %c0_57 = arith.constant 0 : index
    %c0_58 = arith.constant 0 : index
    %135 = vector.load %arg13[%c0_56, %c0_57, %c0_58] : memref<1x1x32xf32, #tpu.memory_space<vmem>>, vector<1x1x32xf32>
    %136 = vector.shape_cast %135 : vector<1x1x32xf32> to vector<1x32xf32>
    %c0_59 = arith.constant 0 : index
    %c0_60 = arith.constant 0 : index
    %c0_61 = arith.constant 0 : index
    %137 = vector.load %arg14[%c0_59, %c0_60, %c0_61] : memref<1x1x32xf32, #tpu.memory_space<vmem>>, vector<1x1x32xf32>
    %138 = vector.shape_cast %137 : vector<1x1x32xf32> to vector<1x32xf32>
    %cst_62 = arith.constant dense<0.000000e+00> : vector<8xf32>
    %139 = vector.multi_reduction <add>, %134, %cst_62 [1] : vector<8x32xf32> to vector<8xf32>
    %140 = vector.shape_cast %139 : vector<8xf32> to vector<8x1xf32>
    %cst_63 = arith.constant 3.200000e+01 : f32
    %141 = vector.broadcast %cst_63 : f32 to vector<8x1xf32>
    %142 = arith.divf %140, %141 : vector<8x1xf32>
    %143 = vector.broadcast %142 : vector<8x1xf32> to vector<8x32xf32>
    %144 = arith.subf %134, %143 : vector<8x32xf32>
    %145 = arith.mulf %144, %144 : vector<8x32xf32>
    %cst_64 = arith.constant dense<0.000000e+00> : vector<8xf32>
    %146 = vector.multi_reduction <add>, %145, %cst_64 [1] : vector<8x32xf32> to vector<8xf32>
    %147 = vector.shape_cast %146 : vector<8xf32> to vector<8x1xf32>
    %cst_65 = arith.constant 3.200000e+01 : f32
    %148 = vector.broadcast %cst_65 : f32 to vector<8x1xf32>
    %149 = arith.divf %147, %148 : vector<8x1xf32>
    %150 = vector.broadcast %142 : vector<8x1xf32> to vector<8x32xf32>
    %151 = arith.subf %134, %150 : vector<8x32xf32>
    %cst_66 = arith.constant 9.99999974E-6 : f32
    %152 = vector.broadcast %cst_66 : f32 to vector<8x1xf32>
    %153 = arith.addf %149, %152 : vector<8x1xf32>
    %154 = math.rsqrt %153 : vector<8x1xf32>
    %155 = vector.broadcast %154 : vector<8x1xf32> to vector<8x32xf32>
    %156 = arith.mulf %151, %155 : vector<8x32xf32>
    %157 = vector.broadcast %136 : vector<1x32xf32> to vector<8x32xf32>
    %158 = arith.mulf %156, %157 : vector<8x32xf32>
    %159 = vector.broadcast %138 : vector<1x32xf32> to vector<8x32xf32>
    %160 = arith.addf %158, %159 : vector<8x32xf32>
    %161 = vector.shape_cast %160 : vector<8x32xf32> to vector<1x8x32xf32>
    %c0_67 = arith.constant 0 : index
    %c0_68 = arith.constant 0 : index
    %c0_69 = arith.constant 0 : index
    %162 = vector.load %arg18[%c0_67, %c0_68, %c0_69] : memref<1x8x32xf32, #tpu.memory_space<vmem>>, vector<1x8x32xf32>
    tpu.vector_store %arg18[%c0_67, %c0_68, %c0_69], %161 {strides = array<i32>} : memref<1x8x32xf32, #tpu.memory_space<vmem>>, vector<1x8x32xf32>,
    %c1_i32 = arith.constant 1 : i32
    %163 = arith.cmpi eq, %arg1, %c1_i32 : i32
    %164 = arith.extui %163 : i1 to i32
    %c0_i32_70 = arith.constant 0 : i32
    %165 = arith.cmpi ne, %164, %c0_i32_70 : i32
    scf.if %165 {
      %166 = arith.truncf %160 : vector<8x32xf32> to vector<8x32xbf16>
      %c0_71 = arith.constant 0 : index
      %c0_72 = arith.constant 0 : index
      %167 = vector.load %arg15[%c0_71, %c0_72] : memref<32x128xbf16, #tpu.memory_space<vmem>>, vector<32x128xbf16>
      %cst_73 = arith.constant dense<0.000000e+00> : vector<8x128xf32>
      %168 = tpu.matmul %166, %167, %cst_73 {dimension_numbers = #tpu.dot_dimension_numbers<[1], [0], [0], [1], [0, 0, 1, 1], [], []>} : vector<8x32xbf16>, vector<32x128xbf16>, vector<8x128xf32> -> vector<8x128xf32>
      %c0_74 = arith.constant 0 : index
      %c0_75 = arith.constant 0 : index
      %169 = vector.load %arg16[%c0_74, %c0_75] : memref<1x128xf32, #tpu.memory_space<vmem>>, vector<1x128xf32>
      %170 = vector.broadcast %169 : vector<1x128xf32> to vector<8x128xf32>
      %171 = arith.addf %168, %170 : vector<8x128xf32>
      %172 = vector.shape_cast %171 : vector<8x128xf32> to vector<1x8x128xf32>
      %c0_76 = arith.constant 0 : index
      %c0_77 = arith.constant 0 : index
      %c0_78 = arith.constant 0 : index
      %173 = vector.load %arg17[%c0_76, %c0_77, %c0_78] : memref<1x8x128xf32, #tpu.memory_space<vmem>>, vector<1x8x128xf32>
      tpu.vector_store %arg17[%c0_76, %c0_77, %c0_78], %172 {strides = array<i32>} : memref<1x8x128xf32, #tpu.memory_space<vmem>>, vector<1x8x128xf32>,
    } else {
    }
    return
  }
  func.func @transform_0(%arg0: i32, %arg1: i32) -> (i32, i32, i32) {
    %c0_i32 = arith.constant 0 : i32
    %c0_i32_0 = arith.constant 0 : i32
    %c0_i32_1 = arith.constant 0 : i32
    return %arg0, %c0_i32, %c0_i32_0 : i32, i32, i32
  }
  func.func @transform_1(%arg0: i32, %arg1: i32) -> (i32, i32, i32) {
    %c0_i32 = arith.constant 0 : i32
    %c0_i32_0 = arith.constant 0 : i32
    %c0_i32_1 = arith.constant 0 : i32
    return %arg1, %c0_i32, %c0_i32_0 : i32, i32, i32
  }
  func.func @transform_2(%arg0: i32, %arg1: i32) -> (i32, i32, i32) {
    %c0_i32 = arith.constant 0 : i32
    %c0_i32_0 = arith.constant 0 : i32
    %c0_i32_1 = arith.constant 0 : i32
    return %arg1, %c0_i32, %c0_i32_0 : i32, i32, i32
  }
  func.func @transform_3(%arg0: i32, %arg1: i32) -> (i32, i32, i32) {
    %c0_i32 = arith.constant 0 : i32
    %c0_i32_0 = arith.constant 0 : i32
    %c0_i32_1 = arith.constant 0 : i32
    return %arg1, %c0_i32, %c0_i32_0 : i32, i32, i32
  }
  func.func @transform_4(%arg0: i32, %arg1: i32) -> (i32, i32, i32) {
    %c0_i32 = arith.constant 0 : i32
    %c0_i32_0 = arith.constant 0 : i32
    %c0_i32_1 = arith.constant 0 : i32
    return %arg1, %c0_i32, %c0_i32_0 : i32, i32, i32
  }
  func.func @transform_5(%arg0: i32, %arg1: i32) -> (i32, i32, i32) {
    %c0_i32 = arith.constant 0 : i32
    %c0_i32_0 = arith.constant 0 : i32
    %c0_i32_1 = arith.constant 0 : i32
    return %arg1, %c0_i32, %c0_i32_0 : i32, i32, i32
  }
  func.func @transform_6(%arg0: i32, %arg1: i32) -> (i32, i32, i32) {
    %c0_i32 = arith.constant 0 : i32
    %c0_i32_0 = arith.constant 0 : i32
    %c0_i32_1 = arith.constant 0 : i32
    return %arg1, %c0_i32, %c0_i32_0 : i32, i32, i32
  }
  func.func @transform_7(%arg0: i32, %arg1: i32) -> (i32, i32, i32) {
    %c0_i32 = arith.constant 0 : i32
    %c0_i32_0 = arith.constant 0 : i32
    %c0_i32_1 = arith.constant 0 : i32
    return %arg1, %c0_i32, %c0_i32_0 : i32, i32, i32
  }
  func.func @transform_8(%arg0: i32, %arg1: i32) -> (i32, i32, i32) {
    %c0_i32 = arith.constant 0 : i32
    %c0_i32_0 = arith.constant 0 : i32
    %c0_i32_1 = arith.constant 0 : i32
    return %arg1, %c0_i32, %c0_i32_0 : i32, i32, i32
  }
  func.func @transform_9(%arg0: i32, %arg1: i32) -> (i32, i32, i32) {
    %c0_i32 = arith.constant 0 : i32
    %c0_i32_0 = arith.constant 0 : i32
    %c0_i32_1 = arith.constant 0 : i32
    return %arg1, %c0_i32, %c0_i32_0 : i32, i32, i32
  }
  func.func @transform_10(%arg0: i32, %arg1: i32) -> (i32, i32, i32) {
    %c0_i32 = arith.constant 0 : i32
    %c0_i32_0 = arith.constant 0 : i32
    %c0_i32_1 = arith.constant 0 : i32
    return %arg1, %c0_i32, %c0_i32_0 : i32, i32, i32
  }
  func.func @transform_11(%arg0: i32, %arg1: i32) -> (i32, i32, i32) {
    %c0_i32 = arith.constant 0 : i32
    %c0_i32_0 = arith.constant 0 : i32
    %c0_i32_1 = arith.constant 0 : i32
    return %arg1, %c0_i32, %c0_i32_0 : i32, i32, i32
  }
  func.func @transform_12(%arg0: i32, %arg1: i32) -> (i32, i32, i32) {
    %c0_i32 = arith.constant 0 : i32
    %c0_i32_0 = arith.constant 0 : i32
    %c0_i32_1 = arith.constant 0 : i32
    return %arg1, %c0_i32, %c0_i32_0 : i32, i32, i32
  }
  func.func @transform_13(%arg0: i32, %arg1: i32) -> (i32, i32) {
    %c0_i32 = arith.constant 0 : i32
    %c0_i32_0 = arith.constant 0 : i32
    %c0_i32_1 = arith.constant 0 : i32
    return %c0_i32, %c0_i32_0 : i32, i32
  }
  func.func @transform_14(%arg0: i32, %arg1: i32) -> (i32, i32) {
    %c0_i32 = arith.constant 0 : i32
    %c0_i32_0 = arith.constant 0 : i32
    %c0_i32_1 = arith.constant 0 : i32
    return %c0_i32, %c0_i32_0 : i32, i32
  }
  func.func @transform_15(%arg0: i32, %arg1: i32) -> (i32, i32, i32) {
    %c0_i32 = arith.constant 0 : i32
    %c0_i32_0 = arith.constant 0 : i32
    %c0_i32_1 = arith.constant 0 : i32
    return %arg0, %c0_i32, %c0_i32_0 : i32, i32, i32
  }
}

</mosaic_0001>

<llo_original>
// kernel: tpu_custom_call.1
$region0: #{tpu_custom_call.1}
  #allocation0 [shape = 'u32[]', space=smem, size = 0x4, offset = 0x4, fixed_abs, tag = 'smem constant byte address 0x4 - core index']
  #allocation1 [shape = 'u32[144,128]{1,0:T(1,128)}', space=vmem, size = 0x12000, scoped, tag = 'internal scratch']
  #allocation2 [shape = 'f32[1,8,32]{2,1,0:T(8,128)}', space=vmem, size = 0x1000, scoped, tag = 'scratch operand']
  #allocation3 [shape = 'f32[8,32]{1,0:T(8,128)}', space=vmem, size = 0x1000, scoped, tag = 'scratch operand']
  %s0 = inlined_call_operand.vmem [shape: f32[2,8,32], index: 0, kind: input, shape index: {}]
  %s1 = inlined_call_operand.vmem [shape: bf16[2,32,96], index: 1, kind: input, shape index: {}]
  %s2 = inlined_call_operand.vmem [shape: f32[2,1,96], index: 2, kind: input, shape index: {}]
  %s3 = inlined_call_operand.vmem [shape: bf16[2,32,32], index: 3, kind: input, shape index: {}]
  %s4 = inlined_call_operand.vmem [shape: f32[2,1,32], index: 4, kind: input, shape index: {}]
  %s5 = inlined_call_operand.vmem [shape: f32[2,1,32], index: 5, kind: input, shape index: {}]
  %s6 = inlined_call_operand.vmem [shape: f32[2,1,32], index: 6, kind: input, shape index: {}]
  %s7 = inlined_call_operand.vmem [shape: bf16[2,32,2048], index: 7, kind: input, shape index: {}]
  %s8 = inlined_call_operand.vmem [shape: f32[2,1,2048], index: 8, kind: input, shape index: {}]
  %s9 = inlined_call_operand.vmem [shape: bf16[2,2048,32], index: 9, kind: input, shape index: {}]
  %s10 = inlined_call_operand.vmem [shape: f32[2,1,32], index: 10, kind: input, shape index: {}]
  %s11 = inlined_call_operand.vmem [shape: f32[2,1,32], index: 11, kind: input, shape index: {}]
  %s12 = inlined_call_operand.vmem [shape: f32[2,1,32], index: 12, kind: input, shape index: {}]
  %s13 = inlined_call_operand.vmem [shape: bf16[32,128], index: 13, kind: input, shape index: {}]
  %s14 = inlined_call_operand.vmem [shape: f32[1,128], index: 14, kind: input, shape index: {}]
  %s15 = inlined_call_operand.hbm [shape: f32[2,8,128], index: 15, kind: output, shape index: {}]
  %s16 = sld [smem:[#allocation0]]
  $region101: #{tpu_custom_call.1} parent=0
    _
  %s18 = ssub.s32 1, %s16
  %s19 = scalar_select 0, %s18, %s16
  $region1: #{tpu_custom_call.1} parent=0
    #allocation4 [shape = 'u8[8192]{0}', space=vmem, size = 0x2000, scoped, tag = 'output window, operand 0']
    #allocation5 [shape = 's32[2]{0}', space=sflag, size = 0x8, scoped, tag = 'scoped memory for tpu_custom_call.1']
    %20 = vsyncpa [#allocation5], 0
    %s21 = scalar_lea.sflag [#allocation5], 1
    %22 = vsyncpa %s21, 0
    loop: start=0, step=1, limit=6
    $region2: #{tpu_custom_call.1} parent=1 // loop_pre_header
      _
    $region3: #{tpu_custom_call.1} parent=1 // loop_header
      %s24 = sphi 0, %s28
      %p25 = scmp.ge.s32.totalorder %s24, 6
      %s31 = sphi 0, %s43
      %s32 = sphi 0, %s39
      %s33 = sphi 0, %s31
      %s34 = sphi 0, %s32
      %s35 = sphi 0, %s33
      %s36 = sphi 0, %s34
      %s46 = sphi 0, %s48
      %s49 = sphi 0, %s46
      %s50 = sphi 0, %s49
      %s66 = sphi 0, %s50
      %s72 = sphi 0, %s74
      %s75 = sphi 0, %s72
      %s76 = sphi 0, %s75
      %s92 = sphi 0, %s76
      %s98 = sphi 0, %s100
      %s101 = sphi 0, %s98
      %s102 = sphi 0, %s101
      %s118 = sphi 0, %s102
      %s124 = sphi 0, %s126
      %s127 = sphi 0, %s124
      %s128 = sphi 0, %s127
      %s144 = sphi 0, %s128
      %s150 = sphi 0, %s152
      %s153 = sphi 0, %s150
      %s154 = sphi 0, %s153
      %s170 = sphi 0, %s154
      %s176 = sphi 0, %s178
      %s179 = sphi 0, %s176
      %s180 = sphi 0, %s179
      %s196 = sphi 0, %s180
      %s202 = sphi 0, %s204
      %s205 = sphi 0, %s202
      %s206 = sphi 0, %s205
      %s222 = sphi 0, %s206
      %s228 = sphi 0, %s230
      %s231 = sphi 0, %s228
      %s232 = sphi 0, %s231
      %s248 = sphi 0, %s232
      %s254 = sphi 0, %s256
      %s257 = sphi 0, %s254
      %s258 = sphi 0, %s257
      %s274 = sphi 0, %s258
      %s280 = sphi 0, %s282
      %s283 = sphi 0, %s280
      %s284 = sphi 0, %s283
      %s300 = sphi 0, %s284
      %s306 = sphi 0, %s308
      %s309 = sphi 0, %s306
      %s310 = sphi 0, %s309
      %s326 = sphi 0, %s310
      %s332 = sphi 0, %s334
      %s335 = sphi 0, %s332
      %s336 = sphi 0, %s335
      %s352 = sphi 0, %s336
      %s358 = sphi 0, %s360
      %s361 = sphi 0, %s358
      %s362 = sphi 0, %s361
      %s378 = sphi 0, %s362
      %s382 = sphi 0, %s382
      %s384 = sphi 0, %s382
      %s385 = sphi 0, %s384
      %s399 = sphi 0, %s385
      %s403 = sphi 0, %s403
      %s405 = sphi 0, %s403
      %s406 = sphi 0, %s405
      %s420 = sphi 0, %s406
      %s426 = sphi 0, %s428
      %s429 = sphi 0, %s426
      %s430 = sphi 0, %s429
      %s446 = sphi 0, %s430
    $region4: #{tpu_custom_call.1} parent=1 // loop_header_branch
      %27 = sbr.rel (%p25) target = $region8
    $region5: #{tpu_custom_call.1} parent=1 // loop_body
      %s29 = ssub.s32 %s24, 1
      %s30 = ssub.s32 %s24, 2
      %s37 = sadd.s32 1, %s32
      %p38 = scmp.ge.s32.totalorder %s37, 2
      %s39 = scalar_select %p38, 0, %s37
      %s40 = sadd.s32 1, %s31
      %s41 = scalar_select %p38, %s40, %s31
      %p42 = scmp.ge.s32.totalorder %s41, 2
      %s43 = scalar_select %p42, 0, %s41
      %s44 = ssub.s32 %s31, %s43
      %p45 = scmp.eq.s32.totalorder %s44, 0
      %s47 = sadd.s32 %s46, 1
      %s48 = scalar_select %p45, %s46, %s47
      %p51 = pneg %p45
      %p52 = scmp.eq.s32.totalorder %s24, 3
      %p53 = por %p51, %p52
      %p54 = scmp.ne.s32.totalorder %s46, %s49
      %p55 = scmp.eq.s32.totalorder %s24, 0
      %p56 = por %p54, %p55
      %p57 = scmp.ne.s32.totalorder %s46, %s49
      %p58 = scmp.eq.s32.totalorder %s29, 3
      %p59 = por %p57, %p58
      %p60 = scmp.ne.s32.totalorder %s49, %s50
      %p61 = scmp.eq.s32.totalorder %s29, 0
      %p62 = por %p60, %p61
      %p63 = scmp.ne.s32.totalorder %s49, %s50
      %p64 = scmp.eq.s32.totalorder %s30, 3
      %p65 = por %p63, %p64
      %p67 = scmp.ne.s32.totalorder %s50, %s66
      %p68 = scmp.eq.s32.totalorder %s30, 0
      %p69 = por %p67, %p68
      %s70 = ssub.s32 %s32, %s39
      %p71 = scmp.eq.s32.totalorder %s70, 0
      %s73 = sadd.s32 %s72, 1
      %s74 = scalar_select %p71, %s72, %s73
      %p77 = pneg %p71
      %p78 = scmp.eq.s32.totalorder %s24, 3
      %p79 = por %p77, %p78
      %p80 = scmp.ne.s32.totalorder %s72, %s75
      %p81 = scmp.eq.s32.totalorder %s24, 0
      %p82 = por %p80, %p81
      %p83 = scmp.ne.s32.totalorder %s72, %s75
      %p84 = scmp.eq.s32.totalorder %s29, 3
      %p85 = por %p83, %p84
      %p86 = scmp.ne.s32.totalorder %s75, %s76
      %p87 = scmp.eq.s32.totalorder %s29, 0
      %p88 = por %p86, %p87
      %p89 = scmp.ne.s32.totalorder %s75, %s76
      %p90 = scmp.eq.s32.totalorder %s30, 3
      %p91 = por %p89, %p90
      %p93 = scmp.ne.s32.totalorder %s76, %s92
      %p94 = scmp.eq.s32.totalorder %s30, 0
      %p95 = por %p93, %p94
      %s96 = ssub.s32 %s32, %s39
      %p97 = scmp.eq.s32.totalorder %s96, 0
      %s99 = sadd.s32 %s98, 1
      %s100 = scalar_select %p97, %s98, %s99
      %p103 = pneg %p97
      %p104 = scmp.eq.s32.totalorder %s24, 3
      %p105 = por %p103, %p104
      %p106 = scmp.ne.s32.totalorder %s98, %s101
      %p107 = scmp.eq.s32.totalorder %s24, 0
      %p108 = por %p106, %p107
      %p109 = scmp.ne.s32.totalorder %s98, %s101
      %p110 = scmp.eq.s32.totalorder %s29, 3
      %p111 = por %p109, %p110
      %p112 = scmp.ne.s32.totalorder %s101, %s102
      %p113 = scmp.eq.s32.totalorder %s29, 0
      %p114 = por %p112, %p113
      %p115 = scmp.ne.s32.totalorder %s101, %s102
      %p116 = scmp.eq.s32.totalorder %s30, 3
      %p117 = por %p115, %p116
      %p119 = scmp.ne.s32.totalorder %s102, %s118
      %p120 = scmp.eq.s32.totalorder %s30, 0
      %p121 = por %p119, %p120
      %s122 = ssub.s32 %s32, %s39
      %p123 = scmp.eq.s32.totalorder %s122, 0
      %s125 = sadd.s32 %s124, 1
      %s126 = scalar_select %p123, %s124, %s125
      %p129 = pneg %p123
      %p130 = scmp.eq.s32.totalorder %s24, 3
      %p131 = por %p129, %p130
      %p132 = scmp.ne.s32.totalorder %s124, %s127
      %p133 = scmp.eq.s32.totalorder %s24, 0
      %p134 = por %p132, %p133
      %p135 = scmp.ne.s32.totalorder %s124, %s127
      %p136 = scmp.eq.s32.totalorder %s29, 3
      %p137 = por %p135, %p136
      %p138 = scmp.ne.s32.totalorder %s127, %s128
      %p139 = scmp.eq.s32.totalorder %s29, 0
      %p140 = por %p138, %p139
      %p141 = scmp.ne.s32.totalorder %s127, %s128
      %p142 = scmp.eq.s32.totalorder %s30, 3
      %p143 = por %p141, %p142
      %p145 = scmp.ne.s32.totalorder %s128, %s144
      %p146 = scmp.eq.s32.totalorder %s30, 0
      %p147 = por %p145, %p146
      %s148 = ssub.s32 %s32, %s39
      %p149 = scmp.eq.s32.totalorder %s148, 0
      %s151 = sadd.s32 %s150, 1
      %s152 = scalar_select %p149, %s150, %s151
      %p155 = pneg %p149
      %p156 = scmp.eq.s32.totalorder %s24, 3
      %p157 = por %p155, %p156
      %p158 = scmp.ne.s32.totalorder %s150, %s153
      %p159 = scmp.eq.s32.totalorder %s24, 0
      %p160 = por %p158, %p159
      %p161 = scmp.ne.s32.totalorder %s150, %s153
      %p162 = scmp.eq.s32.totalorder %s29, 3
      %p163 = por %p161, %p162
      %p164 = scmp.ne.s32.totalorder %s153, %s154
      %p165 = scmp.eq.s32.totalorder %s29, 0
      %p166 = por %p164, %p165
      %p167 = scmp.ne.s32.totalorder %s153, %s154
      %p168 = scmp.eq.s32.totalorder %s30, 3
      %p169 = por %p167, %p168
      %p171 = scmp.ne.s32.totalorder %s154, %s170
      %p172 = scmp.eq.s32.totalorder %s30, 0
      %p173 = por %p171, %p172
      %s174 = ssub.s32 %s32, %s39
      %p175 = scmp.eq.s32.totalorder %s174, 0
      %s177 = sadd.s32 %s176, 1
      %s178 = scalar_select %p175, %s176, %s177
      %p181 = pneg %p175
      %p182 = scmp.eq.s32.totalorder %s24, 3
      %p183 = por %p181, %p182
      %p184 = scmp.ne.s32.totalorder %s176, %s179
      %p185 = scmp.eq.s32.totalorder %s24, 0
      %p186 = por %p184, %p185
      %p187 = scmp.ne.s32.totalorder %s176, %s179
      %p188 = scmp.eq.s32.totalorder %s29, 3
      %p189 = por %p187, %p188
      %p190 = scmp.ne.s32.totalorder %s179, %s180
      %p191 = scmp.eq.s32.totalorder %s29, 0
      %p192 = por %p190, %p191
      %p193 = scmp.ne.s32.totalorder %s179, %s180
      %p194 = scmp.eq.s32.totalorder %s30, 3
      %p195 = por %p193, %p194
      %p197 = scmp.ne.s32.totalorder %s180, %s196
      %p198 = scmp.eq.s32.totalorder %s30, 0
      %p199 = por %p197, %p198
      %s200 = ssub.s32 %s32, %s39
      %p201 = scmp.eq.s32.totalorder %s200, 0
      %s203 = sadd.s32 %s202, 1
      %s204 = scalar_select %p201, %s202, %s203
      %p207 = pneg %p201
      %p208 = scmp.eq.s32.totalorder %s24, 3
      %p209 = por %p207, %p208
      %p210 = scmp.ne.s32.totalorder %s202, %s205
      %p211 = scmp.eq.s32.totalorder %s24, 0
      %p212 = por %p210, %p211
      %p213 = scmp.ne.s32.totalorder %s202, %s205
      %p214 = scmp.eq.s32.totalorder %s29, 3
      %p215 = por %p213, %p214
      %p216 = scmp.ne.s32.totalorder %s205, %s206
      %p217 = scmp.eq.s32.totalorder %s29, 0
      %p218 = por %p216, %p217
      %p219 = scmp.ne.s32.totalorder %s205, %s206
      %p220 = scmp.eq.s32.totalorder %s30, 3
      %p221 = por %p219, %p220
      %p223 = scmp.ne.s32.totalorder %s206, %s222
      %p224 = scmp.eq.s32.totalorder %s30, 0
      %p225 = por %p223, %p224
      %s226 = ssub.s32 %s32, %s39
      %p227 = scmp.eq.s32.totalorder %s226, 0
      %s229 = sadd.s32 %s228, 1
      %s230 = scalar_select %p227, %s228, %s229
      %p233 = pneg %p227
      %p234 = scmp.eq.s32.totalorder %s24, 3
      %p235 = por %p233, %p234
      %p236 = scmp.ne.s32.totalorder %s228, %s231
      %p237 = scmp.eq.s32.totalorder %s24, 0
      %p238 = por %p236, %p237
      %p239 = scmp.ne.s32.totalorder %s228, %s231
      %p240 = scmp.eq.s32.totalorder %s29, 3
      %p241 = por %p239, %p240
      %p242 = scmp.ne.s32.totalorder %s231, %s232
      %p243 = scmp.eq.s32.totalorder %s29, 0
      %p244 = por %p242, %p243
      %p245 = scmp.ne.s32.totalorder %s231, %s232
      %p246 = scmp.eq.s32.totalorder %s30, 3
      %p247 = por %p245, %p246
      %p249 = scmp.ne.s32.totalorder %s232, %s248
      %p250 = scmp.eq.s32.totalorder %s30, 0
      %p251 = por %p249, %p250
      %s252 = ssub.s32 %s32, %s39
      %p253 = scmp.eq.s32.totalorder %s252, 0
      %s255 = sadd.s32 %s254, 1
      %s256 = scalar_select %p253, %s254, %s255
      %p259 = pneg %p253
      %p260 = scmp.eq.s32.totalorder %s24, 3
      %p261 = por %p259, %p260
      %p262 = scmp.ne.s32.totalorder %s254, %s257
      %p263 = scmp.eq.s32.totalorder %s24, 0
      %p264 = por %p262, %p263
      %p265 = scmp.ne.s32.totalorder %s254, %s257
      %p266 = scmp.eq.s32.totalorder %s29, 3
      %p267 = por %p265, %p266
      %p268 = scmp.ne.s32.totalorder %s257, %s258
      %p269 = scmp.eq.s32.totalorder %s29, 0
      %p270 = por %p268, %p269
      %p271 = scmp.ne.s32.totalorder %s257, %s258
      %p272 = scmp.eq.s32.totalorder %s30, 3
      %p273 = por %p271, %p272
      %p275 = scmp.ne.s32.totalorder %s258, %s274
      %p276 = scmp.eq.s32.totalorder %s30, 0
      %p277 = por %p275, %p276
      %s278 = ssub.s32 %s32, %s39
      %p279 = scmp.eq.s32.totalorder %s278, 0
      %s281 = sadd.s32 %s280, 1
      %s282 = scalar_select %p279, %s280, %s281
      %p285 = pneg %p279
      %p286 = scmp.eq.s32.totalorder %s24, 3
      %p287 = por %p285, %p286
      %p288 = scmp.ne.s32.totalorder %s280, %s283
      %p289 = scmp.eq.s32.totalorder %s24, 0
      %p290 = por %p288, %p289
      %p291 = scmp.ne.s32.totalorder %s280, %s283
      %p292 = scmp.eq.s32.totalorder %s29, 3
      %p293 = por %p291, %p292
      %p294 = scmp.ne.s32.totalorder %s283, %s284
      %p295 = scmp.eq.s32.totalorder %s29, 0
      %p296 = por %p294, %p295
      %p297 = scmp.ne.s32.totalorder %s283, %s284
      %p298 = scmp.eq.s32.totalorder %s30, 3
      %p299 = por %p297, %p298
      %p301 = scmp.ne.s32.totalorder %s284, %s300
      %p302 = scmp.eq.s32.totalorder %s30, 0
      %p303 = por %p301, %p302
      %s304 = ssub.s32 %s32, %s39
      %p305 = scmp.eq.s32.totalorder %s304, 0
      %s307 = sadd.s32 %s306, 1
      %s308 = scalar_select %p305, %s306, %s307
      %p311 = pneg %p305
      %p312 = scmp.eq.s32.totalorder %s24, 3
      %p313 = por %p311, %p312
      %p314 = scmp.ne.s32.totalorder %s306, %s309
      %p315 = scmp.eq.s32.totalorder %s24, 0
      %p316 = por %p314, %p315
      %p317 = scmp.ne.s32.totalorder %s306, %s309
      %p318 = scmp.eq.s32.totalorder %s29, 3
      %p319 = por %p317, %p318
      %p320 = scmp.ne.s32.totalorder %s309, %s310
      %p321 = scmp.eq.s32.totalorder %s29, 0
      %p322 = por %p320, %p321
      %p323 = scmp.ne.s32.totalorder %s309, %s310
      %p324 = scmp.eq.s32.totalorder %s30, 3
      %p325 = por %p323, %p324
      %p327 = scmp.ne.s32.totalorder %s310, %s326
      %p328 = scmp.eq.s32.totalorder %s30, 0
      %p329 = por %p327, %p328
      %s330 = ssub.s32 %s32, %s39
      %p331 = scmp.eq.s32.totalorder %s330, 0
      %s333 = sadd.s32 %s332, 1
      %s334 = scalar_select %p331, %s332, %s333
      %p337 = pneg %p331
      %p338 = scmp.eq.s32.totalorder %s24, 3
      %p339 = por %p337, %p338
      %p340 = scmp.ne.s32.totalorder %s332, %s335
      %p341 = scmp.eq.s32.totalorder %s24, 0
      %p342 = por %p340, %p341
      %p343 = scmp.ne.s32.totalorder %s332, %s335
      %p344 = scmp.eq.s32.totalorder %s29, 3
      %p345 = por %p343, %p344
      %p346 = scmp.ne.s32.totalorder %s335, %s336
      %p347 = scmp.eq.s32.totalorder %s29, 0
      %p348 = por %p346, %p347
      %p349 = scmp.ne.s32.totalorder %s335, %s336
      %p350 = scmp.eq.s32.totalorder %s30, 3
      %p351 = por %p349, %p350
      %p353 = scmp.ne.s32.totalorder %s336, %s352
      %p354 = scmp.eq.s32.totalorder %s30, 0
      %p355 = por %p353, %p354
      %s356 = ssub.s32 %s32, %s39
      %p357 = scmp.eq.s32.totalorder %s356, 0
      %s359 = sadd.s32 %s358, 1
      %s360 = scalar_select %p357, %s358, %s359
      %p363 = pneg %p357
      %p364 = scmp.eq.s32.totalorder %s24, 3
      %p365 = por %p363, %p364
      %p366 = scmp.ne.s32.totalorder %s358, %s361
      %p367 = scmp.eq.s32.totalorder %s24, 0
      %p368 = por %p366, %p367
      %p369 = scmp.ne.s32.totalorder %s358, %s361
      %p370 = scmp.eq.s32.totalorder %s29, 3
      %p371 = por %p369, %p370
      %p372 = scmp.ne.s32.totalorder %s361, %s362
      %p373 = scmp.eq.s32.totalorder %s29, 0
      %p374 = por %p372, %p373
      %p375 = scmp.ne.s32.totalorder %s361, %s362
      %p376 = scmp.eq.s32.totalorder %s30, 3
      %p377 = por %p375, %p376
      %p379 = scmp.ne.s32.totalorder %s362, %s378
      %p380 = scmp.eq.s32.totalorder %s30, 0
      %p381 = por %p379, %p380
      %s383 = sadd.s32 %s382, 1
      %p386 = scmp.eq.s32.totalorder %s24, 3
      %p387 = scmp.ne.s32.totalorder %s382, %s384
      %p388 = scmp.eq.s32.totalorder %s24, 0
      %p389 = por %p387, %p388
      %p390 = scmp.ne.s32.totalorder %s382, %s384
      %p391 = scmp.eq.s32.totalorder %s29, 3
      %p392 = por %p390, %p391
      %p393 = scmp.ne.s32.totalorder %s384, %s385
      %p394 = scmp.eq.s32.totalorder %s29, 0
      %p395 = por %p393, %p394
      %p396 = scmp.ne.s32.totalorder %s384, %s385
      %p397 = scmp.eq.s32.totalorder %s30, 3
      %p398 = por %p396, %p397
      %p400 = scmp.ne.s32.totalorder %s385, %s399
      %p401 = scmp.eq.s32.totalorder %s30, 0
      %p402 = por %p400, %p401
      %s404 = sadd.s32 %s403, 1
      %p407 = scmp.eq.s32.totalorder %s24, 3
      %p408 = scmp.ne.s32.totalorder %s403, %s405
      %p409 = scmp.eq.s32.totalorder %s24, 0
      %p410 = por %p408, %p409
      %p411 = scmp.ne.s32.totalorder %s403, %s405
      %p412 = scmp.eq.s32.totalorder %s29, 3
      %p413 = por %p411, %p412
      %p414 = scmp.ne.s32.totalorder %s405, %s406
      %p415 = scmp.eq.s32.totalorder %s29, 0
      %p416 = por %p414, %p415
      %p417 = scmp.ne.s32.totalorder %s405, %s406
      %p418 = scmp.eq.s32.totalorder %s30, 3
      %p419 = por %p417, %p418
      %p421 = scmp.ne.s32.totalorder %s406, %s420
      %p422 = scmp.eq.s32.totalorder %s30, 0
      %p423 = por %p421, %p422
      %s424 = ssub.s32 %s31, %s43
      %p425 = scmp.eq.s32.totalorder %s424, 0
      %s427 = sadd.s32 %s426, 1
      %s428 = scalar_select %p425, %s426, %s427
      %p431 = pneg %p425
      %p432 = scmp.eq.s32.totalorder %s24, 3
      %p433 = por %p431, %p432
      %p434 = scmp.ne.s32.totalorder %s426, %s429
      %p435 = scmp.eq.s32.totalorder %s24, 0
      %p436 = por %p434, %p435
      %p437 = scmp.ne.s32.totalorder %s426, %s429
      %p438 = scmp.eq.s32.totalorder %s29, 3
      %p439 = por %p437, %p438
      %p440 = scmp.ne.s32.totalorder %s429, %s430
      %p441 = scmp.eq.s32.totalorder %s29, 0
      %p442 = por %p440, %p441
      %p443 = scmp.ne.s32.totalorder %s429, %s430
      %p444 = scmp.eq.s32.totalorder %s30, 3
      %p445 = por %p443, %p444
      %p447 = scmp.ne.s32.totalorder %s430, %s446
      %p448 = scmp.eq.s32.totalorder %s30, 0
      %p449 = por %p447, %p448
      %p450 = scmp.le.s32.totalorder 1, %s24
      %p451 = scmp.lt.s32.totalorder %s24, 5
      %p452 = pnand %p450, %p451
      %p453 = pneg %p452
      // Predicated region
      $region9: #{tpu_custom_call.1} parent=5 // pred_check
        _
      $region10: #{tpu_custom_call.1} parent=5 // pred_check_branch
        %455 = sbr.rel (%p452) target = $region12
      $region11: #{tpu_custom_call.1} parent=5 // pred_region
        %s456 = ssub.s32 %s24, 1
        // Predicated region
        $region13: #{tpu_custom_call.1} parent=11 // pred_check
          %p457 = pneg %p395
        $region14: #{tpu_custom_call.1} parent=11 // pred_check_branch
          %459 = sbr.rel (%p457) target = $region16
        $region15: #{tpu_custom_call.1} parent=11 // pred_region
          _
        $region16: #{tpu_custom_call.1} parent=11 // pred_fallthru
          _
        // Predicated region
        $region17: #{tpu_custom_call.1} parent=11 // pred_check
          %p460 = pneg %p416
        $region18: #{tpu_custom_call.1} parent=11 // pred_check_branch
          %462 = sbr.rel (%p460) target = $region20
        $region19: #{tpu_custom_call.1} parent=11 // pred_region
          _
        $region20: #{tpu_custom_call.1} parent=11 // pred_fallthru
          _
      $region12: #{tpu_custom_call.1} parent=5 // pred_fallthru
        _
      %p463 = scmp.lt.s32.totalorder %s24, 4
      // Predicated region
      $region21: #{tpu_custom_call.1} parent=5 // pred_check
        %p464 = pneg %p463
      $region22: #{tpu_custom_call.1} parent=5 // pred_check_branch
        %466 = sbr.rel (%p464) target = $region24
      $region23: #{tpu_custom_call.1} parent=5 // pred_region
        // Predicated region
        $region25: #{tpu_custom_call.1} parent=23 // pred_check
          %p467 = pneg %p56
        $region26: #{tpu_custom_call.1} parent=23 // pred_check_branch
          %469 = sbr.rel (%p467) target = $region28
        $region27: #{tpu_custom_call.1} parent=23 // pred_region
          %p470 = scmp.lt.s32.totalorder %s31, 1
          %s471 = scalar_select %p470, %s31, 1
          %s472 = smul.addr %s471, 8
          %s473 = scalar_lea.vmem %s0, %s472
        $region28: #{tpu_custom_call.1} parent=23 // pred_fallthru
          _
        // Predicated region
        $region29: #{tpu_custom_call.1} parent=23 // pred_check
          %p474 = pneg %p82
        $region30: #{tpu_custom_call.1} parent=23 // pred_check_branch
          %476 = sbr.rel (%p474) target = $region32
        $region31: #{tpu_custom_call.1} parent=23 // pred_region
          %p477 = scmp.lt.s32.totalorder %s32, 1
          %s478 = scalar_select %p477, %s32, 1
          %s479 = smul.addr %s478, 4
          %s480 = smul.addr %s479, 4
          %s481 = scalar_lea.vmem %s1, %s480
        $region32: #{tpu_custom_call.1} parent=23 // pred_fallthru
          _
        // Predicated region
        $region33: #{tpu_custom_call.1} parent=23 // pred_check
          %p482 = pneg %p108
        $region34: #{tpu_custom_call.1} parent=23 // pred_check_branch
          %484 = sbr.rel (%p482) target = $region36
        $region35: #{tpu_custom_call.1} parent=23 // pred_region
          %p485 = scmp.lt.s32.totalorder %s32, 1
          %s486 = scalar_select %p485, %s32, 1
          %s487 = scalar_lea.vmem %s2, %s486
        $region36: #{tpu_custom_call.1} parent=23 // pred_fallthru
          _
        // Predicated region
        $region37: #{tpu_custom_call.1} parent=23 // pred_check
          %p488 = pneg %p134
        $region38: #{tpu_custom_call.1} parent=23 // pred_check_branch
          %490 = sbr.rel (%p488) target = $region40
        $region39: #{tpu_custom_call.1} parent=23 // pred_region
          %p491 = scmp.lt.s32.totalorder %s32, 1
          %s492 = scalar_select %p491, %s32, 1
          %s493 = smul.addr %s492, 4
          %s494 = smul.addr %s493, 4
          %s495 = scalar_lea.vmem %s3, %s494
        $region40: #{tpu_custom_call.1} parent=23 // pred_fallthru
          _
        // Predicated region
        $region41: #{tpu_custom_call.1} parent=23 // pred_check
          %p496 = pneg %p160
        $region42: #{tpu_custom_call.1} parent=23 // pred_check_branch
          %498 = sbr.rel (%p496) target = $region44
        $region43: #{tpu_custom_call.1} parent=23 // pred_region
          %p499 = scmp.lt.s32.totalorder %s32, 1
          %s500 = scalar_select %p499, %s32, 1
          %s501 = scalar_lea.vmem %s4, %s500
        $region44: #{tpu_custom_call.1} parent=23 // pred_fallthru
          _
        // Predicated region
        $region45: #{tpu_custom_call.1} parent=23 // pred_check
          %p502 = pneg %p186
        $region46: #{tpu_custom_call.1} parent=23 // pred_check_branch
          %504 = sbr.rel (%p502) target = $region48
        $region47: #{tpu_custom_call.1} parent=23 // pred_region
          %p505 = scmp.lt.s32.totalorder %s32, 1
          %s506 = scalar_select %p505, %s32, 1
          %s507 = scalar_lea.vmem %s5, %s506
        $region48: #{tpu_custom_call.1} parent=23 // pred_fallthru
          _
        // Predicated region
        $region49: #{tpu_custom_call.1} parent=23 // pred_check
          %p508 = pneg %p212
        $region50: #{tpu_custom_call.1} parent=23 // pred_check_branch
          %510 = sbr.rel (%p508) target = $region52
        $region51: #{tpu_custom_call.1} parent=23 // pred_region
          %p511 = scmp.lt.s32.totalorder %s32, 1
          %s512 = scalar_select %p511, %s32, 1
          %s513 = scalar_lea.vmem %s6, %s512
        $region52: #{tpu_custom_call.1} parent=23 // pred_fallthru
          _
        // Predicated region
        $region53: #{tpu_custom_call.1} parent=23 // pred_check
          %p514 = pneg %p238
        $region54: #{tpu_custom_call.1} parent=23 // pred_check_branch
          %516 = sbr.rel (%p514) target = $region56
        $region55: #{tpu_custom_call.1} parent=23 // pred_region
          %p517 = scmp.lt.s32.totalorder %s32, 1
          %s518 = scalar_select %p517, %s32, 1
          %s519 = smul.addr %s518, 64
          %s520 = smul.addr %s519, 4
          %s521 = scalar_lea.vmem %s7, %s520
        $region56: #{tpu_custom_call.1} parent=23 // pred_fallthru
          _
        // Predicated region
        $region57: #{tpu_custom_call.1} parent=23 // pred_check
          %p522 = pneg %p264
        $region58: #{tpu_custom_call.1} parent=23 // pred_check_branch
          %524 = sbr.rel (%p522) target = $region60
        $region59: #{tpu_custom_call.1} parent=23 // pred_region
          %p525 = scmp.lt.s32.totalorder %s32, 1
          %s526 = scalar_select %p525, %s32, 1
          %s527 = smul.addr %s526, 16
          %s528 = scalar_lea.vmem %s8, %s527
        $region60: #{tpu_custom_call.1} parent=23 // pred_fallthru
          _
        // Predicated region
        $region61: #{tpu_custom_call.1} parent=23 // pred_check
          %p529 = pneg %p290
        $region62: #{tpu_custom_call.1} parent=23 // pred_check_branch
          %531 = sbr.rel (%p529) target = $region64
        $region63: #{tpu_custom_call.1} parent=23 // pred_region
          %p532 = scmp.lt.s32.totalorder %s32, 1
          %s533 = scalar_select %p532, %s32, 1
          %s534 = smul.addr %s533, 256
          %s535 = smul.addr %s534, 4
          %s536 = scalar_lea.vmem %s9, %s535
        $region64: #{tpu_custom_call.1} parent=23 // pred_fallthru
          _
        // Predicated region
        $region65: #{tpu_custom_call.1} parent=23 // pred_check
          %p537 = pneg %p316
        $region66: #{tpu_custom_call.1} parent=23 // pred_check_branch
          %539 = sbr.rel (%p537) target = $region68
        $region67: #{tpu_custom_call.1} parent=23 // pred_region
          %p540 = scmp.lt.s32.totalorder %s32, 1
          %s541 = scalar_select %p540, %s32, 1
          %s542 = scalar_lea.vmem %s10, %s541
        $region68: #{tpu_custom_call.1} parent=23 // pred_fallthru
          _
        // Predicated region
        $region69: #{tpu_custom_call.1} parent=23 // pred_check
          %p543 = pneg %p342
        $region70: #{tpu_custom_call.1} parent=23 // pred_check_branch
          %545 = sbr.rel (%p543) target = $region72
        $region71: #{tpu_custom_call.1} parent=23 // pred_region
          %p546 = scmp.lt.s32.totalorder %s32, 1
          %s547 = scalar_select %p546, %s32, 1
          %s548 = scalar_lea.vmem %s11, %s547
        $region72: #{tpu_custom_call.1} parent=23 // pred_fallthru
          _
        // Predicated region
        $region73: #{tpu_custom_call.1} parent=23 // pred_check
          %p549 = pneg %p368
        $region74: #{tpu_custom_call.1} parent=23 // pred_check_branch
          %551 = sbr.rel (%p549) target = $region76
        $region75: #{tpu_custom_call.1} parent=23 // pred_region
          %p552 = scmp.lt.s32.totalorder %s32, 1
          %s553 = scalar_select %p552, %s32, 1
          %s554 = scalar_lea.vmem %s12, %s553
        $region76: #{tpu_custom_call.1} parent=23 // pred_fallthru
          _
      $region24: #{tpu_custom_call.1} parent=5 // pred_fallthru
        _
      %p555 = scmp.le.s32.totalorder 1, %s24
      %p556 = scmp.lt.s32.totalorder %s24, 5
      %p557 = pnand %p555, %p556
      %p558 = pneg %p557
      // Predicated region
      $region77: #{tpu_custom_call.1} parent=5 // pred_check
        _
      $region78: #{tpu_custom_call.1} parent=5 // pred_check_branch
        %560 = sbr.rel (%p557) target = $region80
      $region79: #{tpu_custom_call.1} parent=5 // pred_region
        %s561 = ssub.s32 %s24, 1
        %p562 = scmp.lt.s32.totalorder %s33, 1
        %s563 = scalar_select %p562, %s33, 1
        %s564 = smul.addr %s563, 8
        %s565 = scalar_lea.vmem %s0, %s564
        %p566 = pneg %p62
        %p567 = pneg %p59
        %p568 = scmp.lt.s32.totalorder %s34, 1
        %s569 = scalar_select %p568, %s34, 1
        %s570 = smul.addr %s569, 4
        %s571 = smul.addr %s570, 4
        %s572 = scalar_lea.vmem %s1, %s571
        %p573 = pneg %p88
        %p574 = pneg %p85
        %p575 = scmp.lt.s32.totalorder %s34, 1
        %s576 = scalar_select %p575, %s34, 1
        %s577 = scalar_lea.vmem %s2, %s576
        %p578 = pneg %p114
        %p579 = pneg %p111
        %p580 = scmp.lt.s32.totalorder %s34, 1
        %s581 = scalar_select %p580, %s34, 1
        %s582 = smul.addr %s581, 4
        %s583 = smul.addr %s582, 4
        %s584 = scalar_lea.vmem %s3, %s583
        %p585 = pneg %p140
        %p586 = pneg %p137
        %p587 = scmp.lt.s32.totalorder %s34, 1
        %s588 = scalar_select %p587, %s34, 1
        %s589 = scalar_lea.vmem %s4, %s588
        %p590 = pneg %p166
        %p591 = pneg %p163
        %p592 = scmp.lt.s32.totalorder %s34, 1
        %s593 = scalar_select %p592, %s34, 1
        %s594 = scalar_lea.vmem %s5, %s593
        %p595 = pneg %p192
        %p596 = pneg %p189
        %p597 = scmp.lt.s32.totalorder %s34, 1
        %s598 = scalar_select %p597, %s34, 1
        %s599 = scalar_lea.vmem %s6, %s598
        %p600 = pneg %p218
        %p601 = pneg %p215
        %p602 = scmp.lt.s32.totalorder %s34, 1
        %s603 = scalar_select %p602, %s34, 1
        %s604 = smul.addr %s603, 64
        %s605 = smul.addr %s604, 4
        %s606 = scalar_lea.vmem %s7, %s605
        %p607 = pneg %p244
        %p608 = pneg %p241
        %p609 = scmp.lt.s32.totalorder %s34, 1
        %s610 = scalar_select %p609, %s34, 1
        %s611 = smul.addr %s610, 16
        %s612 = scalar_lea.vmem %s8, %s611
        %p613 = pneg %p270
        %p614 = pneg %p267
        %p615 = scmp.lt.s32.totalorder %s34, 1
        %s616 = scalar_select %p615, %s34, 1
        %s617 = smul.addr %s616, 256
        %s618 = smul.addr %s617, 4
        %s619 = scalar_lea.vmem %s9, %s618
        %p620 = pneg %p296
        %p621 = pneg %p293
        %p622 = scmp.lt.s32.totalorder %s34, 1
        %s623 = scalar_select %p622, %s34, 1
        %s624 = scalar_lea.vmem %s10, %s623
        %p625 = pneg %p322
        %p626 = pneg %p319
        %p627 = scmp.lt.s32.totalorder %s34, 1
        %s628 = scalar_select %p627, %s34, 1
        %s629 = scalar_lea.vmem %s11, %s628
        %p630 = pneg %p348
        %p631 = pneg %p345
        %p632 = scmp.lt.s32.totalorder %s34, 1
        %s633 = scalar_select %p632, %s34, 1
        %s634 = scalar_lea.vmem %s12, %s633
        %p635 = pneg %p374
        %p636 = pneg %p371
        %p637 = pneg %p395
        %p638 = pneg %p392
        %p639 = pneg %p416
        %p640 = pneg %p413
        %p641 = pneg %p442
        %p642 = pneg %p439
        %s643 = sand.u32 %s429, 1
        %s644 = scalar_lea.sflag [#allocation5], %s643
        %s645 = sand.u32 %s429, 1
        %s646 = smul.addr %s645, 8
        %s647 = scalar_lea.vmem [#allocation4], %s646
        %p648 = scmp.lt.s32.totalorder %s33, 1
        %s649 = scalar_select %p648, %s33, 1
        %s650 = smul.addr %s649, 8
        %s651 = scalar_lea.vmem %s0, %s650
        %p652 = scmp.lt.s32.totalorder %s34, 1
        %s653 = scalar_select %p652, %s34, 1
        %s654 = smul.addr %s653, 4
        %s655 = smul.addr %s654, 4
        %s656 = scalar_lea.vmem %s1, %s655
        %p657 = scmp.lt.s32.totalorder %s34, 1
        %s658 = scalar_select %p657, %s34, 1
        %s659 = scalar_lea.vmem %s2, %s658
        %p660 = scmp.lt.s32.totalorder %s34, 1
        %s661 = scalar_select %p660, %s34, 1
        %s662 = smul.addr %s661, 4
        %s663 = smul.addr %s662, 4
        %s664 = scalar_lea.vmem %s3, %s663
        %p665 = scmp.lt.s32.totalorder %s34, 1
        %s666 = scalar_select %p665, %s34, 1
        %s667 = scalar_lea.vmem %s4, %s666
        %p668 = scmp.lt.s32.totalorder %s34, 1
        %s669 = scalar_select %p668, %s34, 1
        %s670 = scalar_lea.vmem %s5, %s669
        %p671 = scmp.lt.s32.totalorder %s34, 1
        %s672 = scalar_select %p671, %s34, 1
        %s673 = scalar_lea.vmem %s6, %s672
        %p674 = scmp.lt.s32.totalorder %s34, 1
        %s675 = scalar_select %p674, %s34, 1
        %s676 = smul.addr %s675, 64
        %s677 = smul.addr %s676, 4
        %s678 = scalar_lea.vmem %s7, %s677
        %p679 = scmp.lt.s32.totalorder %s34, 1
        %s680 = scalar_select %p679, %s34, 1
        %s681 = smul.addr %s680, 16
        %s682 = scalar_lea.vmem %s8, %s681
        %p683 = scmp.lt.s32.totalorder %s34, 1
        %s684 = scalar_select %p683, %s34, 1
        %s685 = smul.addr %s684, 256
        %s686 = smul.addr %s685, 4
        %s687 = scalar_lea.vmem %s9, %s686
        %p688 = scmp.lt.s32.totalorder %s34, 1
        %s689 = scalar_select %p688, %s34, 1
        %s690 = scalar_lea.vmem %s10, %s689
        %p691 = scmp.lt.s32.totalorder %s34, 1
        %s692 = scalar_select %p691, %s34, 1
        %s693 = scalar_lea.vmem %s11, %s692
        %p694 = scmp.lt.s32.totalorder %s34, 1
        %s695 = scalar_select %p694, %s34, 1
        %s696 = scalar_lea.vmem %s12, %s695
        %p698 = scmp.eq.s32.totalorder %s34, 0
        // Predicated region
        $region81: #{tpu_custom_call.1} parent=79 // pred_check
          %p699 = pneg %p698
        $region82: #{tpu_custom_call.1} parent=79 // pred_check_branch
          %701 = sbr.rel (%p699) target = $region84
        $region83: #{tpu_custom_call.1} parent=79 // pred_region
          %v702 = vld [vmem:[%s651] sm:$0xff]
          %vm703 = vcmask 261120
          %704 = vst.msk [vmem:[#allocation2] sm:$0xff] %vm703, %v702
        $region84: #{tpu_custom_call.1} parent=79 // pred_fallthru
          _
        %v705 = vld [vmem:[#allocation2] sm:$0xff]
        %v706 = vlaneseq
        %v707 = vshrl.u32 %v706, 7
        %v708 = vlaneseq
        %v709 = vand.u32 %v708, 127
        %vm710 = vcmp.ge.s32.totalorder %v707, %v709
        %v711 = vsel %vm710, 0.0, -1e+30
        %v712 = vpack.c.bf16 %v705, %v705
        %v713 = vld [vmem:[%s656] sm:$0xf]
        %v714 = vld [vmem:[%s656 + $0x4] sm:$0xf]
        %v715 = vld [vmem:[%s656 + $0x8] sm:$0xf]
        %v716 = vld [vmem:[%s656 + $0xc] sm:$0xf]
        %v717 = vld [vmem:[%s659] sm:$0x1]
        %v719 = vlaneseq
        %v720 = vshrl.u32 %v719, 7
        %v721 = vsub.s32 0, %v720
        %v722 = vrot.slane %v717, %v721
        %v728 = vunpack.c.l.b16 %v713
        %v729 = vunpack.c.l.b16 %v714
        %v730 = vunpack.c.l.b16 %v715
        %v731 = vunpack.c.l.b16 %v716
        %v732 = vpack.c.b16 %v729, %v728
        %v733 = vpack.c.b16 %v731, %v730
        %vm736 = vcmask 261120
        %v738 = vsel %vm736, %v712, 0
        %740 = vmatprep.subr.bf16.mxu0 0
        %741 = vmatpush1.bf16.msra.mxu0 %v732
        %742 = vmatprep.subr.bf16.mxu0 0
        %743 = vmatpush1.bf16.msra.mxu0 %v733
        %744 = vmatprep.subr.bf16.mxu0 0
        %745 = vmatpush1.bf16.msra.mxu0 0
        %746 = vmatprep.subr.bf16.mxu0 0
        %747 = vmatpush1.bf16.msra.mxu0 0
        %748 = vmatprep.subr.bf16.mxu0 0
        %749 = vmatpush1.bf16.msra.mxu0 0
        %750 = vmatprep.subr.bf16.mxu0 0
        %751 = vmatpush1.bf16.msra.mxu0 0
        %752 = vmatprep.subr.bf16.mxu0 0
        %753 = vmatpush1.bf16.msra.mxu0 0
        %754 = vmatprep.subr.bf16.mxu0 0
        %755 = vmatpush1.bf16.msra.mxu0 0
        %756 = vmatprep.subr.bf16.mxu0 0
        %757 = vmatpush1.bf16.msra.mxu0 0
        %758 = vmatprep.subr.bf16.mxu0 0
        %759 = vmatpush1.bf16.msra.mxu0 0
        %760 = vmatprep.subr.bf16.mxu0 0
        %761 = vmatpush1.bf16.msra.mxu0 0
        %762 = vmatprep.subr.bf16.mxu0 0
        %763 = vmatpush1.bf16.msra.mxu0 0
        %764 = vmatprep.subr.bf16.mxu0 0
        %765 = vmatpush1.bf16.msra.mxu0 0
        %766 = vmatprep.subr.bf16.mxu0 0
        %767 = vmatpush1.bf16.msra.mxu0 0
        %768 = vmatprep.subr.bf16.mxu0 0
        %769 = vmatpush1.bf16.msra.mxu0 0
        %770 = vmatprep.subr.bf16.mxu0 0
        %771 = vmatpush1.bf16.msra.mxu0 0
        %772 = vmatprep.mubr.bf16.mxu0 0
        %773 = vmatmul.mubr.bf16.gmra.mrb[0].mxu0 %v738
        %v774 = vpop.f32.mrb[0].mxu0
        %v775 = vadd.f32 %v722, %v774
        %v776 = vpop.f32.mrb[0].mxu0
        %v777 = vpop.f32.mrb[0].mxu0
        %v778 = vpop.f32.mrb[0].mxu0
        %779 = vdwg.mxu0
        %781 = vrot.lane.b32.xlu0 %v775, 120
        %v782 = vpop.permute.xlu0 %781
        %784 = vrot.lane.b32.xlu0 %v775, 112
        %v785 = vpop.permute.xlu0 %784
        %787 = vrot.lane.b32.xlu0 %v775, 104
        %v788 = vpop.permute.xlu0 %787
        %790 = vrot.lane.b32.xlu0 %v775, 96
        %v791 = vpop.permute.xlu0 %790
        %793 = vrot.lane.b32.xlu0 %v775, 88
        %v794 = vpop.permute.xlu0 %793
        %796 = vrot.lane.b32.xlu0 %v775, 80
        %v797 = vpop.permute.xlu0 %796
        %799 = vrot.lane.b32.xlu0 %v775, 72
        %v800 = vpop.permute.xlu0 %799
        %802 = vrot.lane.b32.xlu0 %v775, 64
        %v803 = vpop.permute.xlu0 %802
        %805 = vrot.lane.b32.xlu0 %v775, 56
        %v806 = vpop.permute.xlu0 %805
        %808 = vrot.lane.b32.xlu0 %v775, 48
        %v809 = vpop.permute.xlu0 %808
        %811 = vrot.lane.b32.xlu0 %v775, 40
        %v812 = vpop.permute.xlu0 %811
        %v814 = vpack.c.bf16 %v775, %v775
        %v815 = vpack.c.bf16 %v782, %v782
        %v816 = vpack.c.bf16 %v785, %v785
        %v817 = vpack.c.bf16 %v788, %v788
        %v818 = vpack.c.bf16 %v791, %v791
        %v819 = vpack.c.bf16 %v794, %v794
        %v820 = vpack.c.bf16 %v797, %v797
        %v821 = vpack.c.bf16 %v800, %v800
        %vm822 = vcmask 64512
        %v824 = vsel %vm822, %v814, 0
        %v827 = vsel %vm822, %v818, 0
        %829 = vmatprep.subr.bf16.mxu0 0
        %830 = vmatpush1.bf16.xpose.msra.mxu0 %v827
        %831 = vmatprep.subr.bf16.mxu0 0
        %832 = vmatpush1.bf16.xpose.msra.mxu0 0
        %833 = vmatprep.subr.bf16.mxu0 0
        %834 = vmatpush1.bf16.xpose.msra.mxu0 0
        %835 = vmatprep.subr.bf16.mxu0 0
        %836 = vmatpush1.bf16.xpose.msra.mxu0 0
        %837 = vmatprep.subr.bf16.mxu0 0
        %838 = vmatpush1.bf16.xpose.msra.mxu0 0
        %839 = vmatprep.subr.bf16.mxu0 0
        %840 = vmatpush1.bf16.xpose.msra.mxu0 0
        %841 = vmatprep.subr.bf16.mxu0 0
        %842 = vmatpush1.bf16.xpose.msra.mxu0 0
        %843 = vmatprep.subr.bf16.mxu0 0
        %844 = vmatpush1.bf16.xpose.msra.mxu0 0
        %845 = vmatprep.subr.bf16.mxu0 0
        %846 = vmatpush1.bf16.xpose.msra.mxu0 0
        %847 = vmatprep.subr.bf16.mxu0 0
        %848 = vmatpush1.bf16.xpose.msra.mxu0 0
        %849 = vmatprep.subr.bf16.mxu0 0
        %850 = vmatpush1.bf16.xpose.msra.mxu0 0
        %851 = vmatprep.subr.bf16.mxu0 0
        %852 = vmatpush1.bf16.xpose.msra.mxu0 0
        %853 = vmatprep.subr.bf16.mxu0 0
        %854 = vmatpush1.bf16.xpose.msra.mxu0 0
        %855 = vmatprep.subr.bf16.mxu0 0
        %856 = vmatpush1.bf16.xpose.msra.mxu0 0
        %857 = vmatprep.subr.bf16.mxu0 0
        %858 = vmatpush1.bf16.xpose.msra.mxu0 0
        %859 = vmatprep.subr.bf16.mxu0 0
        %860 = vmatpush1.bf16.xpose.msra.mxu0 0
        %861 = vmatprep.mubr.bf16.mxu0 0
        %862 = vmatmul.mubr.bf16.gmra.mrb[0].mxu0 %v824
        %v863 = vpop.f32.mrb[0].mxu0
        %v864 = vadd.f32 0.0, %v863
        %v865 = vpop.f32.mrb[0].mxu0
        %v866 = vpop.f32.mrb[0].mxu0
        %v867 = vpop.f32.mrb[0].mxu0
        %868 = vdwg.mxu0
        %v870 = vsel %vm822, %v815, 0
        %v873 = vsel %vm822, %v819, 0
        %875 = vmatprep.subr.bf16.mxu0 0
        %876 = vmatpush1.bf16.xpose.msra.mxu0 %v873
        %877 = vmatprep.subr.bf16.mxu0 0
        %878 = vmatpush1.bf16.xpose.msra.mxu0 0
        %879 = vmatprep.subr.bf16.mxu0 0
        %880 = vmatpush1.bf16.xpose.msra.mxu0 0
        %881 = vmatprep.subr.bf16.mxu0 0
        %882 = vmatpush1.bf16.xpose.msra.mxu0 0
        %883 = vmatprep.subr.bf16.mxu0 0
        %884 = vmatpush1.bf16.xpose.msra.mxu0 0
        %885 = vmatprep.subr.bf16.mxu0 0
        %886 = vmatpush1.bf16.xpose.msra.mxu0 0
        %887 = vmatprep.subr.bf16.mxu0 0
        %888 = vmatpush1.bf16.xpose.msra.mxu0 0
        %889 = vmatprep.subr.bf16.mxu0 0
        %890 = vmatpush1.bf16.xpose.msra.mxu0 0
        %891 = vmatprep.subr.bf16.mxu0 0
        %892 = vmatpush1.bf16.xpose.msra.mxu0 0
        %893 = vmatprep.subr.bf16.mxu0 0
        %894 = vmatpush1.bf16.xpose.msra.mxu0 0
        %895 = vmatprep.subr.bf16.mxu0 0
        %896 = vmatpush1.bf16.xpose.msra.mxu0 0
        %897 = vmatprep.subr.bf16.mxu0 0
        %898 = vmatpush1.bf16.xpose.msra.mxu0 0
        %899 = vmatprep.subr.bf16.mxu0 0
        %900 = vmatpush1.bf16.xpose.msra.mxu0 0
        %901 = vmatprep.subr.bf16.mxu0 0
        %902 = vmatpush1.bf16.xpose.msra.mxu0 0
        %903 = vmatprep.subr.bf16.mxu0 0
        %904 = vmatpush1.bf16.xpose.msra.mxu0 0
        %905 = vmatprep.subr.bf16.mxu0 0
        %906 = vmatpush1.bf16.xpose.msra.mxu0 0
        %907 = vmatprep.mubr.bf16.mxu0 0
        %908 = vmatmul.mubr.bf16.gmra.mrb[0].mxu0 %v870
        %v909 = vpop.f32.mrb[0].mxu0
        %v910 = vadd.f32 0.0, %v909
        %v911 = vpop.f32.mrb[0].mxu0
        %v912 = vpop.f32.mrb[0].mxu0
        %v913 = vpop.f32.mrb[0].mxu0
        %914 = vdwg.mxu0
        %v916 = vsel %vm822, %v816, 0
        %v919 = vsel %vm822, %v820, 0
        %921 = vmatprep.subr.bf16.mxu0 0
        %922 = vmatpush1.bf16.xpose.msra.mxu0 %v919
        %923 = vmatprep.subr.bf16.mxu0 0
        %924 = vmatpush1.bf16.xpose.msra.mxu0 0
        %925 = vmatprep.subr.bf16.mxu0 0
        %926 = vmatpush1.bf16.xpose.msra.mxu0 0
        %927 = vmatprep.subr.bf16.mxu0 0
        %928 = vmatpush1.bf16.xpose.msra.mxu0 0
        %929 = vmatprep.subr.bf16.mxu0 0
        %930 = vmatpush1.bf16.xpose.msra.mxu0 0
        %931 = vmatprep.subr.bf16.mxu0 0
        %932 = vmatpush1.bf16.xpose.msra.mxu0 0
        %933 = vmatprep.subr.bf16.mxu0 0
        %934 = vmatpush1.bf16.xpose.msra.mxu0 0
        %935 = vmatprep.subr.bf16.mxu0 0
        %936 = vmatpush1.bf16.xpose.msra.mxu0 0
        %937 = vmatprep.subr.bf16.mxu0 0
        %938 = vmatpush1.bf16.xpose.msra.mxu0 0
        %939 = vmatprep.subr.bf16.mxu0 0
        %940 = vmatpush1.bf16.xpose.msra.mxu0 0
        %941 = vmatprep.subr.bf16.mxu0 0
        %942 = vmatpush1.bf16.xpose.msra.mxu0 0
        %943 = vmatprep.subr.bf16.mxu0 0
        %944 = vmatpush1.bf16.xpose.msra.mxu0 0
        %945 = vmatprep.subr.bf16.mxu0 0
        %946 = vmatpush1.bf16.xpose.msra.mxu0 0
        %947 = vmatprep.subr.bf16.mxu0 0
        %948 = vmatpush1.bf16.xpose.msra.mxu0 0
        %949 = vmatprep.subr.bf16.mxu0 0
        %950 = vmatpush1.bf16.xpose.msra.mxu0 0
        %951 = vmatprep.subr.bf16.mxu0 0
        %952 = vmatpush1.bf16.xpose.msra.mxu0 0
        %953 = vmatprep.mubr.bf16.mxu0 0
        %954 = vmatmul.mubr.bf16.gmra.mrb[0].mxu0 %v916
        %v955 = vpop.f32.mrb[0].mxu0
        %v956 = vadd.f32 0.0, %v955
        %v957 = vpop.f32.mrb[0].mxu0
        %v958 = vpop.f32.mrb[0].mxu0
        %v959 = vpop.f32.mrb[0].mxu0
        %960 = vdwg.mxu0
        %v962 = vsel %vm822, %v817, 0
        %v965 = vsel %vm822, %v821, 0
        %967 = vmatprep.subr.bf16.mxu0 0
        %968 = vmatpush1.bf16.xpose.msra.mxu0 %v965
        %969 = vmatprep.subr.bf16.mxu0 0
        %970 = vmatpush1.bf16.xpose.msra.mxu0 0
        %971 = vmatprep.subr.bf16.mxu0 0
        %972 = vmatpush1.bf16.xpose.msra.mxu0 0
        %973 = vmatprep.subr.bf16.mxu0 0
        %974 = vmatpush1.bf16.xpose.msra.mxu0 0
        %975 = vmatprep.subr.bf16.mxu0 0
        %976 = vmatpush1.bf16.xpose.msra.mxu0 0
        %977 = vmatprep.subr.bf16.mxu0 0
        %978 = vmatpush1.bf16.xpose.msra.mxu0 0
        %979 = vmatprep.subr.bf16.mxu0 0
        %980 = vmatpush1.bf16.xpose.msra.mxu0 0
        %981 = vmatprep.subr.bf16.mxu0 0
        %982 = vmatpush1.bf16.xpose.msra.mxu0 0
        %983 = vmatprep.subr.bf16.mxu0 0
        %984 = vmatpush1.bf16.xpose.msra.mxu0 0
        %985 = vmatprep.subr.bf16.mxu0 0
        %986 = vmatpush1.bf16.xpose.msra.mxu0 0
        %987 = vmatprep.subr.bf16.mxu0 0
        %988 = vmatpush1.bf16.xpose.msra.mxu0 0
        %989 = vmatprep.subr.bf16.mxu0 0
        %990 = vmatpush1.bf16.xpose.msra.mxu0 0
        %991 = vmatprep.subr.bf16.mxu0 0
        %992 = vmatpush1.bf16.xpose.msra.mxu0 0
        %993 = vmatprep.subr.bf16.mxu0 0
        %994 = vmatpush1.bf16.xpose.msra.mxu0 0
        %995 = vmatprep.subr.bf16.mxu0 0
        %996 = vmatpush1.bf16.xpose.msra.mxu0 0
        %997 = vmatprep.subr.bf16.mxu0 0
        %998 = vmatpush1.bf16.xpose.msra.mxu0 0
        %999 = vmatprep.mubr.bf16.mxu0 0
        %1000 = vmatmul.mubr.bf16.gmra.mrb[0].mxu0 %v962
        %v1001 = vpop.f32.mrb[0].mxu0
        %v1002 = vadd.f32 0.0, %v1001
        %v1003 = vpop.f32.mrb[0].mxu0
        %v1004 = vpop.f32.mrb[0].mxu0
        %v1005 = vpop.f32.mrb[0].mxu0
        %1006 = vdwg.mxu0
        %v1007 = vmul.f32 %v864, 0.35355338
        %v1008 = vmul.f32 %v910, 0.35355338
        %v1009 = vmul.f32 %v956, 0.35355338
        %v1010 = vmul.f32 %v1002, 0.35355338
        %v1011 = vadd.f32 %v1007, %v711
        %v1012 = vadd.f32 %v1008, %v711
        %v1013 = vadd.f32 %v1009, %v711
        %v1014 = vadd.f32 %v1010, %v711
        %v1015 = vsel %vm822, %v1011, -inf
        %1016 = vmax.xlane.f32.xlu0 %v1015
        %v1017 = vpop.xlane.xlu0 %1016
        %v1018 = vsel %vm822, %v1012, -inf
        %1019 = vmax.xlane.f32.xlu0 %v1018
        %v1020 = vpop.xlane.xlu0 %1019
        %v1021 = vsel %vm822, %v1013, -inf
        %1022 = vmax.xlane.f32.xlu0 %v1021
        %v1023 = vpop.xlane.xlu0 %1022
        %v1024 = vsel %vm822, %v1014, -inf
        %1025 = vmax.xlane.f32.xlu0 %v1024
        %v1026 = vpop.xlane.xlu0 %1025
        %v1027 = vsub.f32 %v1011, %v1017
        %v1028 = vsub.f32 %v1012, %v1020
        %v1029 = vsub.f32 %v1013, %v1023
        %v1030 = vsub.f32 %v1014, %v1026
        %v1031 = vmul.f32 %v1027, 1.442695
        %v1032 = vpow.pop %v1031
        %v1033 = vmul.f32 %v1028, 1.442695
        %v1034 = vpow.pop %v1033
        %v1035 = vmul.f32 %v1029, 1.442695
        %v1036 = vpow.pop %v1035
        %v1037 = vmul.f32 %v1030, 1.442695
        %v1038 = vpow.pop %v1037
        %v1039 = vsel %vm822, %v1032, 0.0
        %1040 = vadd.xlane.f32.xlu0 %v1039
        %v1041 = vpop.xlane.xlu0 %1040
        %v1042 = vsel %vm822, %v1034, 0.0
        %1043 = vadd.xlane.f32.xlu0 %v1042
        %v1044 = vpop.xlane.xlu0 %1043
        %v1045 = vsel %vm822, %v1036, 0.0
        %1046 = vadd.xlane.f32.xlu0 %v1045
        %v1047 = vpop.xlane.xlu0 %1046
        %v1048 = vsel %vm822, %v1038, 0.0
        %1049 = vadd.xlane.f32.xlu0 %v1048
        %v1050 = vpop.xlane.xlu0 %1049
        %v1051 = vrcp.pop %v1041
        %v1052 = vrcp.pop %v1044
        %v1053 = vrcp.pop %v1047
        %v1054 = vrcp.pop %v1050
        %v1055 = vmul.f32 %v1032, %v1051
        %v1056 = vmul.f32 %v1034, %v1052
        %v1057 = vmul.f32 %v1036, %v1053
        %v1058 = vmul.f32 %v1038, %v1054
        %v1059 = vpack.c.bf16 %v1055, %v1055
        %v1060 = vpack.c.bf16 %v1056, %v1056
        %v1061 = vpack.c.bf16 %v1057, %v1057
        %v1062 = vpack.c.bf16 %v1058, %v1058
        %v1063 = vpack.c.bf16 %v803, %v803
        %v1064 = vpack.c.bf16 %v806, %v806
        %v1065 = vpack.c.bf16 %v809, %v809
        %v1066 = vpack.c.bf16 %v812, %v812
        %v1068 = vsel %vm822, %v1059, 0
        %vm1070 = vcmask 1043456
        %v1072 = vsel %vm1070, %v1063, 0
        %1074 = vmatprep.subr.bf16.mxu0 0
        %1075 = vmatpush1.bf16.msra.mxu0 %v1072
        %1076 = vmatprep.subr.bf16.mxu0 0
        %1077 = vmatpush1.bf16.msra.mxu0 0
        %1078 = vmatprep.subr.bf16.mxu0 0
        %1079 = vmatpush1.bf16.msra.mxu0 0
        %1080 = vmatprep.subr.bf16.mxu0 0
        %1081 = vmatpush1.bf16.msra.mxu0 0
        %1082 = vmatprep.subr.bf16.mxu0 0
        %1083 = vmatpush1.bf16.msra.mxu0 0
        %1084 = vmatprep.subr.bf16.mxu0 0
        %1085 = vmatpush1.bf16.msra.mxu0 0
        %1086 = vmatprep.subr.bf16.mxu0 0
        %1087 = vmatpush1.bf16.msra.mxu0 0
        %1088 = vmatprep.subr.bf16.mxu0 0
        %1089 = vmatpush1.bf16.msra.mxu0 0
        %1090 = vmatprep.subr.bf16.mxu0 0
        %1091 = vmatpush1.bf16.msra.mxu0 0
        %1092 = vmatprep.subr.bf16.mxu0 0
        %1093 = vmatpush1.bf16.msra.mxu0 0
        %1094 = vmatprep.subr.bf16.mxu0 0
        %1095 = vmatpush1.bf16.msra.mxu0 0
        %1096 = vmatprep.subr.bf16.mxu0 0
        %1097 = vmatpush1.bf16.msra.mxu0 0
        %1098 = vmatprep.subr.bf16.mxu0 0
        %1099 = vmatpush1.bf16.msra.mxu0 0
        %1100 = vmatprep.subr.bf16.mxu0 0
        %1101 = vmatpush1.bf16.msra.mxu0 0
        %1102 = vmatprep.subr.bf16.mxu0 0
        %1103 = vmatpush1.bf16.msra.mxu0 0
        %1104 = vmatprep.subr.bf16.mxu0 0
        %1105 = vmatpush1.bf16.msra.mxu0 0
        %1106 = vmatprep.mubr.bf16.mxu0 0
        %1107 = vmatmul.mubr.bf16.gmra.mrb[0].mxu0 %v1068
        %v1108 = vpop.f32.mrb[0].mxu0
        %v1109 = vadd.f32 0.0, %v1108
        %v1110 = vpop.f32.mrb[0].mxu0
        %v1111 = vpop.f32.mrb[0].mxu0
        %v1112 = vpop.f32.mrb[0].mxu0
        %1113 = vdwg.mxu0
        %v1115 = vsel %vm822, %v1060, 0
        %v1118 = vsel %vm1070, %v1064, 0
        %1120 = vmatprep.subr.bf16.mxu0 0
        %1121 = vmatpush1.bf16.msra.mxu0 %v1118
        %1122 = vmatprep.subr.bf16.mxu0 0
        %1123 = vmatpush1.bf16.msra.mxu0 0
        %1124 = vmatprep.subr.bf16.mxu0 0
        %1125 = vmatpush1.bf16.msra.mxu0 0
        %1126 = vmatprep.subr.bf16.mxu0 0
        %1127 = vmatpush1.bf16.msra.mxu0 0
        %1128 = vmatprep.subr.bf16.mxu0 0
        %1129 = vmatpush1.bf16.msra.mxu0 0
        %1130 = vmatprep.subr.bf16.mxu0 0
        %1131 = vmatpush1.bf16.msra.mxu0 0
        %1132 = vmatprep.subr.bf16.mxu0 0
        %1133 = vmatpush1.bf16.msra.mxu0 0
        %1134 = vmatprep.subr.bf16.mxu0 0
        %1135 = vmatpush1.bf16.msra.mxu0 0
        %1136 = vmatprep.subr.bf16.mxu0 0
        %1137 = vmatpush1.bf16.msra.mxu0 0
        %1138 = vmatprep.subr.bf16.mxu0 0
        %1139 = vmatpush1.bf16.msra.mxu0 0
        %1140 = vmatprep.subr.bf16.mxu0 0
        %1141 = vmatpush1.bf16.msra.mxu0 0
        %1142 = vmatprep.subr.bf16.mxu0 0
        %1143 = vmatpush1.bf16.msra.mxu0 0
        %1144 = vmatprep.subr.bf16.mxu0 0
        %1145 = vmatpush1.bf16.msra.mxu0 0
        %1146 = vmatprep.subr.bf16.mxu0 0
        %1147 = vmatpush1.bf16.msra.mxu0 0
        %1148 = vmatprep.subr.bf16.mxu0 0
        %1149 = vmatpush1.bf16.msra.mxu0 0
        %1150 = vmatprep.subr.bf16.mxu0 0
        %1151 = vmatpush1.bf16.msra.mxu0 0
        %1152 = vmatprep.mubr.bf16.mxu0 0
        %1153 = vmatmul.mubr.bf16.gmra.mrb[0].mxu0 %v1115
        %v1154 = vpop.f32.mrb[0].mxu0
        %v1155 = vadd.f32 0.0, %v1154
        %v1156 = vpop.f32.mrb[0].mxu0
        %v1157 = vpop.f32.mrb[0].mxu0
        %v1158 = vpop.f32.mrb[0].mxu0
        %1159 = vdwg.mxu0
        %v1161 = vsel %vm822, %v1061, 0
        %v1164 = vsel %vm1070, %v1065, 0
        %1166 = vmatprep.subr.bf16.mxu0 0
        %1167 = vmatpush1.bf16.msra.mxu0 %v1164
        %1168 = vmatprep.subr.bf16.mxu0 0
        %1169 = vmatpush1.bf16.msra.mxu0 0
        %1170 = vmatprep.subr.bf16.mxu0 0
        %1171 = vmatpush1.bf16.msra.mxu0 0
        %1172 = vmatprep.subr.bf16.mxu0 0
        %1173 = vmatpush1.bf16.msra.mxu0 0
        %1174 = vmatprep.subr.bf16.mxu0 0
        %1175 = vmatpush1.bf16.msra.mxu0 0
        %1176 = vmatprep.subr.bf16.mxu0 0
        %1177 = vmatpush1.bf16.msra.mxu0 0
        %1178 = vmatprep.subr.bf16.mxu0 0
        %1179 = vmatpush1.bf16.msra.mxu0 0
        %1180 = vmatprep.subr.bf16.mxu0 0
        %1181 = vmatpush1.bf16.msra.mxu0 0
        %1182 = vmatprep.subr.bf16.mxu0 0
        %1183 = vmatpush1.bf16.msra.mxu0 0
        %1184 = vmatprep.subr.bf16.mxu0 0
        %1185 = vmatpush1.bf16.msra.mxu0 0
        %1186 = vmatprep.subr.bf16.mxu0 0
        %1187 = vmatpush1.bf16.msra.mxu0 0
        %1188 = vmatprep.subr.bf16.mxu0 0
        %1189 = vmatpush1.bf16.msra.mxu0 0
        %1190 = vmatprep.subr.bf16.mxu0 0
        %1191 = vmatpush1.bf16.msra.mxu0 0
        %1192 = vmatprep.subr.bf16.mxu0 0
        %1193 = vmatpush1.bf16.msra.mxu0 0
        %1194 = vmatprep.subr.bf16.mxu0 0
        %1195 = vmatpush1.bf16.msra.mxu0 0
        %1196 = vmatprep.subr.bf16.mxu0 0
        %1197 = vmatpush1.bf16.msra.mxu0 0
        %1198 = vmatprep.mubr.bf16.mxu0 0
        %1199 = vmatmul.mubr.bf16.gmra.mrb[0].mxu0 %v1161
        %v1200 = vpop.f32.mrb[0].mxu0
        %v1201 = vadd.f32 0.0, %v1200
        %v1202 = vpop.f32.mrb[0].mxu0
        %v1203 = vpop.f32.mrb[0].mxu0
        %v1204 = vpop.f32.mrb[0].mxu0
        %1205 = vdwg.mxu0
        %v1207 = vsel %vm822, %v1062, 0
        %v1210 = vsel %vm1070, %v1066, 0
        %1212 = vmatprep.subr.bf16.mxu0 0
        %1213 = vmatpush1.bf16.msra.mxu0 %v1210
        %1214 = vmatprep.subr.bf16.mxu0 0
        %1215 = vmatpush1.bf16.msra.mxu0 0
        %1216 = vmatprep.subr.bf16.mxu0 0
        %1217 = vmatpush1.bf16.msra.mxu0 0
        %1218 = vmatprep.subr.bf16.mxu0 0
        %1219 = vmatpush1.bf16.msra.mxu0 0
        %1220 = vmatprep.subr.bf16.mxu0 0
        %1221 = vmatpush1.bf16.msra.mxu0 0
        %1222 = vmatprep.subr.bf16.mxu0 0
        %1223 = vmatpush1.bf16.msra.mxu0 0
        %1224 = vmatprep.subr.bf16.mxu0 0
        %1225 = vmatpush1.bf16.msra.mxu0 0
        %1226 = vmatprep.subr.bf16.mxu0 0
        %1227 = vmatpush1.bf16.msra.mxu0 0
        %1228 = vmatprep.subr.bf16.mxu0 0
        %1229 = vmatpush1.bf16.msra.mxu0 0
        %1230 = vmatprep.subr.bf16.mxu0 0
        %1231 = vmatpush1.bf16.msra.mxu0 0
        %1232 = vmatprep.subr.bf16.mxu0 0
        %1233 = vmatpush1.bf16.msra.mxu0 0
        %1234 = vmatprep.subr.bf16.mxu0 0
        %1235 = vmatpush1.bf16.msra.mxu0 0
        %1236 = vmatprep.subr.bf16.mxu0 0
        %1237 = vmatpush1.bf16.msra.mxu0 0
        %1238 = vmatprep.subr.bf16.mxu0 0
        %1239 = vmatpush1.bf16.msra.mxu0 0
        %1240 = vmatprep.subr.bf16.mxu0 0
        %1241 = vmatpush1.bf16.msra.mxu0 0
        %1242 = vmatprep.subr.bf16.mxu0 0
        %1243 = vmatpush1.bf16.msra.mxu0 0
        %1244 = vmatprep.mubr.bf16.mxu0 0
        %1245 = vmatmul.mubr.bf16.gmra.mrb[0].mxu0 %v1207
        %v1246 = vpop.f32.mrb[0].mxu0
        %v1247 = vadd.f32 0.0, %v1246
        %v1248 = vpop.f32.mrb[0].mxu0
        %v1249 = vpop.f32.mrb[0].mxu0
        %v1250 = vpop.f32.mrb[0].mxu0
        %1251 = vdwg.mxu0
        %1252 = vst.msk [vmem:[#allocation3] sm:$0xff] %vm822, %v1109
        %1254 = vrot.lane.b32.xlu0 %v1155, 8
        %v1255 = vpop.permute.xlu0 %1254
        %vm1257 = vcmask 130112
        %1258 = vst.msk [vmem:[#allocation3] sm:$0xff] %vm1257, %v1255
        %1260 = vrot.lane.b32.xlu0 %v1201, 16
        %v1261 = vpop.permute.xlu0 %1260
        %vm1263 = vcmask 195712
        %1264 = vst.msk [vmem:[#allocation3] sm:$0xff] %vm1263, %v1261
        %1266 = vrot.lane.b32.xlu0 %v1247, 24
        %v1267 = vpop.permute.xlu0 %1266
        %vm1269 = vcmask 261312
        %1270 = vst.msk [vmem:[#allocation3] sm:$0xff] %vm1269, %v1267
        %v1271 = vld [vmem:[#allocation3] sm:$0xff]
        %v1272 = vpack.c.bf16 %v1271, %v1271
        %v1273 = vld [vmem:[%s664] sm:$0xf]
        %v1274 = vld [vmem:[%s664 + $0x4] sm:$0xf]
        %v1275 = vld [vmem:[%s664 + $0x8] sm:$0xf]
        %v1276 = vld [vmem:[%s664 + $0xc] sm:$0xf]
        %v1277 = vld [vmem:[%s667] sm:$0x1]
        %v1279 = vlaneseq
        %v1280 = vshrl.u32 %v1279, 7
        %v1281 = vsub.s32 0, %v1280
        %v1282 = vrot.slane %v1277, %v1281
        %v1288 = vunpack.c.l.b16 %v1273
        %v1289 = vunpack.c.l.b16 %v1274
        %v1290 = vunpack.c.l.b16 %v1275
        %v1291 = vunpack.c.l.b16 %v1276
        %v1292 = vpack.c.b16 %v1289, %v1288
        %v1293 = vpack.c.b16 %v1291, %v1290
        %v1297 = vsel %vm736, %v1272, 0
        %1299 = vmatprep.subr.bf16.mxu0 0
        %1300 = vmatpush1.bf16.msra.mxu0 %v1292
        %1301 = vmatprep.subr.bf16.mxu0 0
        %1302 = vmatpush1.bf16.msra.mxu0 %v1293
        %1303 = vmatprep.subr.bf16.mxu0 0
        %1304 = vmatpush1.bf16.msra.mxu0 0
        %1305 = vmatprep.subr.bf16.mxu0 0
        %1306 = vmatpush1.bf16.msra.mxu0 0
        %1307 = vmatprep.subr.bf16.mxu0 0
        %1308 = vmatpush1.bf16.msra.mxu0 0
        %1309 = vmatprep.subr.bf16.mxu0 0
        %1310 = vmatpush1.bf16.msra.mxu0 0
        %1311 = vmatprep.subr.bf16.mxu0 0
        %1312 = vmatpush1.bf16.msra.mxu0 0
        %1313 = vmatprep.subr.bf16.mxu0 0
        %1314 = vmatpush1.bf16.msra.mxu0 0
        %1315 = vmatprep.subr.bf16.mxu0 0
        %1316 = vmatpush1.bf16.msra.mxu0 0
        %1317 = vmatprep.subr.bf16.mxu0 0
        %1318 = vmatpush1.bf16.msra.mxu0 0
        %1319 = vmatprep.subr.bf16.mxu0 0
        %1320 = vmatpush1.bf16.msra.mxu0 0
        %1321 = vmatprep.subr.bf16.mxu0 0
        %1322 = vmatpush1.bf16.msra.mxu0 0
        %1323 = vmatprep.subr.bf16.mxu0 0
        %1324 = vmatpush1.bf16.msra.mxu0 0
        %1325 = vmatprep.subr.bf16.mxu0 0
        %1326 = vmatpush1.bf16.msra.mxu0 0
        %1327 = vmatprep.subr.bf16.mxu0 0
        %1328 = vmatpush1.bf16.msra.mxu0 0
        %1329 = vmatprep.subr.bf16.mxu0 0
        %1330 = vmatpush1.bf16.msra.mxu0 0
        %1331 = vmatprep.mubr.bf16.mxu0 0
        %1332 = vmatmul.mubr.bf16.gmra.mrb[0].mxu0 %v1297
        %v1333 = vpop.f32.mrb[0].mxu0
        %v1334 = vadd.f32 %v1282, %v1333
        %v1335 = vpop.f32.mrb[0].mxu0
        %v1336 = vpop.f32.mrb[0].mxu0
        %v1337 = vpop.f32.mrb[0].mxu0
        %1338 = vdwg.mxu0
        %v1339 = vadd.f32 %v705, %v1334
        %v1340 = vld [vmem:[%s670] sm:$0x1]
        %v1341 = vld [vmem:[%s673] sm:$0x1]
        %v1342 = vsel %vm736, %v1339, 0.0
        %1343 = vadd.xlane.f32.xlu0 %v1342
        %v1344 = vpop.xlane.xlu0 %1343
        %v1345 = vrcp.pop 32.0
        %v1346 = vmul.f32 %v1344, %v1345
        %v1347 = vsub.f32 %v1339, %v1346
        %v1348 = vmul.f32 %v1347, %v1347
        %v1349 = vsel %vm736, %v1348, 0.0
        %1350 = vadd.xlane.f32.xlu0 %v1349
        %v1351 = vpop.xlane.xlu0 %1350
        %v1352 = vmul.f32 %v1351, %v1345
        %v1353 = vadd.f32 %v1352, 1e-05
        %v1354 = vrsqrt.pop %v1353
        %v1355 = vmul.f32 %v1347, %v1354
        %v1357 = vlaneseq
        %v1358 = vshrl.u32 %v1357, 7
        %v1359 = vsub.s32 0, %v1358
        %v1360 = vrot.slane %v1340, %v1359
        %v1362 = vmul.f32 %v1355, %v1360
        %v1364 = vlaneseq
        %v1365 = vshrl.u32 %v1364, 7
        %v1366 = vsub.s32 0, %v1365
        %v1367 = vrot.slane %v1341, %v1366
        %v1369 = vadd.f32 %v1362, %v1367
        %v1370 = vpack.c.bf16 %v1369, %v1369
        %v1371 = vld [vmem:[%s678] sm:$0xff]
        %v1372 = vld [vmem:[%s678 + $0x8] sm:$0xff]
        %v1373 = vld [vmem:[%s678 + $0x10] sm:$0xff]
        %v1374 = vld [vmem:[%s678 + $0x18] sm:$0xff]
        %v1375 = vld [vmem:[%s678 + $0x20] sm:$0xff]
        %v1376 = vld [vmem:[%s678 + $0x28] sm:$0xff]
        %v1377 = vld [vmem:[%s678 + $0x30] sm:$0xff]
        %v1378 = vld [vmem:[%s678 + $0x38] sm:$0xff]
        %v1379 = vld [vmem:[%s678 + $0x40] sm:$0xff]
        %v1380 = vld [vmem:[%s678 + $0x48] sm:$0xff]
        %v1381 = vld [vmem:[%s678 + $0x50] sm:$0xff]
        %v1382 = vld [vmem:[%s678 + $0x58] sm:$0xff]
        %v1383 = vld [vmem:[%s678 + $0x60] sm:$0xff]
        %v1384 = vld [vmem:[%s678 + $0x68] sm:$0xff]
        %v1385 = vld [vmem:[%s678 + $0x70] sm:$0xff]
        %v1386 = vld [vmem:[%s678 + $0x78] sm:$0xff]
        %v1387 = vld [vmem:[%s678 + $0x80] sm:$0xff]
        %v1388 = vld [vmem:[%s678 + $0x88] sm:$0xff]
        %v1389 = vld [vmem:[%s678 + $0x90] sm:$0xff]
        %v1390 = vld [vmem:[%s678 + $0x98] sm:$0xff]
        %v1391 = vld [vmem:[%s678 + $0xa0] sm:$0xff]
        %v1392 = vld [vmem:[%s678 + $0xa8] sm:$0xff]
        %v1393 = vld [vmem:[%s678 + $0xb0] sm:$0xff]
        %v1394 = vld [vmem:[%s678 + $0xb8] sm:$0xff]
        %v1395 = vld [vmem:[%s678 + $0xc0] sm:$0xff]
        %v1396 = vld [vmem:[%s678 + $0xc8] sm:$0xff]
        %v1397 = vld [vmem:[%s678 + $0xd0] sm:$0xff]
        %v1398 = vld [vmem:[%s678 + $0xd8] sm:$0xff]
        %v1399 = vld [vmem:[%s678 + $0xe0] sm:$0xff]
        %v1400 = vld [vmem:[%s678 + $0xe8] sm:$0xff]
        %v1401 = vld [vmem:[%s678 + $0xf0] sm:$0xff]
        %v1402 = vld [vmem:[%s678 + $0xf8] sm:$0xff]
        %v1403 = vld [vmem:[%s682] sm:$0xff]
        %v1404 = vld [vmem:[%s682 + $0x8] sm:$0xff]
        %v1407 = vlaneseq
        %v1408 = vshrl.u32 %v1407, 7
        %v1409 = vsub.s32 0, %v1408
        %v1410 = vrot.slane %v1403, %v1409
        %v1411 = vlaneseq
        %v1412 = vshrl.u32 %v1411, 7
        %v1413 = vsub.s32 1, %v1412
        %v1414 = vrot.slane %v1403, %v1413
        %v1415 = vlaneseq
        %v1416 = vshrl.u32 %v1415, 7
        %v1417 = vsub.s32 2, %v1416
        %v1418 = vrot.slane %v1403, %v1417
        %v1419 = vlaneseq
        %v1420 = vshrl.u32 %v1419, 7
        %v1421 = vsub.s32 3, %v1420
        %v1422 = vrot.slane %v1403, %v1421
        %v1423 = vlaneseq
        %v1424 = vshrl.u32 %v1423, 7
        %v1425 = vsub.s32 4, %v1424
        %v1426 = vrot.slane %v1403, %v1425
        %v1427 = vlaneseq
        %v1428 = vshrl.u32 %v1427, 7
        %v1429 = vsub.s32 5, %v1428
        %v1430 = vrot.slane %v1403, %v1429
        %v1431 = vlaneseq
        %v1432 = vshrl.u32 %v1431, 7
        %v1433 = vsub.s32 6, %v1432
        %v1434 = vrot.slane %v1403, %v1433
        %v1435 = vlaneseq
        %v1436 = vshrl.u32 %v1435, 7
        %v1437 = vsub.s32 7, %v1436
        %v1438 = vrot.slane %v1403, %v1437
        %v1439 = vlaneseq
        %v1440 = vshrl.u32 %v1439, 7
        %v1441 = vsub.s32 0, %v1440
        %v1442 = vrot.slane %v1404, %v1441
        %v1443 = vlaneseq
        %v1444 = vshrl.u32 %v1443, 7
        %v1445 = vsub.s32 1, %v1444
        %v1446 = vrot.slane %v1404, %v1445
        %v1447 = vlaneseq
        %v1448 = vshrl.u32 %v1447, 7
        %v1449 = vsub.s32 2, %v1448
        %v1450 = vrot.slane %v1404, %v1449
        %v1451 = vlaneseq
        %v1452 = vshrl.u32 %v1451, 7
        %v1453 = vsub.s32 3, %v1452
        %v1454 = vrot.slane %v1404, %v1453
        %v1455 = vlaneseq
        %v1456 = vshrl.u32 %v1455, 7
        %v1457 = vsub.s32 4, %v1456
        %v1458 = vrot.slane %v1404, %v1457
        %v1459 = vlaneseq
        %v1460 = vshrl.u32 %v1459, 7
        %v1461 = vsub.s32 5, %v1460
        %v1462 = vrot.slane %v1404, %v1461
        %v1463 = vlaneseq
        %v1464 = vshrl.u32 %v1463, 7
        %v1465 = vsub.s32 6, %v1464
        %v1466 = vrot.slane %v1404, %v1465
        %v1467 = vlaneseq
        %v1468 = vshrl.u32 %v1467, 7
        %v1469 = vsub.s32 7, %v1468
        %v1470 = vrot.slane %v1404, %v1469
        %v1519 = vunpack.c.l.b16 %v1371
        %v1520 = vunpack.c.h.b16 %v1371
        %v1521 = vunpack.c.l.b16 %v1372
        %v1522 = vunpack.c.h.b16 %v1372
        %v1523 = vunpack.c.l.b16 %v1373
        %v1524 = vunpack.c.h.b16 %v1373
        %v1525 = vunpack.c.l.b16 %v1374
        %v1526 = vunpack.c.h.b16 %v1374
        %v1527 = vunpack.c.l.b16 %v1375
        %v1528 = vunpack.c.h.b16 %v1375
        %v1529 = vunpack.c.l.b16 %v1376
        %v1530 = vunpack.c.h.b16 %v1376
        %v1531 = vunpack.c.l.b16 %v1377
        %v1532 = vunpack.c.h.b16 %v1377
        %v1533 = vunpack.c.l.b16 %v1378
        %v1534 = vunpack.c.h.b16 %v1378
        %v1535 = vunpack.c.l.b16 %v1379
        %v1536 = vunpack.c.h.b16 %v1379
        %v1537 = vunpack.c.l.b16 %v1380
        %v1538 = vunpack.c.h.b16 %v1380
        %v1539 = vunpack.c.l.b16 %v1381
        %v1540 = vunpack.c.h.b16 %v1381
        %v1541 = vunpack.c.l.b16 %v1382
        %v1542 = vunpack.c.h.b16 %v1382
        %v1543 = vunpack.c.l.b16 %v1383
        %v1544 = vunpack.c.h.b16 %v1383
        %v1545 = vunpack.c.l.b16 %v1384
        %v1546 = vunpack.c.h.b16 %v1384
        %v1547 = vunpack.c.l.b16 %v1385
        %v1548 = vunpack.c.h.b16 %v1385
        %v1549 = vunpack.c.l.b16 %v1386
        %v1550 = vunpack.c.h.b16 %v1386
        %v1551 = vunpack.c.l.b16 %v1387
        %v1552 = vunpack.c.h.b16 %v1387
        %v1553 = vunpack.c.l.b16 %v1388
        %v1554 = vunpack.c.h.b16 %v1388
        %v1555 = vunpack.c.l.b16 %v1389
        %v1556 = vunpack.c.h.b16 %v1389
        %v1557 = vunpack.c.l.b16 %v1390
        %v1558 = vunpack.c.h.b16 %v1390
        %v1559 = vunpack.c.l.b16 %v1391
        %v1560 = vunpack.c.h.b16 %v1391
        %v1561 = vunpack.c.l.b16 %v1392
        %v1562 = vunpack.c.h.b16 %v1392
        %v1563 = vunpack.c.l.b16 %v1393
        %v1564 = vunpack.c.h.b16 %v1393
        %v1565 = vunpack.c.l.b16 %v1394
        %v1566 = vunpack.c.h.b16 %v1394
        %v1567 = vunpack.c.l.b16 %v1395
        %v1568 = vunpack.c.h.b16 %v1395
        %v1569 = vunpack.c.l.b16 %v1396
        %v1570 = vunpack.c.h.b16 %v1396
        %v1571 = vunpack.c.l.b16 %v1397
        %v1572 = vunpack.c.h.b16 %v1397
        %v1573 = vunpack.c.l.b16 %v1398
        %v1574 = vunpack.c.h.b16 %v1398
        %v1575 = vunpack.c.l.b16 %v1399
        %v1576 = vunpack.c.h.b16 %v1399
        %v1577 = vunpack.c.l.b16 %v1400
        %v1578 = vunpack.c.h.b16 %v1400
        %v1579 = vunpack.c.l.b16 %v1401
        %v1580 = vunpack.c.h.b16 %v1401
        %v1581 = vunpack.c.l.b16 %v1402
        %v1582 = vunpack.c.h.b16 %v1402
        %v1583 = vpack.c.b16 %v1535, %v1519
        %v1584 = vpack.c.b16 %v1536, %v1520
        %v1585 = vpack.c.b16 %v1537, %v1521
        %v1586 = vpack.c.b16 %v1538, %v1522
        %v1587 = vpack.c.b16 %v1539, %v1523
        %v1588 = vpack.c.b16 %v1540, %v1524
        %v1589 = vpack.c.b16 %v1541, %v1525
        %v1590 = vpack.c.b16 %v1542, %v1526
        %v1591 = vpack.c.b16 %v1543, %v1527
        %v1592 = vpack.c.b16 %v1544, %v1528
        %v1593 = vpack.c.b16 %v1545, %v1529
        %v1594 = vpack.c.b16 %v1546, %v1530
        %v1595 = vpack.c.b16 %v1547, %v1531
        %v1596 = vpack.c.b16 %v1548, %v1532
        %v1597 = vpack.c.b16 %v1549, %v1533
        %v1598 = vpack.c.b16 %v1550, %v1534
        %v1599 = vpack.c.b16 %v1567, %v1551
        %v1600 = vpack.c.b16 %v1568, %v1552
        %v1601 = vpack.c.b16 %v1569, %v1553
        %v1602 = vpack.c.b16 %v1570, %v1554
        %v1603 = vpack.c.b16 %v1571, %v1555
        %v1604 = vpack.c.b16 %v1572, %v1556
        %v1605 = vpack.c.b16 %v1573, %v1557
        %v1606 = vpack.c.b16 %v1574, %v1558
        %v1607 = vpack.c.b16 %v1575, %v1559
        %v1608 = vpack.c.b16 %v1576, %v1560
        %v1609 = vpack.c.b16 %v1577, %v1561
        %v1610 = vpack.c.b16 %v1578, %v1562
        %v1611 = vpack.c.b16 %v1579, %v1563
        %v1612 = vpack.c.b16 %v1580, %v1564
        %v1613 = vpack.c.b16 %v1581, %v1565
        %v1614 = vpack.c.b16 %v1582, %v1566
        %v1648 = vsel %vm736, %v1370, 0
        %1650 = vmatprep.subr.bf16.mxu0 %v1584
        %1651 = vmatpush1.bf16.msra.mxu0 %v1583
        %1652 = vmatprep.subr.bf16.mxu0 %v1600
        %1653 = vmatpush1.bf16.msra.mxu0 %v1599
        %1654 = vmatprep.subr.bf16.mxu0 0
        %1655 = vmatpush1.bf16.msra.mxu0 0
        %1656 = vmatprep.subr.bf16.mxu0 0
        %1657 = vmatpush1.bf16.msra.mxu0 0
        %1658 = vmatprep.subr.bf16.mxu0 0
        %1659 = vmatpush1.bf16.msra.mxu0 0
        %1660 = vmatprep.subr.bf16.mxu0 0
        %1661 = vmatpush1.bf16.msra.mxu0 0
        %1662 = vmatprep.subr.bf16.mxu0 0
        %1663 = vmatpush1.bf16.msra.mxu0 0
        %1664 = vmatprep.subr.bf16.mxu0 0
        %1665 = vmatpush1.bf16.msra.mxu0 0
        %1666 = vmatprep.subr.bf16.mxu0 0
        %1667 = vmatpush1.bf16.msra.mxu0 0
        %1668 = vmatprep.subr.bf16.mxu0 0
        %1669 = vmatpush1.bf16.msra.mxu0 0
        %1670 = vmatprep.subr.bf16.mxu0 0
        %1671 = vmatpush1.bf16.msra.mxu0 0
        %1672 = vmatprep.subr.bf16.mxu0 0
        %1673 = vmatpush1.bf16.msra.mxu0 0
        %1674 = vmatprep.subr.bf16.mxu0 0
        %1675 = vmatpush1.bf16.msra.mxu0 0
        %1676 = vmatprep.subr.bf16.mxu0 0
        %1677 = vmatpush1.bf16.msra.mxu0 0
        %1678 = vmatprep.subr.bf16.mxu0 0
        %1679 = vmatpush1.bf16.msra.mxu0 0
        %1680 = vmatprep.subr.bf16.mxu0 0
        %1681 = vmatpush1.bf16.msra.mxu0 0
        %1682 = vmatprep.mubr.bf16.mxu0 0
        %1683 = vmatmul.mubr.bf16.gmra.mrb[0].mxu0 %v1648
        %v1684 = vpop.f32.mrb[0].mxu0
        %v1685 = vadd.f32 %v1410, %v1684
        %v1686 = vpop.f32.mrb[0].mxu0
        %v1687 = vadd.f32 %v1414, %v1686
        %v1688 = vpop.f32.mrb[0].mxu0
        %v1689 = vpop.f32.mrb[0].mxu0
        %1690 = vdwg.mxu0
        %1691 = vmatprep.subr.bf16.mxu0 %v1586
        %1692 = vmatpush1.bf16.msra.mxu0 %v1585
        %1693 = vmatprep.subr.bf16.mxu0 %v1602
        %1694 = vmatpush1.bf16.msra.mxu0 %v1601
        %1695 = vmatprep.subr.bf16.mxu0 0
        %1696 = vmatpush1.bf16.msra.mxu0 0
        %1697 = vmatprep.subr.bf16.mxu0 0
        %1698 = vmatpush1.bf16.msra.mxu0 0
        %1699 = vmatprep.subr.bf16.mxu0 0
        %1700 = vmatpush1.bf16.msra.mxu0 0
        %1701 = vmatprep.subr.bf16.mxu0 0
        %1702 = vmatpush1.bf16.msra.mxu0 0
        %1703 = vmatprep.subr.bf16.mxu0 0
        %1704 = vmatpush1.bf16.msra.mxu0 0
        %1705 = vmatprep.subr.bf16.mxu0 0
        %1706 = vmatpush1.bf16.msra.mxu0 0
        %1707 = vmatprep.subr.bf16.mxu0 0
        %1708 = vmatpush1.bf16.msra.mxu0 0
        %1709 = vmatprep.subr.bf16.mxu0 0
        %1710 = vmatpush1.bf16.msra.mxu0 0
        %1711 = vmatprep.subr.bf16.mxu0 0
        %1712 = vmatpush1.bf16.msra.mxu0 0
        %1713 = vmatprep.subr.bf16.mxu0 0
        %1714 = vmatpush1.bf16.msra.mxu0 0
        %1715 = vmatprep.subr.bf16.mxu0 0
        %1716 = vmatpush1.bf16.msra.mxu0 0
        %1717 = vmatprep.subr.bf16.mxu0 0
        %1718 = vmatpush1.bf16.msra.mxu0 0
        %1719 = vmatprep.subr.bf16.mxu0 0
        %1720 = vmatpush1.bf16.msra.mxu0 0
        %1721 = vmatprep.subr.bf16.mxu0 0
        %1722 = vmatpush1.bf16.msra.mxu0 0
        %1723 = vmatprep.mubr.bf16.mxu0 0
        %1724 = vmatmul.mubr.bf16.gmra.mrb[0].mxu0 %v1648
        %v1725 = vpop.f32.mrb[0].mxu0
        %v1726 = vadd.f32 %v1418, %v1725
        %v1727 = vpop.f32.mrb[0].mxu0
        %v1728 = vadd.f32 %v1422, %v1727
        %v1729 = vpop.f32.mrb[0].mxu0
        %v1730 = vpop.f32.mrb[0].mxu0
        %1731 = vdwg.mxu0
        %1732 = vmatprep.subr.bf16.mxu0 %v1588
        %1733 = vmatpush1.bf16.msra.mxu0 %v1587
        %1734 = vmatprep.subr.bf16.mxu0 %v1604
        %1735 = vmatpush1.bf16.msra.mxu0 %v1603
        %1736 = vmatprep.subr.bf16.mxu0 0
        %1737 = vmatpush1.bf16.msra.mxu0 0
        %1738 = vmatprep.subr.bf16.mxu0 0
        %1739 = vmatpush1.bf16.msra.mxu0 0
        %1740 = vmatprep.subr.bf16.mxu0 0
        %1741 = vmatpush1.bf16.msra.mxu0 0
        %1742 = vmatprep.subr.bf16.mxu0 0
        %1743 = vmatpush1.bf16.msra.mxu0 0
        %1744 = vmatprep.subr.bf16.mxu0 0
        %1745 = vmatpush1.bf16.msra.mxu0 0
        %1746 = vmatprep.subr.bf16.mxu0 0
        %1747 = vmatpush1.bf16.msra.mxu0 0
        %1748 = vmatprep.subr.bf16.mxu0 0
        %1749 = vmatpush1.bf16.msra.mxu0 0
        %1750 = vmatprep.subr.bf16.mxu0 0
        %1751 = vmatpush1.bf16.msra.mxu0 0
        %1752 = vmatprep.subr.bf16.mxu0 0
        %1753 = vmatpush1.bf16.msra.mxu0 0
        %1754 = vmatprep.subr.bf16.mxu0 0
        %1755 = vmatpush1.bf16.msra.mxu0 0
        %1756 = vmatprep.subr.bf16.mxu0 0
        %1757 = vmatpush1.bf16.msra.mxu0 0
        %1758 = vmatprep.subr.bf16.mxu0 0
        %1759 = vmatpush1.bf16.msra.mxu0 0
        %1760 = vmatprep.subr.bf16.mxu0 0
        %1761 = vmatpush1.bf16.msra.mxu0 0
        %1762 = vmatprep.subr.bf16.mxu0 0
        %1763 = vmatpush1.bf16.msra.mxu0 0
        %1764 = vmatprep.mubr.bf16.mxu0 0
        %1765 = vmatmul.mubr.bf16.gmra.mrb[0].mxu0 %v1648
        %v1766 = vpop.f32.mrb[0].mxu0
        %v1767 = vadd.f32 %v1426, %v1766
        %v1768 = vpop.f32.mrb[0].mxu0
        %v1769 = vadd.f32 %v1430, %v1768
        %v1770 = vpop.f32.mrb[0].mxu0
        %v1771 = vpop.f32.mrb[0].mxu0
        %1772 = vdwg.mxu0
        %1773 = vmatprep.subr.bf16.mxu0 %v1590
        %1774 = vmatpush1.bf16.msra.mxu0 %v1589
        %1775 = vmatprep.subr.bf16.mxu0 %v1606
        %1776 = vmatpush1.bf16.msra.mxu0 %v1605
        %1777 = vmatprep.subr.bf16.mxu0 0
        %1778 = vmatpush1.bf16.msra.mxu0 0
        %1779 = vmatprep.subr.bf16.mxu0 0
        %1780 = vmatpush1.bf16.msra.mxu0 0
        %1781 = vmatprep.subr.bf16.mxu0 0
        %1782 = vmatpush1.bf16.msra.mxu0 0
        %1783 = vmatprep.subr.bf16.mxu0 0
        %1784 = vmatpush1.bf16.msra.mxu0 0
        %1785 = vmatprep.subr.bf16.mxu0 0
        %1786 = vmatpush1.bf16.msra.mxu0 0
        %1787 = vmatprep.subr.bf16.mxu0 0
        %1788 = vmatpush1.bf16.msra.mxu0 0
        %1789 = vmatprep.subr.bf16.mxu0 0
        %1790 = vmatpush1.bf16.msra.mxu0 0
        %1791 = vmatprep.subr.bf16.mxu0 0
        %1792 = vmatpush1.bf16.msra.mxu0 0
        %1793 = vmatprep.subr.bf16.mxu0 0
        %1794 = vmatpush1.bf16.msra.mxu0 0
        %1795 = vmatprep.subr.bf16.mxu0 0
        %1796 = vmatpush1.bf16.msra.mxu0 0
        %1797 = vmatprep.subr.bf16.mxu0 0
        %1798 = vmatpush1.bf16.msra.mxu0 0
        %1799 = vmatprep.subr.bf16.mxu0 0
        %1800 = vmatpush1.bf16.msra.mxu0 0
        %1801 = vmatprep.subr.bf16.mxu0 0
        %1802 = vmatpush1.bf16.msra.mxu0 0
        %1803 = vmatprep.subr.bf16.mxu0 0
        %1804 = vmatpush1.bf16.msra.mxu0 0
        %1805 = vmatprep.mubr.bf16.mxu0 0
        %1806 = vmatmul.mubr.bf16.gmra.mrb[0].mxu0 %v1648
        %v1807 = vpop.f32.mrb[0].mxu0
        %v1808 = vadd.f32 %v1434, %v1807
        %v1809 = vpop.f32.mrb[0].mxu0
        %v1810 = vadd.f32 %v1438, %v1809
        %v1811 = vpop.f32.mrb[0].mxu0
        %v1812 = vpop.f32.mrb[0].mxu0
        %1813 = vdwg.mxu0
        %1814 = vmatprep.subr.bf16.mxu0 %v1592
        %1815 = vmatpush1.bf16.msra.mxu0 %v1591
        %1816 = vmatprep.subr.bf16.mxu0 %v1608
        %1817 = vmatpush1.bf16.msra.mxu0 %v1607
        %1818 = vmatprep.subr.bf16.mxu0 0
        %1819 = vmatpush1.bf16.msra.mxu0 0
        %1820 = vmatprep.subr.bf16.mxu0 0
        %1821 = vmatpush1.bf16.msra.mxu0 0
        %1822 = vmatprep.subr.bf16.mxu0 0
        %1823 = vmatpush1.bf16.msra.mxu0 0
        %1824 = vmatprep.subr.bf16.mxu0 0
        %1825 = vmatpush1.bf16.msra.mxu0 0
        %1826 = vmatprep.subr.bf16.mxu0 0
        %1827 = vmatpush1.bf16.msra.mxu0 0
        %1828 = vmatprep.subr.bf16.mxu0 0
        %1829 = vmatpush1.bf16.msra.mxu0 0
        %1830 = vmatprep.subr.bf16.mxu0 0
        %1831 = vmatpush1.bf16.msra.mxu0 0
        %1832 = vmatprep.subr.bf16.mxu0 0
        %1833 = vmatpush1.bf16.msra.mxu0 0
        %1834 = vmatprep.subr.bf16.mxu0 0
        %1835 = vmatpush1.bf16.msra.mxu0 0
        %1836 = vmatprep.subr.bf16.mxu0 0
        %1837 = vmatpush1.bf16.msra.mxu0 0
        %1838 = vmatprep.subr.bf16.mxu0 0
        %1839 = vmatpush1.bf16.msra.mxu0 0
        %1840 = vmatprep.subr.bf16.mxu0 0
        %1841 = vmatpush1.bf16.msra.mxu0 0
        %1842 = vmatprep.subr.bf16.mxu0 0
        %1843 = vmatpush1.bf16.msra.mxu0 0
        %1844 = vmatprep.subr.bf16.mxu0 0
        %1845 = vmatpush1.bf16.msra.mxu0 0
        %1846 = vmatprep.mubr.bf16.mxu0 0
        %1847 = vmatmul.mubr.bf16.gmra.mrb[0].mxu0 %v1648
        %v1848 = vpop.f32.mrb[0].mxu0
        %v1849 = vadd.f32 %v1442, %v1848
        %v1850 = vpop.f32.mrb[0].mxu0
        %v1851 = vadd.f32 %v1446, %v1850
        %v1852 = vpop.f32.mrb[0].mxu0
        %v1853 = vpop.f32.mrb[0].mxu0
        %1854 = vdwg.mxu0
        %1855 = vmatprep.subr.bf16.mxu0 %v1594
        %1856 = vmatpush1.bf16.msra.mxu0 %v1593
        %1857 = vmatprep.subr.bf16.mxu0 %v1610
        %1858 = vmatpush1.bf16.msra.mxu0 %v1609
        %1859 = vmatprep.subr.bf16.mxu0 0
        %1860 = vmatpush1.bf16.msra.mxu0 0
        %1861 = vmatprep.subr.bf16.mxu0 0
        %1862 = vmatpush1.bf16.msra.mxu0 0
        %1863 = vmatprep.subr.bf16.mxu0 0
        %1864 = vmatpush1.bf16.msra.mxu0 0
        %1865 = vmatprep.subr.bf16.mxu0 0
        %1866 = vmatpush1.bf16.msra.mxu0 0
        %1867 = vmatprep.subr.bf16.mxu0 0
        %1868 = vmatpush1.bf16.msra.mxu0 0
        %1869 = vmatprep.subr.bf16.mxu0 0
        %1870 = vmatpush1.bf16.msra.mxu0 0
        %1871 = vmatprep.subr.bf16.mxu0 0
        %1872 = vmatpush1.bf16.msra.mxu0 0
        %1873 = vmatprep.subr.bf16.mxu0 0
        %1874 = vmatpush1.bf16.msra.mxu0 0
        %1875 = vmatprep.subr.bf16.mxu0 0
        %1876 = vmatpush1.bf16.msra.mxu0 0
        %1877 = vmatprep.subr.bf16.mxu0 0
        %1878 = vmatpush1.bf16.msra.mxu0 0
        %1879 = vmatprep.subr.bf16.mxu0 0
        %1880 = vmatpush1.bf16.msra.mxu0 0
        %1881 = vmatprep.subr.bf16.mxu0 0
        %1882 = vmatpush1.bf16.msra.mxu0 0
        %1883 = vmatprep.subr.bf16.mxu0 0
        %1884 = vmatpush1.bf16.msra.mxu0 0
        %1885 = vmatprep.subr.bf16.mxu0 0
        %1886 = vmatpush1.bf16.msra.mxu0 0
        %1887 = vmatprep.mubr.bf16.mxu0 0
        %1888 = vmatmul.mubr.bf16.gmra.mrb[0].mxu0 %v1648
        %v1889 = vpop.f32.mrb[0].mxu0
        %v1890 = vadd.f32 %v1450, %v1889
        %v1891 = vpop.f32.mrb[0].mxu0
        %v1892 = vadd.f32 %v1454, %v1891
        %v1893 = vpop.f32.mrb[0].mxu0
        %v1894 = vpop.f32.mrb[0].mxu0
        %1895 = vdwg.mxu0
        %1896 = vmatprep.subr.bf16.mxu0 %v1596
        %1897 = vmatpush1.bf16.msra.mxu0 %v1595
        %1898 = vmatprep.subr.bf16.mxu0 %v1612
        %1899 = vmatpush1.bf16.msra.mxu0 %v1611
        %1900 = vmatprep.subr.bf16.mxu0 0
        %1901 = vmatpush1.bf16.msra.mxu0 0
        %1902 = vmatprep.subr.bf16.mxu0 0
        %1903 = vmatpush1.bf16.msra.mxu0 0
        %1904 = vmatprep.subr.bf16.mxu0 0
        %1905 = vmatpush1.bf16.msra.mxu0 0
        %1906 = vmatprep.subr.bf16.mxu0 0
        %1907 = vmatpush1.bf16.msra.mxu0 0
        %1908 = vmatprep.subr.bf16.mxu0 0
        %1909 = vmatpush1.bf16.msra.mxu0 0
        %1910 = vmatprep.subr.bf16.mxu0 0
        %1911 = vmatpush1.bf16.msra.mxu0 0
        %1912 = vmatprep.subr.bf16.mxu0 0
        %1913 = vmatpush1.bf16.msra.mxu0 0
        %1914 = vmatprep.subr.bf16.mxu0 0
        %1915 = vmatpush1.bf16.msra.mxu0 0
        %1916 = vmatprep.subr.bf16.mxu0 0
        %1917 = vmatpush1.bf16.msra.mxu0 0
        %1918 = vmatprep.subr.bf16.mxu0 0
        %1919 = vmatpush1.bf16.msra.mxu0 0
        %1920 = vmatprep.subr.bf16.mxu0 0
        %1921 = vmatpush1.bf16.msra.mxu0 0
        %1922 = vmatprep.subr.bf16.mxu0 0
        %1923 = vmatpush1.bf16.msra.mxu0 0
        %1924 = vmatprep.subr.bf16.mxu0 0
        %1925 = vmatpush1.bf16.msra.mxu0 0
        %1926 = vmatprep.subr.bf16.mxu0 0
        %1927 = vmatpush1.bf16.msra.mxu0 0
        %1928 = vmatprep.mubr.bf16.mxu0 0
        %1929 = vmatmul.mubr.bf16.gmra.mrb[0].mxu0 %v1648
        %v1930 = vpop.f32.mrb[0].mxu0
        %v1931 = vadd.f32 %v1458, %v1930
        %v1932 = vpop.f32.mrb[0].mxu0
        %v1933 = vadd.f32 %v1462, %v1932
        %v1934 = vpop.f32.mrb[0].mxu0
        %v1935 = vpop.f32.mrb[0].mxu0
        %1936 = vdwg.mxu0
        %1937 = vmatprep.subr.bf16.mxu0 %v1598
        %1938 = vmatpush1.bf16.msra.mxu0 %v1597
        %1939 = vmatprep.subr.bf16.mxu0 %v1614
        %1940 = vmatpush1.bf16.msra.mxu0 %v1613
        %1941 = vmatprep.subr.bf16.mxu0 0
        %1942 = vmatpush1.bf16.msra.mxu0 0
        %1943 = vmatprep.subr.bf16.mxu0 0
        %1944 = vmatpush1.bf16.msra.mxu0 0
        %1945 = vmatprep.subr.bf16.mxu0 0
        %1946 = vmatpush1.bf16.msra.mxu0 0
        %1947 = vmatprep.subr.bf16.mxu0 0
        %1948 = vmatpush1.bf16.msra.mxu0 0
        %1949 = vmatprep.subr.bf16.mxu0 0
        %1950 = vmatpush1.bf16.msra.mxu0 0
        %1951 = vmatprep.subr.bf16.mxu0 0
        %1952 = vmatpush1.bf16.msra.mxu0 0
        %1953 = vmatprep.subr.bf16.mxu0 0
        %1954 = vmatpush1.bf16.msra.mxu0 0
        %1955 = vmatprep.subr.bf16.mxu0 0
        %1956 = vmatpush1.bf16.msra.mxu0 0
        %1957 = vmatprep.subr.bf16.mxu0 0
        %1958 = vmatpush1.bf16.msra.mxu0 0
        %1959 = vmatprep.subr.bf16.mxu0 0
        %1960 = vmatpush1.bf16.msra.mxu0 0
        %1961 = vmatprep.subr.bf16.mxu0 0
        %1962 = vmatpush1.bf16.msra.mxu0 0
        %1963 = vmatprep.subr.bf16.mxu0 0
        %1964 = vmatpush1.bf16.msra.mxu0 0
        %1965 = vmatprep.subr.bf16.mxu0 0
        %1966 = vmatpush1.bf16.msra.mxu0 0
        %1967 = vmatprep.subr.bf16.mxu0 0
        %1968 = vmatpush1.bf16.msra.mxu0 0
        %1969 = vmatprep.mubr.bf16.mxu0 0
        %1970 = vmatmul.mubr.bf16.gmra.mrb[0].mxu0 %v1648
        %v1971 = vpop.f32.mrb[0].mxu0
        %v1972 = vadd.f32 %v1466, %v1971
        %v1973 = vpop.f32.mrb[0].mxu0
        %v1974 = vadd.f32 %v1470, %v1973
        %v1975 = vpop.f32.mrb[0].mxu0
        %v1976 = vpop.f32.mrb[0].mxu0
        %1977 = vdwg.mxu0
        %v1978 = vmax.f32 %v1685, 0.0
        %v1979 = vmax.f32 %v1687, 0.0
        %v1980 = vmax.f32 %v1726, 0.0
        %v1981 = vmax.f32 %v1728, 0.0
        %v1982 = vmax.f32 %v1767, 0.0
        %v1983 = vmax.f32 %v1769, 0.0
        %v1984 = vmax.f32 %v1808, 0.0
        %v1985 = vmax.f32 %v1810, 0.0
        %v1986 = vmax.f32 %v1849, 0.0
        %v1987 = vmax.f32 %v1851, 0.0
        %v1988 = vmax.f32 %v1890, 0.0
        %v1989 = vmax.f32 %v1892, 0.0
        %v1990 = vmax.f32 %v1931, 0.0
        %v1991 = vmax.f32 %v1933, 0.0
        %v1992 = vmax.f32 %v1972, 0.0
        %v1993 = vmax.f32 %v1974, 0.0
        %v1994 = vpack.c.bf16 %v1978, %v1978
        %v1995 = vpack.c.bf16 %v1979, %v1979
        %v1996 = vpack.c.bf16 %v1980, %v1980
        %v1997 = vpack.c.bf16 %v1981, %v1981
        %v1998 = vpack.c.bf16 %v1982, %v1982
        %v1999 = vpack.c.bf16 %v1983, %v1983
        %v2000 = vpack.c.bf16 %v1984, %v1984
        %v2001 = vpack.c.bf16 %v1985, %v1985
        %v2002 = vpack.c.bf16 %v1986, %v1986
        %v2003 = vpack.c.bf16 %v1987, %v1987
        %v2004 = vpack.c.bf16 %v1988, %v1988
        %v2005 = vpack.c.bf16 %v1989, %v1989
        %v2006 = vpack.c.bf16 %v1990, %v1990
        %v2007 = vpack.c.bf16 %v1991, %v1991
        %v2008 = vpack.c.bf16 %v1992, %v1992
        %v2009 = vpack.c.bf16 %v1993, %v1993
        %v2010 = vld [vmem:[%s687] sm:$0xf]
        %v2011 = vld [vmem:[%s687 + $0x4] sm:$0xf]
        %v2012 = vld [vmem:[%s687 + $0x8] sm:$0xf]
        %v2013 = vld [vmem:[%s687 + $0xc] sm:$0xf]
        %v2014 = vld [vmem:[%s687 + $0x10] sm:$0xf]
        %v2015 = vld [vmem:[%s687 + $0x14] sm:$0xf]
        %v2016 = vld [vmem:[%s687 + $0x18] sm:$0xf]
        %v2017 = vld [vmem:[%s687 + $0x1c] sm:$0xf]
        %v2018 = vld [vmem:[%s687 + $0x20] sm:$0xf]
        %v2019 = vld [vmem:[%s687 + $0x24] sm:$0xf]
        %v2020 = vld [vmem:[%s687 + $0x28] sm:$0xf]
        %v2021 = vld [vmem:[%s687 + $0x2c] sm:$0xf]
        %v2022 = vld [vmem:[%s687 + $0x30] sm:$0xf]
        %v2023 = vld [vmem:[%s687 + $0x34] sm:$0xf]
        %v2024 = vld [vmem:[%s687 + $0x38] sm:$0xf]
        %v2025 = vld [vmem:[%s687 + $0x3c] sm:$0xf]
        %v2026 = vld [vmem:[%s687 + $0x40] sm:$0xf]
        %v2027 = vld [vmem:[%s687 + $0x44] sm:$0xf]
        %v2028 = vld [vmem:[%s687 + $0x48] sm:$0xf]
        %v2029 = vld [vmem:[%s687 + $0x4c] sm:$0xf]
        %v2030 = vld [vmem:[%s687 + $0x50] sm:$0xf]
        %v2031 = vld [vmem:[%s687 + $0x54] sm:$0xf]
        %v2032 = vld [vmem:[%s687 + $0x58] sm:$0xf]
        %v2033 = vld [vmem:[%s687 + $0x5c] sm:$0xf]
        %v2034 = vld [vmem:[%s687 + $0x60] sm:$0xf]
        %v2035 = vld [vmem:[%s687 + $0x64] sm:$0xf]
        %v2036 = vld [vmem:[%s687 + $0x68] sm:$0xf]
        %v2037 = vld [vmem:[%s687 + $0x6c] sm:$0xf]
        %v2038 = vld [vmem:[%s687 + $0x70] sm:$0xf]
        %v2039 = vld [vmem:[%s687 + $0x74] sm:$0xf]
        %v2040 = vld [vmem:[%s687 + $0x78] sm:$0xf]
        %v2041 = vld [vmem:[%s687 + $0x7c] sm:$0xf]
        %v2042 = vld [vmem:[%s687 + $0x80] sm:$0xf]
        %v2043 = vld [vmem:[%s687 + $0x84] sm:$0xf]
        %v2044 = vld [vmem:[%s687 + $0x88] sm:$0xf]
        %v2045 = vld [vmem:[%s687 + $0x8c] sm:$0xf]
        %v2046 = vld [vmem:[%s687 + $0x90] sm:$0xf]
        %v2047 = vld [vmem:[%s687 + $0x94] sm:$0xf]
        %v2048 = vld [vmem:[%s687 + $0x98] sm:$0xf]
        %v2049 = vld [vmem:[%s687 + $0x9c] sm:$0xf]
        %v2050 = vld [vmem:[%s687 + $0xa0] sm:$0xf]
        %v2051 = vld [vmem:[%s687 + $0xa4] sm:$0xf]
        %v2052 = vld [vmem:[%s687 + $0xa8] sm:$0xf]
        %v2053 = vld [vmem:[%s687 + $0xac] sm:$0xf]
        %v2054 = vld [vmem:[%s687 + $0xb0] sm:$0xf]
        %v2055 = vld [vmem:[%s687 + $0xb4] sm:$0xf]
        %v2056 = vld [vmem:[%s687 + $0xb8] sm:$0xf]
        %v2057 = vld [vmem:[%s687 + $0xbc] sm:$0xf]
        %v2058 = vld [vmem:[%s687 + $0xc0] sm:$0xf]
        %v2059 = vld [vmem:[%s687 + $0xc4] sm:$0xf]
        %v2060 = vld [vmem:[%s687 + $0xc8] sm:$0xf]
        %v2061 = vld [vmem:[%s687 + $0xcc] sm:$0xf]
        %v2062 = vld [vmem:[%s687 + $0xd0] sm:$0xf]
        %v2063 = vld [vmem:[%s687 + $0xd4] sm:$0xf]
        %v2064 = vld [vmem:[%s687 + $0xd8] sm:$0xf]
        %v2065 = vld [vmem:[%s687 + $0xdc] sm:$0xf]
        %v2066 = vld [vmem:[%s687 + $0xe0] sm:$0xf]
        %v2067 = vld [vmem:[%s687 + $0xe4] sm:$0xf]
        %v2068 = vld [vmem:[%s687 + $0xe8] sm:$0xf]
        %v2069 = vld [vmem:[%s687 + $0xec] sm:$0xf]
        %v2070 = vld [vmem:[%s687 + $0xf0] sm:$0xf]
        %v2071 = vld [vmem:[%s687 + $0xf4] sm:$0xf]
        %v2072 = vld [vmem:[%s687 + $0xf8] sm:$0xf]
        %v2073 = vld [vmem:[%s687 + $0xfc] sm:$0xf]
        %v2074 = vld [vmem:[%s687 + $0x100] sm:$0xf]
        %v2075 = vld [vmem:[%s687 + $0x104] sm:$0xf]
        %v2076 = vld [vmem:[%s687 + $0x108] sm:$0xf]
        %v2077 = vld [vmem:[%s687 + $0x10c] sm:$0xf]
        %v2078 = vld [vmem:[%s687 + $0x110] sm:$0xf]
        %v2079 = vld [vmem:[%s687 + $0x114] sm:$0xf]
        %v2080 = vld [vmem:[%s687 + $0x118] sm:$0xf]
        %v2081 = vld [vmem:[%s687 + $0x11c] sm:$0xf]
        %v2082 = vld [vmem:[%s687 + $0x120] sm:$0xf]
        %v2083 = vld [vmem:[%s687 + $0x124] sm:$0xf]
        %v2084 = vld [vmem:[%s687 + $0x128] sm:$0xf]
        %v2085 = vld [vmem:[%s687 + $0x12c] sm:$0xf]
        %v2086 = vld [vmem:[%s687 + $0x130] sm:$0xf]
        %v2087 = vld [vmem:[%s687 + $0x134] sm:$0xf]
        %v2088 = vld [vmem:[%s687 + $0x138] sm:$0xf]
        %v2089 = vld [vmem:[%s687 + $0x13c] sm:$0xf]
        %v2090 = vld [vmem:[%s687 + $0x140] sm:$0xf]
        %v2091 = vld [vmem:[%s687 + $0x144] sm:$0xf]
        %v2092 = vld [vmem:[%s687 + $0x148] sm:$0xf]
        %v2093 = vld [vmem:[%s687 + $0x14c] sm:$0xf]
        %v2094 = vld [vmem:[%s687 + $0x150] sm:$0xf]
        %v2095 = vld [vmem:[%s687 + $0x154] sm:$0xf]
        %v2096 = vld [vmem:[%s687 + $0x158] sm:$0xf]
        %v2097 = vld [vmem:[%s687 + $0x15c] sm:$0xf]
        %v2098 = vld [vmem:[%s687 + $0x160] sm:$0xf]
        %v2099 = vld [vmem:[%s687 + $0x164] sm:$0xf]
        %v2100 = vld [vmem:[%s687 + $0x168] sm:$0xf]
        %v2101 = vld [vmem:[%s687 + $0x16c] sm:$0xf]
        %v2102 = vld [vmem:[%s687 + $0x170] sm:$0xf]
        %v2103 = vld [vmem:[%s687 + $0x174] sm:$0xf]
        %v2104 = vld [vmem:[%s687 + $0x178] sm:$0xf]
        %v2105 = vld [vmem:[%s687 + $0x17c] sm:$0xf]
        %v2106 = vld [vmem:[%s687 + $0x180] sm:$0xf]
        %v2107 = vld [vmem:[%s687 + $0x184] sm:$0xf]
        %v2108 = vld [vmem:[%s687 + $0x188] sm:$0xf]
        %v2109 = vld [vmem:[%s687 + $0x18c] sm:$0xf]
        %v2110 = vld [vmem:[%s687 + $0x190] sm:$0xf]
        %v2111 = vld [vmem:[%s687 + $0x194] sm:$0xf]
        %v2112 = vld [vmem:[%s687 + $0x198] sm:$0xf]
        %v2113 = vld [vmem:[%s687 + $0x19c] sm:$0xf]
        %v2114 = vld [vmem:[%s687 + $0x1a0] sm:$0xf]
        %v2115 = vld [vmem:[%s687 + $0x1a4] sm:$0xf]
        %v2116 = vld [vmem:[%s687 + $0x1a8] sm:$0xf]
        %v2117 = vld [vmem:[%s687 + $0x1ac] sm:$0xf]
        %v2118 = vld [vmem:[%s687 + $0x1b0] sm:$0xf]
        %v2119 = vld [vmem:[%s687 + $0x1b4] sm:$0xf]
        %v2120 = vld [vmem:[%s687 + $0x1b8] sm:$0xf]
        %v2121 = vld [vmem:[%s687 + $0x1bc] sm:$0xf]
        %v2122 = vld [vmem:[%s687 + $0x1c0] sm:$0xf]
        %v2123 = vld [vmem:[%s687 + $0x1c4] sm:$0xf]
        %v2124 = vld [vmem:[%s687 + $0x1c8] sm:$0xf]
        %v2125 = vld [vmem:[%s687 + $0x1cc] sm:$0xf]
        %v2126 = vld [vmem:[%s687 + $0x1d0] sm:$0xf]
        %v2127 = vld [vmem:[%s687 + $0x1d4] sm:$0xf]
        %v2128 = vld [vmem:[%s687 + $0x1d8] sm:$0xf]
        %v2129 = vld [vmem:[%s687 + $0x1dc] sm:$0xf]
        %v2130 = vld [vmem:[%s687 + $0x1e0] sm:$0xf]
        %v2131 = vld [vmem:[%s687 + $0x1e4] sm:$0xf]
        %v2132 = vld [vmem:[%s687 + $0x1e8] sm:$0xf]
        %v2133 = vld [vmem:[%s687 + $0x1ec] sm:$0xf]
        %v2134 = vld [vmem:[%s687 + $0x1f0] sm:$0xf]
        %v2135 = vld [vmem:[%s687 + $0x1f4] sm:$0xf]
        %v2136 = vld [vmem:[%s687 + $0x1f8] sm:$0xf]
        %v2137 = vld [vmem:[%s687 + $0x1fc] sm:$0xf]
        %v2138 = vld [vmem:[%s687 + $0x200] sm:$0xf]
        %v2139 = vld [vmem:[%s687 + $0x204] sm:$0xf]
        %v2140 = vld [vmem:[%s687 + $0x208] sm:$0xf]
        %v2141 = vld [vmem:[%s687 + $0x20c] sm:$0xf]
        %v2142 = vld [vmem:[%s687 + $0x210] sm:$0xf]
        %v2143 = vld [vmem:[%s687 + $0x214] sm:$0xf]
        %v2144 = vld [vmem:[%s687 + $0x218] sm:$0xf]
        %v2145 = vld [vmem:[%s687 + $0x21c] sm:$0xf]
        %v2146 = vld [vmem:[%s687 + $0x220] sm:$0xf]
        %v2147 = vld [vmem:[%s687 + $0x224] sm:$0xf]
        %v2148 = vld [vmem:[%s687 + $0x228] sm:$0xf]
        %v2149 = vld [vmem:[%s687 + $0x22c] sm:$0xf]
        %v2150 = vld [vmem:[%s687 + $0x230] sm:$0xf]
        %v2151 = vld [vmem:[%s687 + $0x234] sm:$0xf]
        %v2152 = vld [vmem:[%s687 + $0x238] sm:$0xf]
        %v2153 = vld [vmem:[%s687 + $0x23c] sm:$0xf]
        %v2154 = vld [vmem:[%s687 + $0x240] sm:$0xf]
        %v2155 = vld [vmem:[%s687 + $0x244] sm:$0xf]
        %v2156 = vld [vmem:[%s687 + $0x248] sm:$0xf]
        %v2157 = vld [vmem:[%s687 + $0x24c] sm:$0xf]
        %v2158 = vld [vmem:[%s687 + $0x250] sm:$0xf]
        %v2159 = vld [vmem:[%s687 + $0x254] sm:$0xf]
        %v2160 = vld [vmem:[%s687 + $0x258] sm:$0xf]
        %v2161 = vld [vmem:[%s687 + $0x25c] sm:$0xf]
        %v2162 = vld [vmem:[%s687 + $0x260] sm:$0xf]
        %v2163 = vld [vmem:[%s687 + $0x264] sm:$0xf]
        %v2164 = vld [vmem:[%s687 + $0x268] sm:$0xf]
        %v2165 = vld [vmem:[%s687 + $0x26c] sm:$0xf]
        %v2166 = vld [vmem:[%s687 + $0x270] sm:$0xf]
        %v2167 = vld [vmem:[%s687 + $0x274] sm:$0xf]
        %v2168 = vld [vmem:[%s687 + $0x278] sm:$0xf]
        %v2169 = vld [vmem:[%s687 + $0x27c] sm:$0xf]
        %v2170 = vld [vmem:[%s687 + $0x280] sm:$0xf]
        %v2171 = vld [vmem:[%s687 + $0x284] sm:$0xf]
        %v2172 = vld [vmem:[%s687 + $0x288] sm:$0xf]
        %v2173 = vld [vmem:[%s687 + $0x28c] sm:$0xf]
        %v2174 = vld [vmem:[%s687 + $0x290] sm:$0xf]
        %v2175 = vld [vmem:[%s687 + $0x294] sm:$0xf]
        %v2176 = vld [vmem:[%s687 + $0x298] sm:$0xf]
        %v2177 = vld [vmem:[%s687 + $0x29c] sm:$0xf]
        %v2178 = vld [vmem:[%s687 + $0x2a0] sm:$0xf]
        %v2179 = vld [vmem:[%s687 + $0x2a4] sm:$0xf]
        %v2180 = vld [vmem:[%s687 + $0x2a8] sm:$0xf]
        %v2181 = vld [vmem:[%s687 + $0x2ac] sm:$0xf]
        %v2182 = vld [vmem:[%s687 + $0x2b0] sm:$0xf]
        %v2183 = vld [vmem:[%s687 + $0x2b4] sm:$0xf]
        %v2184 = vld [vmem:[%s687 + $0x2b8] sm:$0xf]
        %v2185 = vld [vmem:[%s687 + $0x2bc] sm:$0xf]
        %v2186 = vld [vmem:[%s687 + $0x2c0] sm:$0xf]
        %v2187 = vld [vmem:[%s687 + $0x2c4] sm:$0xf]
        %v2188 = vld [vmem:[%s687 + $0x2c8] sm:$0xf]
        %v2189 = vld [vmem:[%s687 + $0x2cc] sm:$0xf]
        %v2190 = vld [vmem:[%s687 + $0x2d0] sm:$0xf]
        %v2191 = vld [vmem:[%s687 + $0x2d4] sm:$0xf]
        %v2192 = vld [vmem:[%s687 + $0x2d8] sm:$0xf]
        %v2193 = vld [vmem:[%s687 + $0x2dc] sm:$0xf]
        %v2194 = vld [vmem:[%s687 + $0x2e0] sm:$0xf]
        %v2195 = vld [vmem:[%s687 + $0x2e4] sm:$0xf]
        %v2196 = vld [vmem:[%s687 + $0x2e8] sm:$0xf]
        %v2197 = vld [vmem:[%s687 + $0x2ec] sm:$0xf]
        %v2198 = vld [vmem:[%s687 + $0x2f0] sm:$0xf]
        %v2199 = vld [vmem:[%s687 + $0x2f4] sm:$0xf]
        %v2200 = vld [vmem:[%s687 + $0x2f8] sm:$0xf]
        %v2201 = vld [vmem:[%s687 + $0x2fc] sm:$0xf]
        %v2202 = vld [vmem:[%s687 + $0x300] sm:$0xf]
        %v2203 = vld [vmem:[%s687 + $0x304] sm:$0xf]
        %v2204 = vld [vmem:[%s687 + $0x308] sm:$0xf]
        %v2205 = vld [vmem:[%s687 + $0x30c] sm:$0xf]
        %v2206 = vld [vmem:[%s687 + $0x310] sm:$0xf]
        %v2207 = vld [vmem:[%s687 + $0x314] sm:$0xf]
        %v2208 = vld [vmem:[%s687 + $0x318] sm:$0xf]
        %v2209 = vld [vmem:[%s687 + $0x31c] sm:$0xf]
        %v2210 = vld [vmem:[%s687 + $0x320] sm:$0xf]
        %v2211 = vld [vmem:[%s687 + $0x324] sm:$0xf]
        %v2212 = vld [vmem:[%s687 + $0x328] sm:$0xf]
        %v2213 = vld [vmem:[%s687 + $0x32c] sm:$0xf]
        %v2214 = vld [vmem:[%s687 + $0x330] sm:$0xf]
        %v2215 = vld [vmem:[%s687 + $0x334] sm:$0xf]
        %v2216 = vld [vmem:[%s687 + $0x338] sm:$0xf]
        %v2217 = vld [vmem:[%s687 + $0x33c] sm:$0xf]
        %v2218 = vld [vmem:[%s687 + $0x340] sm:$0xf]
        %v2219 = vld [vmem:[%s687 + $0x344] sm:$0xf]
        %v2220 = vld [vmem:[%s687 + $0x348] sm:$0xf]
        %v2221 = vld [vmem:[%s687 + $0x34c] sm:$0xf]
        %v2222 = vld [vmem:[%s687 + $0x350] sm:$0xf]
        %v2223 = vld [vmem:[%s687 + $0x354] sm:$0xf]
        %v2224 = vld [vmem:[%s687 + $0x358] sm:$0xf]
        %v2225 = vld [vmem:[%s687 + $0x35c] sm:$0xf]
        %v2226 = vld [vmem:[%s687 + $0x360] sm:$0xf]
        %v2227 = vld [vmem:[%s687 + $0x364] sm:$0xf]
        %v2228 = vld [vmem:[%s687 + $0x368] sm:$0xf]
        %v2229 = vld [vmem:[%s687 + $0x36c] sm:$0xf]
        %v2230 = vld [vmem:[%s687 + $0x370] sm:$0xf]
        %v2231 = vld [vmem:[%s687 + $0x374] sm:$0xf]
        %v2232 = vld [vmem:[%s687 + $0x378] sm:$0xf]
        %v2233 = vld [vmem:[%s687 + $0x37c] sm:$0xf]
        %v2234 = vld [vmem:[%s687 + $0x380] sm:$0xf]
        %v2235 = vld [vmem:[%s687 + $0x384] sm:$0xf]
        %v2236 = vld [vmem:[%s687 + $0x388] sm:$0xf]
        %v2237 = vld [vmem:[%s687 + $0x38c] sm:$0xf]
        %v2238 = vld [vmem:[%s687 + $0x390] sm:$0xf]
        %v2239 = vld [vmem:[%s687 + $0x394] sm:$0xf]
        %v2240 = vld [vmem:[%s687 + $0x398] sm:$0xf]
        %v2241 = vld [vmem:[%s687 + $0x39c] sm:$0xf]
        %v2242 = vld [vmem:[%s687 + $0x3a0] sm:$0xf]
        %v2243 = vld [vmem:[%s687 + $0x3a4] sm:$0xf]
        %v2244 = vld [vmem:[%s687 + $0x3a8] sm:$0xf]
        %v2245 = vld [vmem:[%s687 + $0x3ac] sm:$0xf]
        %v2246 = vld [vmem:[%s687 + $0x3b0] sm:$0xf]
        %v2247 = vld [vmem:[%s687 + $0x3b4] sm:$0xf]
        %v2248 = vld [vmem:[%s687 + $0x3b8] sm:$0xf]
        %v2249 = vld [vmem:[%s687 + $0x3bc] sm:$0xf]
        %v2250 = vld [vmem:[%s687 + $0x3c0] sm:$0xf]
        %v2251 = vld [vmem:[%s687 + $0x3c4] sm:$0xf]
        %v2252 = vld [vmem:[%s687 + $0x3c8] sm:$0xf]
        %v2253 = vld [vmem:[%s687 + $0x3cc] sm:$0xf]
        %v2254 = vld [vmem:[%s687 + $0x3d0] sm:$0xf]
        %v2255 = vld [vmem:[%s687 + $0x3d4] sm:$0xf]
        %v2256 = vld [vmem:[%s687 + $0x3d8] sm:$0xf]
        %v2257 = vld [vmem:[%s687 + $0x3dc] sm:$0xf]
        %v2258 = vld [vmem:[%s687 + $0x3e0] sm:$0xf]
        %v2259 = vld [vmem:[%s687 + $0x3e4] sm:$0xf]
        %v2260 = vld [vmem:[%s687 + $0x3e8] sm:$0xf]
        %v2261 = vld [vmem:[%s687 + $0x3ec] sm:$0xf]
        %v2262 = vld [vmem:[%s687 + $0x3f0] sm:$0xf]
        %v2263 = vld [vmem:[%s687 + $0x3f4] sm:$0xf]
        %v2264 = vld [vmem:[%s687 + $0x3f8] sm:$0xf]
        %v2265 = vld [vmem:[%s687 + $0x3fc] sm:$0xf]
        %v2266 = vld [vmem:[%s690] sm:$0x1]
        %v2268 = vlaneseq
        %v2269 = vshrl.u32 %v2268, 7
        %v2270 = vsub.s32 0, %v2269
        %v2271 = vrot.slane %v2266, %v2270
        %v2529 = vunpack.c.l.b16 %v2010
        %v2530 = vunpack.c.l.b16 %v2011
        %v2531 = vunpack.c.l.b16 %v2012
        %v2532 = vunpack.c.l.b16 %v2013
        %v2533 = vunpack.c.l.b16 %v2014
        %v2534 = vunpack.c.l.b16 %v2015
        %v2535 = vunpack.c.l.b16 %v2016
        %v2536 = vunpack.c.l.b16 %v2017
        %v2537 = vunpack.c.l.b16 %v2018
        %v2538 = vunpack.c.l.b16 %v2019
        %v2539 = vunpack.c.l.b16 %v2020
        %v2540 = vunpack.c.l.b16 %v2021
        %v2541 = vunpack.c.l.b16 %v2022
        %v2542 = vunpack.c.l.b16 %v2023
        %v2543 = vunpack.c.l.b16 %v2024
        %v2544 = vunpack.c.l.b16 %v2025
        %v2545 = vunpack.c.l.b16 %v2026
        %v2546 = vunpack.c.l.b16 %v2027
        %v2547 = vunpack.c.l.b16 %v2028
        %v2548 = vunpack.c.l.b16 %v2029
        %v2549 = vunpack.c.l.b16 %v2030
        %v2550 = vunpack.c.l.b16 %v2031
        %v2551 = vunpack.c.l.b16 %v2032
        %v2552 = vunpack.c.l.b16 %v2033
        %v2553 = vunpack.c.l.b16 %v2034
        %v2554 = vunpack.c.l.b16 %v2035
        %v2555 = vunpack.c.l.b16 %v2036
        %v2556 = vunpack.c.l.b16 %v2037
        %v2557 = vunpack.c.l.b16 %v2038
        %v2558 = vunpack.c.l.b16 %v2039
        %v2559 = vunpack.c.l.b16 %v2040
        %v2560 = vunpack.c.l.b16 %v2041
        %v2561 = vunpack.c.l.b16 %v2042
        %v2562 = vunpack.c.l.b16 %v2043
        %v2563 = vunpack.c.l.b16 %v2044
        %v2564 = vunpack.c.l.b16 %v2045
        %v2565 = vunpack.c.l.b16 %v2046
        %v2566 = vunpack.c.l.b16 %v2047
        %v2567 = vunpack.c.l.b16 %v2048
        %v2568 = vunpack.c.l.b16 %v2049
        %v2569 = vunpack.c.l.b16 %v2050
        %v2570 = vunpack.c.l.b16 %v2051
        %v2571 = vunpack.c.l.b16 %v2052
        %v2572 = vunpack.c.l.b16 %v2053
        %v2573 = vunpack.c.l.b16 %v2054
        %v2574 = vunpack.c.l.b16 %v2055
        %v2575 = vunpack.c.l.b16 %v2056
        %v2576 = vunpack.c.l.b16 %v2057
        %v2577 = vunpack.c.l.b16 %v2058
        %v2578 = vunpack.c.l.b16 %v2059
        %v2579 = vunpack.c.l.b16 %v2060
        %v2580 = vunpack.c.l.b16 %v2061
        %v2581 = vunpack.c.l.b16 %v2062
        %v2582 = vunpack.c.l.b16 %v2063
        %v2583 = vunpack.c.l.b16 %v2064
        %v2584 = vunpack.c.l.b16 %v2065
        %v2585 = vunpack.c.l.b16 %v2066
        %v2586 = vunpack.c.l.b16 %v2067
        %v2587 = vunpack.c.l.b16 %v2068
        %v2588 = vunpack.c.l.b16 %v2069
        %v2589 = vunpack.c.l.b16 %v2070
        %v2590 = vunpack.c.l.b16 %v2071
        %v2591 = vunpack.c.l.b16 %v2072
        %v2592 = vunpack.c.l.b16 %v2073
        %v2593 = vunpack.c.l.b16 %v2074
        %v2594 = vunpack.c.l.b16 %v2075
        %v2595 = vunpack.c.l.b16 %v2076
        %v2596 = vunpack.c.l.b16 %v2077
        %v2597 = vunpack.c.l.b16 %v2078
        %v2598 = vunpack.c.l.b16 %v2079
        %v2599 = vunpack.c.l.b16 %v2080
        %v2600 = vunpack.c.l.b16 %v2081
        %v2601 = vunpack.c.l.b16 %v2082
        %v2602 = vunpack.c.l.b16 %v2083
        %v2603 = vunpack.c.l.b16 %v2084
        %v2604 = vunpack.c.l.b16 %v2085
        %v2605 = vunpack.c.l.b16 %v2086
        %v2606 = vunpack.c.l.b16 %v2087
        %v2607 = vunpack.c.l.b16 %v2088
        %v2608 = vunpack.c.l.b16 %v2089
        %v2609 = vunpack.c.l.b16 %v2090
        %v2610 = vunpack.c.l.b16 %v2091
        %v2611 = vunpack.c.l.b16 %v2092
        %v2612 = vunpack.c.l.b16 %v2093
        %v2613 = vunpack.c.l.b16 %v2094
        %v2614 = vunpack.c.l.b16 %v2095
        %v2615 = vunpack.c.l.b16 %v2096
        %v2616 = vunpack.c.l.b16 %v2097
        %v2617 = vunpack.c.l.b16 %v2098
        %v2618 = vunpack.c.l.b16 %v2099
        %v2619 = vunpack.c.l.b16 %v2100
        %v2620 = vunpack.c.l.b16 %v2101
        %v2621 = vunpack.c.l.b16 %v2102
        %v2622 = vunpack.c.l.b16 %v2103
        %v2623 = vunpack.c.l.b16 %v2104
        %v2624 = vunpack.c.l.b16 %v2105
        %v2625 = vunpack.c.l.b16 %v2106
        %v2626 = vunpack.c.l.b16 %v2107
        %v2627 = vunpack.c.l.b16 %v2108
        %v2628 = vunpack.c.l.b16 %v2109
        %v2629 = vunpack.c.l.b16 %v2110
        %v2630 = vunpack.c.l.b16 %v2111
        %v2631 = vunpack.c.l.b16 %v2112
        %v2632 = vunpack.c.l.b16 %v2113
        %v2633 = vunpack.c.l.b16 %v2114
        %v2634 = vunpack.c.l.b16 %v2115
        %v2635 = vunpack.c.l.b16 %v2116
        %v2636 = vunpack.c.l.b16 %v2117
        %v2637 = vunpack.c.l.b16 %v2118
        %v2638 = vunpack.c.l.b16 %v2119
        %v2639 = vunpack.c.l.b16 %v2120
        %v2640 = vunpack.c.l.b16 %v2121
        %v2641 = vunpack.c.l.b16 %v2122
        %v2642 = vunpack.c.l.b16 %v2123
        %v2643 = vunpack.c.l.b16 %v2124
        %v2644 = vunpack.c.l.b16 %v2125
        %v2645 = vunpack.c.l.b16 %v2126
        %v2646 = vunpack.c.l.b16 %v2127
        %v2647 = vunpack.c.l.b16 %v2128
        %v2648 = vunpack.c.l.b16 %v2129
        %v2649 = vunpack.c.l.b16 %v2130
        %v2650 = vunpack.c.l.b16 %v2131
        %v2651 = vunpack.c.l.b16 %v2132
        %v2652 = vunpack.c.l.b16 %v2133
        %v2653 = vunpack.c.l.b16 %v2134
        %v2654 = vunpack.c.l.b16 %v2135
        %v2655 = vunpack.c.l.b16 %v2136
        %v2656 = vunpack.c.l.b16 %v2137
        %v2657 = vunpack.c.l.b16 %v2138
        %v2658 = vunpack.c.l.b16 %v2139
        %v2659 = vunpack.c.l.b16 %v2140
        %v2660 = vunpack.c.l.b16 %v2141
        %v2661 = vunpack.c.l.b16 %v2142
        %v2662 = vunpack.c.l.b16 %v2143
        %v2663 = vunpack.c.l.b16 %v2144
        %v2664 = vunpack.c.l.b16 %v2145
        %v2665 = vunpack.c.l.b16 %v2146
        %v2666 = vunpack.c.l.b16 %v2147
        %v2667 = vunpack.c.l.b16 %v2148
        %v2668 = vunpack.c.l.b16 %v2149
        %v2669 = vunpack.c.l.b16 %v2150
        %v2670 = vunpack.c.l.b16 %v2151
        %v2671 = vunpack.c.l.b16 %v2152
        %v2672 = vunpack.c.l.b16 %v2153
        %v2673 = vunpack.c.l.b16 %v2154
        %v2674 = vunpack.c.l.b16 %v2155
        %v2675 = vunpack.c.l.b16 %v2156
        %v2676 = vunpack.c.l.b16 %v2157
        %v2677 = vunpack.c.l.b16 %v2158
        %v2678 = vunpack.c.l.b16 %v2159
        %v2679 = vunpack.c.l.b16 %v2160
        %v2680 = vunpack.c.l.b16 %v2161
        %v2681 = vunpack.c.l.b16 %v2162
        %v2682 = vunpack.c.l.b16 %v2163
        %v2683 = vunpack.c.l.b16 %v2164
        %v2684 = vunpack.c.l.b16 %v2165
        %v2685 = vunpack.c.l.b16 %v2166
        %v2686 = vunpack.c.l.b16 %v2167
        %v2687 = vunpack.c.l.b16 %v2168
        %v2688 = vunpack.c.l.b16 %v2169
        %v2689 = vunpack.c.l.b16 %v2170
        %v2690 = vunpack.c.l.b16 %v2171
        %v2691 = vunpack.c.l.b16 %v2172
        %v2692 = vunpack.c.l.b16 %v2173
        %v2693 = vunpack.c.l.b16 %v2174
        %v2694 = vunpack.c.l.b16 %v2175
        %v2695 = vunpack.c.l.b16 %v2176
        %v2696 = vunpack.c.l.b16 %v2177
        %v2697 = vunpack.c.l.b16 %v2178
        %v2698 = vunpack.c.l.b16 %v2179
        %v2699 = vunpack.c.l.b16 %v2180
        %v2700 = vunpack.c.l.b16 %v2181
        %v2701 = vunpack.c.l.b16 %v2182
        %v2702 = vunpack.c.l.b16 %v2183
        %v2703 = vunpack.c.l.b16 %v2184
        %v2704 = vunpack.c.l.b16 %v2185
        %v2705 = vunpack.c.l.b16 %v2186
        %v2706 = vunpack.c.l.b16 %v2187
        %v2707 = vunpack.c.l.b16 %v2188
        %v2708 = vunpack.c.l.b16 %v2189
        %v2709 = vunpack.c.l.b16 %v2190
        %v2710 = vunpack.c.l.b16 %v2191
        %v2711 = vunpack.c.l.b16 %v2192
        %v2712 = vunpack.c.l.b16 %v2193
        %v2713 = vunpack.c.l.b16 %v2194
        %v2714 = vunpack.c.l.b16 %v2195
        %v2715 = vunpack.c.l.b16 %v2196
        %v2716 = vunpack.c.l.b16 %v2197
        %v2717 = vunpack.c.l.b16 %v2198
        %v2718 = vunpack.c.l.b16 %v2199
        %v2719 = vunpack.c.l.b16 %v2200
        %v2720 = vunpack.c.l.b16 %v2201
        %v2721 = vunpack.c.l.b16 %v2202
        %v2722 = vunpack.c.l.b16 %v2203
        %v2723 = vunpack.c.l.b16 %v2204
        %v2724 = vunpack.c.l.b16 %v2205
        %v2725 = vunpack.c.l.b16 %v2206
        %v2726 = vunpack.c.l.b16 %v2207
        %v2727 = vunpack.c.l.b16 %v2208
        %v2728 = vunpack.c.l.b16 %v2209
        %v2729 = vunpack.c.l.b16 %v2210
        %v2730 = vunpack.c.l.b16 %v2211
        %v2731 = vunpack.c.l.b16 %v2212
        %v2732 = vunpack.c.l.b16 %v2213
        %v2733 = vunpack.c.l.b16 %v2214
        %v2734 = vunpack.c.l.b16 %v2215
        %v2735 = vunpack.c.l.b16 %v2216
        %v2736 = vunpack.c.l.b16 %v2217
        %v2737 = vunpack.c.l.b16 %v2218
        %v2738 = vunpack.c.l.b16 %v2219
        %v2739 = vunpack.c.l.b16 %v2220
        %v2740 = vunpack.c.l.b16 %v2221
        %v2741 = vunpack.c.l.b16 %v2222
        %v2742 = vunpack.c.l.b16 %v2223
        %v2743 = vunpack.c.l.b16 %v2224
        %v2744 = vunpack.c.l.b16 %v2225
        %v2745 = vunpack.c.l.b16 %v2226
        %v2746 = vunpack.c.l.b16 %v2227
        %v2747 = vunpack.c.l.b16 %v2228
        %v2748 = vunpack.c.l.b16 %v2229
        %v2749 = vunpack.c.l.b16 %v2230
        %v2750 = vunpack.c.l.b16 %v2231
        %v2751 = vunpack.c.l.b16 %v2232
        %v2752 = vunpack.c.l.b16 %v2233
        %v2753 = vunpack.c.l.b16 %v2234
        %v2754 = vunpack.c.l.b16 %v2235
        %v2755 = vunpack.c.l.b16 %v2236
        %v2756 = vunpack.c.l.b16 %v2237
        %v2757 = vunpack.c.l.b16 %v2238
        %v2758 = vunpack.c.l.b16 %v2239
        %v2759 = vunpack.c.l.b16 %v2240
        %v2760 = vunpack.c.l.b16 %v2241
        %v2761 = vunpack.c.l.b16 %v2242
        %v2762 = vunpack.c.l.b16 %v2243
        %v2763 = vunpack.c.l.b16 %v2244
        %v2764 = vunpack.c.l.b16 %v2245
        %v2765 = vunpack.c.l.b16 %v2246
        %v2766 = vunpack.c.l.b16 %v2247
        %v2767 = vunpack.c.l.b16 %v2248
        %v2768 = vunpack.c.l.b16 %v2249
        %v2769 = vunpack.c.l.b16 %v2250
        %v2770 = vunpack.c.l.b16 %v2251
        %v2771 = vunpack.c.l.b16 %v2252
        %v2772 = vunpack.c.l.b16 %v2253
        %v2773 = vunpack.c.l.b16 %v2254
        %v2774 = vunpack.c.l.b16 %v2255
        %v2775 = vunpack.c.l.b16 %v2256
        %v2776 = vunpack.c.l.b16 %v2257
        %v2777 = vunpack.c.l.b16 %v2258
        %v2778 = vunpack.c.l.b16 %v2259
        %v2779 = vunpack.c.l.b16 %v2260
        %v2780 = vunpack.c.l.b16 %v2261
        %v2781 = vunpack.c.l.b16 %v2262
        %v2782 = vunpack.c.l.b16 %v2263
        %v2783 = vunpack.c.l.b16 %v2264
        %v2784 = vunpack.c.l.b16 %v2265
        %v2785 = vpack.c.b16 %v2530, %v2529
        %v2786 = vpack.c.b16 %v2532, %v2531
        %v2787 = vpack.c.b16 %v2534, %v2533
        %v2788 = vpack.c.b16 %v2536, %v2535
        %v2789 = vpack.c.b16 %v2538, %v2537
        %v2790 = vpack.c.b16 %v2540, %v2539
        %v2791 = vpack.c.b16 %v2542, %v2541
        %v2792 = vpack.c.b16 %v2544, %v2543
        %v2793 = vpack.c.b16 %v2546, %v2545
        %v2794 = vpack.c.b16 %v2548, %v2547
        %v2795 = vpack.c.b16 %v2550, %v2549
        %v2796 = vpack.c.b16 %v2552, %v2551
        %v2797 = vpack.c.b16 %v2554, %v2553
        %v2798 = vpack.c.b16 %v2556, %v2555
        %v2799 = vpack.c.b16 %v2558, %v2557
        %v2800 = vpack.c.b16 %v2560, %v2559
        %v2801 = vpack.c.b16 %v2562, %v2561
        %v2802 = vpack.c.b16 %v2564, %v2563
        %v2803 = vpack.c.b16 %v2566, %v2565
        %v2804 = vpack.c.b16 %v2568, %v2567
        %v2805 = vpack.c.b16 %v2570, %v2569
        %v2806 = vpack.c.b16 %v2572, %v2571
        %v2807 = vpack.c.b16 %v2574, %v2573
        %v2808 = vpack.c.b16 %v2576, %v2575
        %v2809 = vpack.c.b16 %v2578, %v2577
        %v2810 = vpack.c.b16 %v2580, %v2579
        %v2811 = vpack.c.b16 %v2582, %v2581
        %v2812 = vpack.c.b16 %v2584, %v2583
        %v2813 = vpack.c.b16 %v2586, %v2585
        %v2814 = vpack.c.b16 %v2588, %v2587
        %v2815 = vpack.c.b16 %v2590, %v2589
        %v2816 = vpack.c.b16 %v2592, %v2591
        %v2817 = vpack.c.b16 %v2594, %v2593
        %v2818 = vpack.c.b16 %v2596, %v2595
        %v2819 = vpack.c.b16 %v2598, %v2597
        %v2820 = vpack.c.b16 %v2600, %v2599
        %v2821 = vpack.c.b16 %v2602, %v2601
        %v2822 = vpack.c.b16 %v2604, %v2603
        %v2823 = vpack.c.b16 %v2606, %v2605
        %v2824 = vpack.c.b16 %v2608, %v2607
        %v2825 = vpack.c.b16 %v2610, %v2609
        %v2826 = vpack.c.b16 %v2612, %v2611
        %v2827 = vpack.c.b16 %v2614, %v2613
        %v2828 = vpack.c.b16 %v2616, %v2615
        %v2829 = vpack.c.b16 %v2618, %v2617
        %v2830 = vpack.c.b16 %v2620, %v2619
        %v2831 = vpack.c.b16 %v2622, %v2621
        %v2832 = vpack.c.b16 %v2624, %v2623
        %v2833 = vpack.c.b16 %v2626, %v2625
        %v2834 = vpack.c.b16 %v2628, %v2627
        %v2835 = vpack.c.b16 %v2630, %v2629
        %v2836 = vpack.c.b16 %v2632, %v2631
        %v2837 = vpack.c.b16 %v2634, %v2633
        %v2838 = vpack.c.b16 %v2636, %v2635
        %v2839 = vpack.c.b16 %v2638, %v2637
        %v2840 = vpack.c.b16 %v2640, %v2639
        %v2841 = vpack.c.b16 %v2642, %v2641
        %v2842 = vpack.c.b16 %v2644, %v2643
        %v2843 = vpack.c.b16 %v2646, %v2645
        %v2844 = vpack.c.b16 %v2648, %v2647
        %v2845 = vpack.c.b16 %v2650, %v2649
        %v2846 = vpack.c.b16 %v2652, %v2651
        %v2847 = vpack.c.b16 %v2654, %v2653
        %v2848 = vpack.c.b16 %v2656, %v2655
        %v2849 = vpack.c.b16 %v2658, %v2657
        %v2850 = vpack.c.b16 %v2660, %v2659
        %v2851 = vpack.c.b16 %v2662, %v2661
        %v2852 = vpack.c.b16 %v2664, %v2663
        %v2853 = vpack.c.b16 %v2666, %v2665
        %v2854 = vpack.c.b16 %v2668, %v2667
        %v2855 = vpack.c.b16 %v2670, %v2669
        %v2856 = vpack.c.b16 %v2672, %v2671
        %v2857 = vpack.c.b16 %v2674, %v2673
        %v2858 = vpack.c.b16 %v2676, %v2675
        %v2859 = vpack.c.b16 %v2678, %v2677
        %v2860 = vpack.c.b16 %v2680, %v2679
        %v2861 = vpack.c.b16 %v2682, %v2681
        %v2862 = vpack.c.b16 %v2684, %v2683
        %v2863 = vpack.c.b16 %v2686, %v2685
        %v2864 = vpack.c.b16 %v2688, %v2687
        %v2865 = vpack.c.b16 %v2690, %v2689
        %v2866 = vpack.c.b16 %v2692, %v2691
        %v2867 = vpack.c.b16 %v2694, %v2693
        %v2868 = vpack.c.b16 %v2696, %v2695
        %v2869 = vpack.c.b16 %v2698, %v2697
        %v2870 = vpack.c.b16 %v2700, %v2699
        %v2871 = vpack.c.b16 %v2702, %v2701
        %v2872 = vpack.c.b16 %v2704, %v2703
        %v2873 = vpack.c.b16 %v2706, %v2705
        %v2874 = vpack.c.b16 %v2708, %v2707
        %v2875 = vpack.c.b16 %v2710, %v2709
        %v2876 = vpack.c.b16 %v2712, %v2711
        %v2877 = vpack.c.b16 %v2714, %v2713
        %v2878 = vpack.c.b16 %v2716, %v2715
        %v2879 = vpack.c.b16 %v2718, %v2717
        %v2880 = vpack.c.b16 %v2720, %v2719
        %v2881 = vpack.c.b16 %v2722, %v2721
        %v2882 = vpack.c.b16 %v2724, %v2723
        %v2883 = vpack.c.b16 %v2726, %v2725
        %v2884 = vpack.c.b16 %v2728, %v2727
        %v2885 = vpack.c.b16 %v2730, %v2729
        %v2886 = vpack.c.b16 %v2732, %v2731
        %v2887 = vpack.c.b16 %v2734, %v2733
        %v2888 = vpack.c.b16 %v2736, %v2735
        %v2889 = vpack.c.b16 %v2738, %v2737
        %v2890 = vpack.c.b16 %v2740, %v2739
        %v2891 = vpack.c.b16 %v2742, %v2741
        %v2892 = vpack.c.b16 %v2744, %v2743
        %v2893 = vpack.c.b16 %v2746, %v2745
        %v2894 = vpack.c.b16 %v2748, %v2747
        %v2895 = vpack.c.b16 %v2750, %v2749
        %v2896 = vpack.c.b16 %v2752, %v2751
        %v2897 = vpack.c.b16 %v2754, %v2753
        %v2898 = vpack.c.b16 %v2756, %v2755
        %v2899 = vpack.c.b16 %v2758, %v2757
        %v2900 = vpack.c.b16 %v2760, %v2759
        %v2901 = vpack.c.b16 %v2762, %v2761
        %v2902 = vpack.c.b16 %v2764, %v2763
        %v2903 = vpack.c.b16 %v2766, %v2765
        %v2904 = vpack.c.b16 %v2768, %v2767
        %v2905 = vpack.c.b16 %v2770, %v2769
        %v2906 = vpack.c.b16 %v2772, %v2771
        %v2907 = vpack.c.b16 %v2774, %v2773
        %v2908 = vpack.c.b16 %v2776, %v2775
        %v2909 = vpack.c.b16 %v2778, %v2777
        %v2910 = vpack.c.b16 %v2780, %v2779
        %v2911 = vpack.c.b16 %v2782, %v2781
        %v2912 = vpack.c.b16 %v2784, %v2783
        %3041 = vmatprep.subr.bf16.mxu0 0
        %3042 = vmatpush1.bf16.msra.mxu0 %v2785
        %3043 = vmatprep.subr.bf16.mxu0 0
        %3044 = vmatpush1.bf16.msra.mxu0 %v2786
        %3045 = vmatprep.subr.bf16.mxu0 0
        %3046 = vmatpush1.bf16.msra.mxu0 %v2787
        %3047 = vmatprep.subr.bf16.mxu0 0
        %3048 = vmatpush1.bf16.msra.mxu0 %v2788
        %3049 = vmatprep.subr.bf16.mxu0 0
        %3050 = vmatpush1.bf16.msra.mxu0 %v2789
        %3051 = vmatprep.subr.bf16.mxu0 0
        %3052 = vmatpush1.bf16.msra.mxu0 %v2790
        %3053 = vmatprep.subr.bf16.mxu0 0
        %3054 = vmatpush1.bf16.msra.mxu0 %v2791
        %3055 = vmatprep.subr.bf16.mxu0 0
        %3056 = vmatpush1.bf16.msra.mxu0 %v2792
        %3057 = vmatprep.subr.bf16.mxu0 0
        %3058 = vmatpush1.bf16.msra.mxu0 %v2793
        %3059 = vmatprep.subr.bf16.mxu0 0
        %3060 = vmatpush1.bf16.msra.mxu0 %v2794
        %3061 = vmatprep.subr.bf16.mxu0 0
        %3062 = vmatpush1.bf16.msra.mxu0 %v2795
        %3063 = vmatprep.subr.bf16.mxu0 0
        %3064 = vmatpush1.bf16.msra.mxu0 %v2796
        %3065 = vmatprep.subr.bf16.mxu0 0
        %3066 = vmatpush1.bf16.msra.mxu0 %v2797
        %3067 = vmatprep.subr.bf16.mxu0 0
        %3068 = vmatpush1.bf16.msra.mxu0 %v2798
        %3069 = vmatprep.subr.bf16.mxu0 0
        %3070 = vmatpush1.bf16.msra.mxu0 %v2799
        %3071 = vmatprep.subr.bf16.mxu0 0
        %3072 = vmatpush1.bf16.msra.mxu0 %v2800
        %3073 = vmatprep.mubr.bf16.mxu0 %v1995
        %3074 = vmatmul.mubr.bf16.gmra.mrb[0].mxu0 %v1994
        %v3075 = vpop.f32.mrb[0].mxu0
        %v3076 = vadd.f32 %v2271, %v3075
        %v3077 = vpop.f32.mrb[0].mxu0
        %v3078 = vpop.f32.mrb[0].mxu0
        %v3079 = vpop.f32.mrb[0].mxu0
        %3080 = vdwg.mxu0
        %3081 = vmatprep.subr.bf16.mxu0 0
        %3082 = vmatpush1.bf16.msra.mxu0 %v2801
        %3083 = vmatprep.subr.bf16.mxu0 0
        %3084 = vmatpush1.bf16.msra.mxu0 %v2802
        %3085 = vmatprep.subr.bf16.mxu0 0
        %3086 = vmatpush1.bf16.msra.mxu0 %v2803
        %3087 = vmatprep.subr.bf16.mxu0 0
        %3088 = vmatpush1.bf16.msra.mxu0 %v2804
        %3089 = vmatprep.subr.bf16.mxu0 0
        %3090 = vmatpush1.bf16.msra.mxu0 %v2805
        %3091 = vmatprep.subr.bf16.mxu0 0
        %3092 = vmatpush1.bf16.msra.mxu0 %v2806
        %3093 = vmatprep.subr.bf16.mxu0 0
        %3094 = vmatpush1.bf16.msra.mxu0 %v2807
        %3095 = vmatprep.subr.bf16.mxu0 0
        %3096 = vmatpush1.bf16.msra.mxu0 %v2808
        %3097 = vmatprep.subr.bf16.mxu0 0
        %3098 = vmatpush1.bf16.msra.mxu0 %v2809
        %3099 = vmatprep.subr.bf16.mxu0 0
        %3100 = vmatpush1.bf16.msra.mxu0 %v2810
        %3101 = vmatprep.subr.bf16.mxu0 0
        %3102 = vmatpush1.bf16.msra.mxu0 %v2811
        %3103 = vmatprep.subr.bf16.mxu0 0
        %3104 = vmatpush1.bf16.msra.mxu0 %v2812
        %3105 = vmatprep.subr.bf16.mxu0 0
        %3106 = vmatpush1.bf16.msra.mxu0 %v2813
        %3107 = vmatprep.subr.bf16.mxu0 0
        %3108 = vmatpush1.bf16.msra.mxu0 %v2814
        %3109 = vmatprep.subr.bf16.mxu0 0
        %3110 = vmatpush1.bf16.msra.mxu0 %v2815
        %3111 = vmatprep.subr.bf16.mxu0 0
        %3112 = vmatpush1.bf16.msra.mxu0 %v2816
        %3113 = vmatprep.mubr.bf16.mxu0 %v1997
        %3114 = vmatmul.mubr.bf16.gmra.mrb[0].mxu0 %v1996
        %v3115 = vpop.f32.mrb[0].mxu0
        %v3116 = vadd.f32 %v3076, %v3115
        %v3117 = vpop.f32.mrb[0].mxu0
        %v3118 = vpop.f32.mrb[0].mxu0
        %v3119 = vpop.f32.mrb[0].mxu0
        %3120 = vdwg.mxu0
        %3121 = vmatprep.subr.bf16.mxu0 0
        %3122 = vmatpush1.bf16.msra.mxu0 %v2817
        %3123 = vmatprep.subr.bf16.mxu0 0
        %3124 = vmatpush1.bf16.msra.mxu0 %v2818
        %3125 = vmatprep.subr.bf16.mxu0 0
        %3126 = vmatpush1.bf16.msra.mxu0 %v2819
        %3127 = vmatprep.subr.bf16.mxu0 0
        %3128 = vmatpush1.bf16.msra.mxu0 %v2820
        %3129 = vmatprep.subr.bf16.mxu0 0
        %3130 = vmatpush1.bf16.msra.mxu0 %v2821
        %3131 = vmatprep.subr.bf16.mxu0 0
        %3132 = vmatpush1.bf16.msra.mxu0 %v2822
        %3133 = vmatprep.subr.bf16.mxu0 0
        %3134 = vmatpush1.bf16.msra.mxu0 %v2823
        %3135 = vmatprep.subr.bf16.mxu0 0
        %3136 = vmatpush1.bf16.msra.mxu0 %v2824
        %3137 = vmatprep.subr.bf16.mxu0 0
        %3138 = vmatpush1.bf16.msra.mxu0 %v2825
        %3139 = vmatprep.subr.bf16.mxu0 0
        %3140 = vmatpush1.bf16.msra.mxu0 %v2826
        %3141 = vmatprep.subr.bf16.mxu0 0
        %3142 = vmatpush1.bf16.msra.mxu0 %v2827
        %3143 = vmatprep.subr.bf16.mxu0 0
        %3144 = vmatpush1.bf16.msra.mxu0 %v2828
        %3145 = vmatprep.subr.bf16.mxu0 0
        %3146 = vmatpush1.bf16.msra.mxu0 %v2829
        %3147 = vmatprep.subr.bf16.mxu0 0
        %3148 = vmatpush1.bf16.msra.mxu0 %v2830
        %3149 = vmatprep.subr.bf16.mxu0 0
        %3150 = vmatpush1.bf16.msra.mxu0 %v2831
        %3151 = vmatprep.subr.bf16.mxu0 0
        %3152 = vmatpush1.bf16.msra.mxu0 %v2832
        %3153 = vmatprep.mubr.bf16.mxu0 %v1999
        %3154 = vmatmul.mubr.bf16.gmra.mrb[0].mxu0 %v1998
        %v3155 = vpop.f32.mrb[0].mxu0
        %v3156 = vadd.f32 %v3116, %v3155
        %v3157 = vpop.f32.mrb[0].mxu0
        %v3158 = vpop.f32.mrb[0].mxu0
        %v3159 = vpop.f32.mrb[0].mxu0
        %3160 = vdwg.mxu0
        %3161 = vmatprep.subr.bf16.mxu0 0
        %3162 = vmatpush1.bf16.msra.mxu0 %v2833
        %3163 = vmatprep.subr.bf16.mxu0 0
        %3164 = vmatpush1.bf16.msra.mxu0 %v2834
        %3165 = vmatprep.subr.bf16.mxu0 0
        %3166 = vmatpush1.bf16.msra.mxu0 %v2835
        %3167 = vmatprep.subr.bf16.mxu0 0
        %3168 = vmatpush1.bf16.msra.mxu0 %v2836
        %3169 = vmatprep.subr.bf16.mxu0 0
        %3170 = vmatpush1.bf16.msra.mxu0 %v2837
        %3171 = vmatprep.subr.bf16.mxu0 0
        %3172 = vmatpush1.bf16.msra.mxu0 %v2838
        %3173 = vmatprep.subr.bf16.mxu0 0
        %3174 = vmatpush1.bf16.msra.mxu0 %v2839
        %3175 = vmatprep.subr.bf16.mxu0 0
        %3176 = vmatpush1.bf16.msra.mxu0 %v2840
        %3177 = vmatprep.subr.bf16.mxu0 0
        %3178 = vmatpush1.bf16.msra.mxu0 %v2841
        %3179 = vmatprep.subr.bf16.mxu0 0
        %3180 = vmatpush1.bf16.msra.mxu0 %v2842
        %3181 = vmatprep.subr.bf16.mxu0 0
        %3182 = vmatpush1.bf16.msra.mxu0 %v2843
        %3183 = vmatprep.subr.bf16.mxu0 0
        %3184 = vmatpush1.bf16.msra.mxu0 %v2844
        %3185 = vmatprep.subr.bf16.mxu0 0
        %3186 = vmatpush1.bf16.msra.mxu0 %v2845
        %3187 = vmatprep.subr.bf16.mxu0 0
        %3188 = vmatpush1.bf16.msra.mxu0 %v2846
        %3189 = vmatprep.subr.bf16.mxu0 0
        %3190 = vmatpush1.bf16.msra.mxu0 %v2847
        %3191 = vmatprep.subr.bf16.mxu0 0
        %3192 = vmatpush1.bf16.msra.mxu0 %v2848
        %3193 = vmatprep.mubr.bf16.mxu0 %v2001
        %3194 = vmatmul.mubr.bf16.gmra.mrb[0].mxu0 %v2000
        %v3195 = vpop.f32.mrb[0].mxu0
        %v3196 = vadd.f32 %v3156, %v3195
        %v3197 = vpop.f32.mrb[0].mxu0
        %v3198 = vpop.f32.mrb[0].mxu0
        %v3199 = vpop.f32.mrb[0].mxu0
        %3200 = vdwg.mxu0
        %3201 = vmatprep.subr.bf16.mxu0 0
        %3202 = vmatpush1.bf16.msra.mxu0 %v2849
        %3203 = vmatprep.subr.bf16.mxu0 0
        %3204 = vmatpush1.bf16.msra.mxu0 %v2850
        %3205 = vmatprep.subr.bf16.mxu0 0
        %3206 = vmatpush1.bf16.msra.mxu0 %v2851
        %3207 = vmatprep.subr.bf16.mxu0 0
        %3208 = vmatpush1.bf16.msra.mxu0 %v2852
        %3209 = vmatprep.subr.bf16.mxu0 0
        %3210 = vmatpush1.bf16.msra.mxu0 %v2853
        %3211 = vmatprep.subr.bf16.mxu0 0
        %3212 = vmatpush1.bf16.msra.mxu0 %v2854
        %3213 = vmatprep.subr.bf16.mxu0 0
        %3214 = vmatpush1.bf16.msra.mxu0 %v2855
        %3215 = vmatprep.subr.bf16.mxu0 0
        %3216 = vmatpush1.bf16.msra.mxu0 %v2856
        %3217 = vmatprep.subr.bf16.mxu0 0
        %3218 = vmatpush1.bf16.msra.mxu0 %v2857
        %3219 = vmatprep.subr.bf16.mxu0 0
        %3220 = vmatpush1.bf16.msra.mxu0 %v2858
        %3221 = vmatprep.subr.bf16.mxu0 0
        %3222 = vmatpush1.bf16.msra.mxu0 %v2859
        %3223 = vmatprep.subr.bf16.mxu0 0
        %3224 = vmatpush1.bf16.msra.mxu0 %v2860
        %3225 = vmatprep.subr.bf16.mxu0 0
        %3226 = vmatpush1.bf16.msra.mxu0 %v2861
        %3227 = vmatprep.subr.bf16.mxu0 0
        %3228 = vmatpush1.bf16.msra.mxu0 %v2862
        %3229 = vmatprep.subr.bf16.mxu0 0
        %3230 = vmatpush1.bf16.msra.mxu0 %v2863
        %3231 = vmatprep.subr.bf16.mxu0 0
        %3232 = vmatpush1.bf16.msra.mxu0 %v2864
        %3233 = vmatprep.mubr.bf16.mxu0 %v2003
        %3234 = vmatmul.mubr.bf16.gmra.mrb[0].mxu0 %v2002
        %v3235 = vpop.f32.mrb[0].mxu0
        %v3236 = vadd.f32 %v3196, %v3235
        %v3237 = vpop.f32.mrb[0].mxu0
        %v3238 = vpop.f32.mrb[0].mxu0
        %v3239 = vpop.f32.mrb[0].mxu0
        %3240 = vdwg.mxu0
        %3241 = vmatprep.subr.bf16.mxu0 0
        %3242 = vmatpush1.bf16.msra.mxu0 %v2865
        %3243 = vmatprep.subr.bf16.mxu0 0
        %3244 = vmatpush1.bf16.msra.mxu0 %v2866
        %3245 = vmatprep.subr.bf16.mxu0 0
        %3246 = vmatpush1.bf16.msra.mxu0 %v2867
        %3247 = vmatprep.subr.bf16.mxu0 0
        %3248 = vmatpush1.bf16.msra.mxu0 %v2868
        %3249 = vmatprep.subr.bf16.mxu0 0
        %3250 = vmatpush1.bf16.msra.mxu0 %v2869
        %3251 = vmatprep.subr.bf16.mxu0 0
        %3252 = vmatpush1.bf16.msra.mxu0 %v2870
        %3253 = vmatprep.subr.bf16.mxu0 0
        %3254 = vmatpush1.bf16.msra.mxu0 %v2871
        %3255 = vmatprep.subr.bf16.mxu0 0
        %3256 = vmatpush1.bf16.msra.mxu0 %v2872
        %3257 = vmatprep.subr.bf16.mxu0 0
        %3258 = vmatpush1.bf16.msra.mxu0 %v2873
        %3259 = vmatprep.subr.bf16.mxu0 0
        %3260 = vmatpush1.bf16.msra.mxu0 %v2874
        %3261 = vmatprep.subr.bf16.mxu0 0
        %3262 = vmatpush1.bf16.msra.mxu0 %v2875
        %3263 = vmatprep.subr.bf16.mxu0 0
        %3264 = vmatpush1.bf16.msra.mxu0 %v2876
        %3265 = vmatprep.subr.bf16.mxu0 0
        %3266 = vmatpush1.bf16.msra.mxu0 %v2877
        %3267 = vmatprep.subr.bf16.mxu0 0
        %3268 = vmatpush1.bf16.msra.mxu0 %v2878
        %3269 = vmatprep.subr.bf16.mxu0 0
        %3270 = vmatpush1.bf16.msra.mxu0 %v2879
        %3271 = vmatprep.subr.bf16.mxu0 0
        %3272 = vmatpush1.bf16.msra.mxu0 %v2880
        %3273 = vmatprep.mubr.bf16.mxu0 %v2005
        %3274 = vmatmul.mubr.bf16.gmra.mrb[0].mxu0 %v2004
        %v3275 = vpop.f32.mrb[0].mxu0
        %v3276 = vadd.f32 %v3236, %v3275
        %v3277 = vpop.f32.mrb[0].mxu0
        %v3278 = vpop.f32.mrb[0].mxu0
        %v3279 = vpop.f32.mrb[0].mxu0
        %3280 = vdwg.mxu0
        %3281 = vmatprep.subr.bf16.mxu0 0
        %3282 = vmatpush1.bf16.msra.mxu0 %v2881
        %3283 = vmatprep.subr.bf16.mxu0 0
        %3284 = vmatpush1.bf16.msra.mxu0 %v2882
        %3285 = vmatprep.subr.bf16.mxu0 0
        %3286 = vmatpush1.bf16.msra.mxu0 %v2883
        %3287 = vmatprep.subr.bf16.mxu0 0
        %3288 = vmatpush1.bf16.msra.mxu0 %v2884
        %3289 = vmatprep.subr.bf16.mxu0 0
        %3290 = vmatpush1.bf16.msra.mxu0 %v2885
        %3291 = vmatprep.subr.bf16.mxu0 0
        %3292 = vmatpush1.bf16.msra.mxu0 %v2886
        %3293 = vmatprep.subr.bf16.mxu0 0
        %3294 = vmatpush1.bf16.msra.mxu0 %v2887
        %3295 = vmatprep.subr.bf16.mxu0 0
        %3296 = vmatpush1.bf16.msra.mxu0 %v2888
        %3297 = vmatprep.subr.bf16.mxu0 0
        %3298 = vmatpush1.bf16.msra.mxu0 %v2889
        %3299 = vmatprep.subr.bf16.mxu0 0
        %3300 = vmatpush1.bf16.msra.mxu0 %v2890
        %3301 = vmatprep.subr.bf16.mxu0 0
        %3302 = vmatpush1.bf16.msra.mxu0 %v2891
        %3303 = vmatprep.subr.bf16.mxu0 0
        %3304 = vmatpush1.bf16.msra.mxu0 %v2892
        %3305 = vmatprep.subr.bf16.mxu0 0
        %3306 = vmatpush1.bf16.msra.mxu0 %v2893
        %3307 = vmatprep.subr.bf16.mxu0 0
        %3308 = vmatpush1.bf16.msra.mxu0 %v2894
        %3309 = vmatprep.subr.bf16.mxu0 0
        %3310 = vmatpush1.bf16.msra.mxu0 %v2895
        %3311 = vmatprep.subr.bf16.mxu0 0
        %3312 = vmatpush1.bf16.msra.mxu0 %v2896
        %3313 = vmatprep.mubr.bf16.mxu0 %v2007
        %3314 = vmatmul.mubr.bf16.gmra.mrb[0].mxu0 %v2006
        %v3315 = vpop.f32.mrb[0].mxu0
        %v3316 = vadd.f32 %v3276, %v3315
        %v3317 = vpop.f32.mrb[0].mxu0
        %v3318 = vpop.f32.mrb[0].mxu0
        %v3319 = vpop.f32.mrb[0].mxu0
        %3320 = vdwg.mxu0
        %3321 = vmatprep.subr.bf16.mxu0 0
        %3322 = vmatpush1.bf16.msra.mxu0 %v2897
        %3323 = vmatprep.subr.bf16.mxu0 0
        %3324 = vmatpush1.bf16.msra.mxu0 %v2898
        %3325 = vmatprep.subr.bf16.mxu0 0
        %3326 = vmatpush1.bf16.msra.mxu0 %v2899
        %3327 = vmatprep.subr.bf16.mxu0 0
        %3328 = vmatpush1.bf16.msra.mxu0 %v2900
        %3329 = vmatprep.subr.bf16.mxu0 0
        %3330 = vmatpush1.bf16.msra.mxu0 %v2901
        %3331 = vmatprep.subr.bf16.mxu0 0
        %3332 = vmatpush1.bf16.msra.mxu0 %v2902
        %3333 = vmatprep.subr.bf16.mxu0 0
        %3334 = vmatpush1.bf16.msra.mxu0 %v2903
        %3335 = vmatprep.subr.bf16.mxu0 0
        %3336 = vmatpush1.bf16.msra.mxu0 %v2904
        %3337 = vmatprep.subr.bf16.mxu0 0
        %3338 = vmatpush1.bf16.msra.mxu0 %v2905
        %3339 = vmatprep.subr.bf16.mxu0 0
        %3340 = vmatpush1.bf16.msra.mxu0 %v2906
        %3341 = vmatprep.subr.bf16.mxu0 0
        %3342 = vmatpush1.bf16.msra.mxu0 %v2907
        %3343 = vmatprep.subr.bf16.mxu0 0
        %3344 = vmatpush1.bf16.msra.mxu0 %v2908
        %3345 = vmatprep.subr.bf16.mxu0 0
        %3346 = vmatpush1.bf16.msra.mxu0 %v2909
        %3347 = vmatprep.subr.bf16.mxu0 0
        %3348 = vmatpush1.bf16.msra.mxu0 %v2910
        %3349 = vmatprep.subr.bf16.mxu0 0
        %3350 = vmatpush1.bf16.msra.mxu0 %v2911
        %3351 = vmatprep.subr.bf16.mxu0 0
        %3352 = vmatpush1.bf16.msra.mxu0 %v2912
        %3353 = vmatprep.mubr.bf16.mxu0 %v2009
        %3354 = vmatmul.mubr.bf16.gmra.mrb[0].mxu0 %v2008
        %v3355 = vpop.f32.mrb[0].mxu0
        %v3356 = vadd.f32 %v3316, %v3355
        %v3357 = vpop.f32.mrb[0].mxu0
        %v3358 = vpop.f32.mrb[0].mxu0
        %v3359 = vpop.f32.mrb[0].mxu0
        %3360 = vdwg.mxu0
        %v3361 = vadd.f32 %v1369, %v3356
        %v3362 = vld [vmem:[%s693] sm:$0x1]
        %v3363 = vld [vmem:[%s696] sm:$0x1]
        %v3364 = vsel %vm736, %v3361, 0.0
        %3365 = vadd.xlane.f32.xlu0 %v3364
        %v3366 = vpop.xlane.xlu0 %3365
        %v3367 = vmul.f32 %v3366, %v1345
        %v3368 = vsub.f32 %v3361, %v3367
        %v3369 = vmul.f32 %v3368, %v3368
        %v3370 = vsel %vm736, %v3369, 0.0
        %3371 = vadd.xlane.f32.xlu0 %v3370
        %v3372 = vpop.xlane.xlu0 %3371
        %v3373 = vmul.f32 %v3372, %v1345
        %v3374 = vadd.f32 %v3373, 1e-05
        %v3375 = vrsqrt.pop %v3374
        %v3376 = vmul.f32 %v3368, %v3375
        %v3378 = vlaneseq
        %v3379 = vshrl.u32 %v3378, 7
        %v3380 = vsub.s32 0, %v3379
        %v3381 = vrot.slane %v3362, %v3380
        %v3383 = vmul.f32 %v3376, %v3381
        %v3385 = vlaneseq
        %v3386 = vshrl.u32 %v3385, 7
        %v3387 = vsub.s32 0, %v3386
        %v3388 = vrot.slane %v3363, %v3387
        %v3390 = vadd.f32 %v3383, %v3388
        %3391 = vst.msk [vmem:[#allocation2] sm:$0xff] %vm736, %v3390
        %p3392 = scmp.eq.s32.totalorder %s34, 1
        // Predicated region
        $region85: #{tpu_custom_call.1} parent=79 // pred_check
          %p3393 = pneg %p3392
        $region86: #{tpu_custom_call.1} parent=79 // pred_check_branch
          %3395 = sbr.rel (%p3393) target = $region88
        $region87: #{tpu_custom_call.1} parent=79 // pred_region
          %v3396 = vpack.c.bf16 %v3390, %v3390
          %v3397 = vld [vmem:[%s13] sm:$0xf]
          %v3398 = vld [vmem:[%s13 + $0x4] sm:$0xf]
          %v3399 = vld [vmem:[%s13 + $0x8] sm:$0xf]
          %v3400 = vld [vmem:[%s13 + $0xc] sm:$0xf]
          %v3401 = vld [vmem:[%s14] sm:$0x1]
          %v3403 = vlaneseq
          %v3404 = vshrl.u32 %v3403, 7
          %v3405 = vsub.s32 0, %v3404
          %v3406 = vrot.slane %v3401, %v3405
          %v3412 = vunpack.c.l.b16 %v3397
          %v3413 = vunpack.c.l.b16 %v3398
          %v3414 = vunpack.c.l.b16 %v3399
          %v3415 = vunpack.c.l.b16 %v3400
          %v3416 = vpack.c.b16 %v3413, %v3412
          %v3417 = vpack.c.b16 %v3415, %v3414
          %v3421 = vsel %vm736, %v3396, 0
          %3423 = vmatprep.subr.bf16.mxu0 0
          %3424 = vmatpush1.bf16.msra.mxu0 %v3416
          %3425 = vmatprep.subr.bf16.mxu0 0
          %3426 = vmatpush1.bf16.msra.mxu0 %v3417
          %3427 = vmatprep.subr.bf16.mxu0 0
          %3428 = vmatpush1.bf16.msra.mxu0 0
          %3429 = vmatprep.subr.bf16.mxu0 0
          %3430 = vmatpush1.bf16.msra.mxu0 0
          %3431 = vmatprep.subr.bf16.mxu0 0
          %3432 = vmatpush1.bf16.msra.mxu0 0
          %3433 = vmatprep.subr.bf16.mxu0 0
          %3434 = vmatpush1.bf16.msra.mxu0 0
          %3435 = vmatprep.subr.bf16.mxu0 0
          %3436 = vmatpush1.bf16.msra.mxu0 0
          %3437 = vmatprep.subr.bf16.mxu0 0
          %3438 = vmatpush1.bf16.msra.mxu0 0
          %3439 = vmatprep.subr.bf16.mxu0 0
          %3440 = vmatpush1.bf16.msra.mxu0 0
          %3441 = vmatprep.subr.bf16.mxu0 0
          %3442 = vmatpush1.bf16.msra.mxu0 0
          %3443 = vmatprep.subr.bf16.mxu0 0
          %3444 = vmatpush1.bf16.msra.mxu0 0
          %3445 = vmatprep.subr.bf16.mxu0 0
          %3446 = vmatpush1.bf16.msra.mxu0 0
          %3447 = vmatprep.subr.bf16.mxu0 0
          %3448 = vmatpush1.bf16.msra.mxu0 0
          %3449 = vmatprep.subr.bf16.mxu0 0
          %3450 = vmatpush1.bf16.msra.mxu0 0
          %3451 = vmatprep.subr.bf16.mxu0 0
          %3452 = vmatpush1.bf16.msra.mxu0 0
          %3453 = vmatprep.subr.bf16.mxu0 0
          %3454 = vmatpush1.bf16.msra.mxu0 0
          %3455 = vmatprep.mubr.bf16.mxu0 0
          %3456 = vmatmul.mubr.bf16.gmra.mrb[0].mxu0 %v3421
          %v3457 = vpop.f32.mrb[0].mxu0
          %v3458 = vadd.f32 %v3406, %v3457
          %v3459 = vpop.f32.mrb[0].mxu0
          %v3460 = vpop.f32.mrb[0].mxu0
          %v3461 = vpop.f32.mrb[0].mxu0
          %3462 = vdwg.mxu0
          %3463 = vst [vmem:[%s647] sm:$0xff] %v3458
        $region88: #{tpu_custom_call.1} parent=79 // pred_fallthru
          _
        %s3464 = sand.u32 %s429, 1
        %s3465 = scalar_lea.sflag [#allocation5], %s3464
        %s3466 = sand.u32 %s429, 1
        %s3467 = smul.addr %s3466, 8
        %s3468 = scalar_lea.vmem [#allocation4], %s3467
        // Predicated region
        $region89: #{tpu_custom_call.1} parent=79 // pred_check
          %p3469 = pneg %p439
        $region90: #{tpu_custom_call.1} parent=79 // pred_check_branch
          %3471 = sbr.rel (%p3469) target = $region92
        $region91: #{tpu_custom_call.1} parent=79 // pred_region
          %s3473 = ssub.s32 128, 128
          %3474 = vsyncadd %s3465, %s3473
          %s3475 = smul.addr %s33, 128
          %s3476 = scalar_lea.hbm %s15, %s3475
          %s3478 = sshll.u32 %s3468, 4
          %s3479 = int_to_ptr.vmem [resolvable:$true] %s3478
          %3481 = dma.vmem_to_hbm [thread:$0]  %s3479, 128, %s3476, %s3465
        $region92: #{tpu_custom_call.1} parent=79 // pred_fallthru
          _
      $region80: #{tpu_custom_call.1} parent=5 // pred_fallthru
        _
      %p3482 = scmp.le.s32.totalorder 2, %s24
      // Predicated region
      $region93: #{tpu_custom_call.1} parent=5 // pred_check
        %p3483 = pneg %p3482
      $region94: #{tpu_custom_call.1} parent=5 // pred_check_branch
        %3485 = sbr.rel (%p3483) target = $region96
      $region95: #{tpu_custom_call.1} parent=5 // pred_region
        %s3486 = ssub.s32 %s24, 2
        // Predicated region
        $region97: #{tpu_custom_call.1} parent=95 // pred_check
          %p3487 = pneg %p445
        $region98: #{tpu_custom_call.1} parent=95 // pred_check_branch
          %3489 = sbr.rel (%p3487) target = $region100
        $region99: #{tpu_custom_call.1} parent=95 // pred_region
          %s3490 = sand.u32 %s430, 1
          %s3491 = scalar_lea.sflag [#allocation5], %s3490
          %s3492 = sand.u32 %s430, 1
          %s3493 = smul.addr %s3492, 8
          %s3494 = scalar_lea.vmem [#allocation4], %s3493
          %3495 = dma.done %s3491, 128
        $region100: #{tpu_custom_call.1} parent=95 // pred_fallthru
          _
      $region96: #{tpu_custom_call.1} parent=5 // pred_fallthru
        _
    $region6: #{tpu_custom_call.1} parent=1 // loop_footer
      %s28 = sadd.s32 1, %s24
    $region7: #{tpu_custom_call.1} parent=1 // loop_footer_branch
      %23 = sbr.rel target = $region3
    $region8: #{tpu_custom_call.1} parent=1 // loop_exit
      _
    %3496 = vsyncpa [#allocation5], 1
    %s3497 = scalar_lea.sflag [#allocation5], 1
    %3498 = vsyncpa %s3497, 1

</llo_original>
